<compile_context>
chip_gen: v5e
topology: v5e:2x2
jax: 0.10.0
libtpu: 0.0.40
codegen_flags: <defaults>
</compile_context>

<pallas_src>
import functools

import jax
import jax.numpy as jnp
from jax.experimental import pallas as pl
from jax.experimental.pallas import tpu as pltpu

KSIZE = 7
PAD = 3
LEFT = 8    # left W-pad inside the VMEM scratch: keeps the interior store sublane-aligned
RIGHT = 8   # right W-pad (>= PAD); keeps Wp a multiple of 8 whenever W is


def _gelu(x):
    # PyTorch nn.GELU() defaults to the exact erf form; the tanh approximation is used
    # here for guaranteed Mosaic lowering (max abs error ~3e-4).
    # TODO(synk): switch to exact erf GELU once lax.erf lowering is guaranteed.
    c = jnp.float32(0.7978845608028654)  # sqrt(2/pi)
    return 0.5 * x * (1.0 + jnp.tanh(c * (x + 0.044715 * x * x * x)))


def convnext_block_kernel(x_ref, dww_ref, vec_ref, w1_ref, b1_ref, w2_ref,
                          out_ref, xpad_ref, slab_ref, y_ref, *, eps, strip_h):
    _, H, W, C = x_ref.shape
    Hp, Wp, _ = xpad_ref.shape
    n_strips = H // strip_h
    slab_rows = strip_h + 2 * PAD

    # --- halo-only zeroing (every grid step; megacore-safe) -------------------------
    xpad_ref[0:PAD, :, :] = jnp.zeros((PAD, Wp, C), jnp.float32)
    xpad_ref[PAD + H:Hp, :, :] = jnp.zeros((Hp - PAD - H, Wp, C), jnp.float32)
    xpad_ref[PAD:PAD + H, 0:LEFT, :] = jnp.zeros((H, LEFT, C), jnp.float32)
    xpad_ref[PAD:PAD + H, LEFT + W:Wp, :] = jnp.zeros((H, Wp - LEFT - W, C), jnp.float32)

    # --- interior fill: sublane-aligned store (image starts at column LEFT=8) -------
    xpad_ref[PAD:PAD + H, LEFT:LEFT + W, :] = x_ref[0].astype(jnp.float32)

    dwb = vec_ref[0]   # (C,)  depthwise-conv bias
    lnw = vec_ref[1]   # (C,)  LayerNorm weight
    lnb = vec_ref[2]   # (C,)  LayerNorm bias

    # --- depthwise 7x7 conv + LayerNorm, strip by strip -----------------------------
    # Register-resident (strip_h, W, C) accumulator; one misaligned W-shift per kw
    # into a double-buffered slab, kh taps are aligned leading-axis slices.
    def strip_body(s, carry):
        r0 = s * strip_h
        acc = None
        for kw in range(KSIZE):
            off = (kw % 2) * slab_rows               # double buffer: overlap copy & MACs
            col = LEFT - PAD + kw                    # kw == 3 -> aligned column start
            slab_ref[off:off + slab_rows, :, :] = (
                xpad_ref[pl.ds(r0, slab_rows), pl.ds(col, W), :])
            for kh in range(KSIZE):
                term = (slab_ref[off + kh:off + kh + strip_h, :, :]
                        * dww_ref[kh * KSIZE + kw])
                # fold the conv bias into the first tap (no trailing full-size add)
                acc = (term + dwb) if acc is None else (acc + term)

        # LayerNorm over channels (channels_last, eps inside sqrt)
        mean = jnp.mean(acc, axis=-1, keepdims=True)
        cen = acc - mean
        var = jnp.mean(cen * cen, axis=-1, keepdims=True)
        yn = cen * jax.lax.rsqrt(var + eps)
        yn = yn * lnw + lnb
        y_ref[pl.ds(r0, strip_h), :, :] = yn.astype(jnp.bfloat16)
        return carry

    jax.lax.fori_loop(0, n_strips, strip_body, 0)

    # --- pointwise MLP: C -> 4C -> C (bf16 operands, f32 accumulation, MXU) ---------
    # NOTE: the (H, W, C) -> (H*W, C) reshape is a layout no-op only when W % 8 == 0
    #       (true for the 56x56 / 28x28 ConvNeXt stages and this test shape).
    y = y_ref[...].reshape(H * W, C)
    h = jnp.dot(y, w1_ref[...], preferred_element_type=jnp.float32) + b1_ref[...]
    h = _gelu(h)
    z = jnp.dot(h.astype(jnp.bfloat16), w2_ref[...], preferred_element_type=jnp.float32)
    z = (z + vec_ref[3]) * vec_ref[4]                # + pwconv2 bias, * layer-scale gamma

    # --- residual (drop_path = Identity); re-read x_ref so no f32 copy stays live ---
    out_ref[0] = (x_ref[0].astype(jnp.float32) + z.reshape(H, W, C)).astype(out_ref.dtype)


def _pick_strip_h(H, W, C):
    """Largest strip (<= 8 rows) dividing H whose f32 accumulator fits well in vregs."""
    for sh in (8, 4, 2, 1):
        if H % sh == 0 and sh * W * C * 4 <= 128 * 1024:
            return sh
    return 1


def _vmem_limit_bytes(H, W, C, strip_h):
    f32, bf16 = 4, 2
    blk = H * W * C * f32                                     # one (1,H,W,C) block
    xpad = (H + 2 * PAD) * (W + LEFT + RIGHT) * C * f32
    slab = 2 * (strip_h + 2 * PAD) * W * C * f32
    y = H * W * C * bf16
    h = H * W * 4 * C * f32                                   # largest matmul temporary
    z = H * W * C * f32
    wts = ((KSIZE * KSIZE * C + 5 * C + 4 * C) * f32
           + (C * 4 * C + 4 * C * C) * bf16)
    usage = 4 * blk + 2 * wts + xpad + slab + y + h + z       # in/out double-buffered
    return int(max(32 << 20, min(48 << 20, int(usage * 1.5))))


def convnext_block(x_nchw, params, *, eps=1e-6):
    dww, vecs, w1, b1, w2 = params
    N, C, H, W = x_nchw.shape
    x = jnp.transpose(x_nchw, (0, 2, 3, 1))                   # NHWC: channels on lanes
    Hp = H + 2 * PAD
    Wp = W + LEFT + RIGHT
    strip_h = _pick_strip_h(H, W, C)

    def full(shape):
        return pl.BlockSpec(shape, lambda *_: (0,) * len(shape))

    kernel = functools.partial(convnext_block_kernel, eps=eps, strip_h=strip_h)
    out_nhwc = pl.pallas_call(
        kernel,
        out_shape=jax.ShapeDtypeStruct((N, H, W, C), x.dtype),
        grid=(N,),
        in_specs=[
            pl.BlockSpec((1, H, W, C), lambda b: (b, 0, 0, 0)),  # input (also residual)
            full((KSIZE * KSIZE, C)),                            # dw weight rows (49, C)
            full((5, C)),                                        # dwb/lnw/lnb/b2/gamma packed
            full((C, 4 * C)),                                    # pwconv1 W^T (bf16)
            full((1, 4 * C)),                                    # pwconv1 b
            full((4 * C, C)),                                    # pwconv2 W^T (bf16)
        ],
        out_specs=pl.BlockSpec((1, H, W, C), lambda b: (b, 0, 0, 0)),
        scratch_shapes=[
            pltpu.VMEM((Hp, Wp, C), jnp.float32),                       # padded activation
            pltpu.VMEM((2 * (strip_h + 2 * PAD), W, C), jnp.float32),   # double-buffered slab
            pltpu.VMEM((H, W, C), jnp.bfloat16),                        # LN output (MXU operand)
        ],
        compiler_params=pltpu.CompilerParams(
            dimension_semantics=("parallel",),
            vmem_limit_bytes=_vmem_limit_bytes(H, W, C, strip_h),
        ),
    )(x, dww, vecs, w1, b1, w2)
    return jnp.transpose(out_nhwc, (0, 3, 1, 2))                 # back to NCHW


def init_params(key, dim, layer_scale_init_value=1e-6):
    """Deterministic synthetic init matching the PyTorch parameter shapes."""
    ks = jax.random.split(key, 6)
    # nn.Conv2d(dim, dim, 7, padding=3, groups=dim): weight (dim,1,7,7), bias (dim,)
    dw_w_torch = jax.random.normal(ks[0], (dim, 1, KSIZE, KSIZE), jnp.float32) * 0.1
    dww = jnp.transpose(dw_w_torch[:, 0], (1, 2, 0)).reshape(KSIZE * KSIZE, dim)  # (49,dim)
    dwb = jax.random.normal(ks[1], (dim,), jnp.float32) * 0.1
    # LayerNorm(dim): weight=ones, bias=zeros (module __init__)
    lnw = jnp.ones((dim,), jnp.float32)
    lnb = jnp.zeros((dim,), jnp.float32)
    # nn.Linear(dim, 4*dim): weight (4*dim, dim), bias (4*dim,)
    w1_t = jax.random.normal(ks[2], (4 * dim, dim), jnp.float32) * 0.1
    w1 = jnp.transpose(w1_t).astype(jnp.bfloat16)                # (dim, 4*dim) bf16
    b1 = (jax.random.normal(ks[3], (4 * dim,), jnp.float32) * 0.1).reshape(1, 4 * dim)
    # nn.Linear(4*dim, dim): weight (dim, 4*dim), bias (dim,)
    w2_t = jax.random.normal(ks[4], (dim, 4 * dim), jnp.float32) * 0.1
    w2 = jnp.transpose(w2_t).astype(jnp.bfloat16)                # (4*dim, dim) bf16
    b2 = jax.random.normal(ks[5], (dim,), jnp.float32) * 0.1
    # gamma = layer_scale_init_value * ones(dim)
    gamma = jnp.full((dim,), layer_scale_init_value, jnp.float32)
    vecs = jnp.stack([dwb, lnw, lnb, b2, gamma], axis=0)         # (5, dim) packed vectors
    return (dww, vecs, w1, b1, w2)


def reference(x_nchw, params, eps=1e-6):
    """Pure-JAX reference of the PyTorch Block.forward (same GELU variant and the
    same bf16-operand / f32-accumulate matmul convention as the kernel)."""
    dww, vecs, w1, b1, w2 = params
    dwb, lnw, lnb, b2, gamma = (vecs[i] for i in range(5))
    N, C, H, W = x_nchw.shape
    x = jnp.transpose(x_nchw, (0, 2, 3, 1))                      # NHWC
    w = dww.reshape(KSIZE, KSIZE, 1, C)                          # HWIO, depthwise
    y = jax.lax.conv_general_dilated(
        x, w, window_strides=(1, 1), padding=((PAD, PAD), (PAD, PAD)),
        dimension_numbers=("NHWC", "HWIO", "NHWC"),
        feature_group_count=C) + dwb
    mean = y.mean(-1, keepdims=True)
    cen = y - mean
    var = (cen * cen).mean(-1, keepdims=True)
    yn = cen * jax.lax.rsqrt(var + eps)
    yn = yn * lnw + lnb
    yf = yn.reshape(-1, C).astype(jnp.bfloat16)
    h = _gelu(jnp.dot(yf, w1, preferred_element_type=jnp.float32) + b1.reshape(-1))
    z = jnp.dot(h.astype(jnp.bfloat16), w2, preferred_element_type=jnp.float32) + b2
    z = (z * gamma).reshape(N, H, W, C)
    out = x + z
    return jnp.transpose(out, (0, 3, 1, 2))


if __name__ == "__main__":
    N, dim, H, W = 2, 16, 16, 16
    key = jax.random.PRNGKey(0)
    kx, kp = jax.random.split(key)

    x = jax.random.normal(kx, (N, dim, H, W), jnp.float32)   # NCHW, like PyTorch
    params = init_params(kp, dim)

    out = jax.jit(lambda xx: convnext_block(xx, params))(x)
    out = jax.block_until_ready(out)

    ref = reference(x, params)
    assert out.shape == x.shape and out.dtype == x.dtype
    assert jnp.allclose(out, ref, atol=2e-5, rtol=2e-5), "full-output mismatch"
    # Check the non-residual branch (scaled by gamma=1e-6) separately.
    branch_err = jnp.max(jnp.abs((out - x) - (ref - x)))
    assert float(branch_err) < 1e-7, f"branch mismatch {branch_err}"

    print("KERNEL_OK")
</pallas_src>

<mosaic_0001>
module attributes {stable_mosaic.version = 11 : i64} {
  func.func @convnext_block_kernel(%arg0: i32, %arg1: memref<1x16x16x16xf32, #tpu.memory_space<vmem>>, %arg2: memref<49x16xf32, #tpu.memory_space<vmem>>, %arg3: memref<5x16xf32, #tpu.memory_space<vmem>>, %arg4: memref<16x64xbf16, #tpu.memory_space<vmem>>, %arg5: memref<1x64xf32, #tpu.memory_space<vmem>>, %arg6: memref<64x16xbf16, #tpu.memory_space<vmem>>, %arg7: memref<1x16x16x16xf32, #tpu.memory_space<vmem>>, %arg8: memref<22x32x16xf32, #tpu.memory_space<vmem>>, %arg9: memref<28x16x16xf32, #tpu.memory_space<vmem>>, %arg10: memref<16x16x16xbf16, #tpu.memory_space<vmem>>) attributes {dimension_semantics = [#tpu.dimension_semantics<parallel>], iteration_bounds = array<i64: 2>, scalar_prefetch = 0 : i64, scratch_operands = 3 : i64, tpu.core_type = #tpu.core_type<tc>, window_params = [{transform_indices = @transform_0, window_bounds = array<i64: 1, 16, 16, 16>}, {pipeline_mode = #tpu.pipeline_mode<synchronous>, transform_indices = @transform_1, window_bounds = array<i64: 49, 16>}, {pipeline_mode = #tpu.pipeline_mode<synchronous>, transform_indices = @transform_2, window_bounds = array<i64: 5, 16>}, {pipeline_mode = #tpu.pipeline_mode<synchronous>, transform_indices = @transform_3, window_bounds = array<i64: 16, 64>}, {pipeline_mode = #tpu.pipeline_mode<synchronous>, transform_indices = @transform_4, window_bounds = array<i64: 1, 64>}, {pipeline_mode = #tpu.pipeline_mode<synchronous>, transform_indices = @transform_5, window_bounds = array<i64: 64, 16>}, {transform_indices = @transform_6, window_bounds = array<i64: 1, 16, 16, 16>}]} {
    %cst = arith.constant 0.000000e+00 : f32
    %0 = vector.broadcast %cst : f32 to vector<3x32x16xf32>
    %c0 = arith.constant 0 : index
    %c0_0 = arith.constant 0 : index
    %c0_1 = arith.constant 0 : index
    %1 = vector.load %arg8[%c0, %c0_0, %c0_1] : memref<22x32x16xf32, #tpu.memory_space<vmem>>, vector<3x32x16xf32>
    tpu.vector_store %arg8[%c0, %c0_0, %c0_1], %0 {strides = array<i32>} : memref<22x32x16xf32, #tpu.memory_space<vmem>>, vector<3x32x16xf32>,
    %cst_2 = arith.constant 0.000000e+00 : f32
    %2 = vector.broadcast %cst_2 : f32 to vector<3x32x16xf32>
    %c19 = arith.constant 19 : index
    %c0_3 = arith.constant 0 : index
    %c0_4 = arith.constant 0 : index
    %3 = vector.load %arg8[%c19, %c0_3, %c0_4] : memref<22x32x16xf32, #tpu.memory_space<vmem>>, vector<3x32x16xf32>
    tpu.vector_store %arg8[%c19, %c0_3, %c0_4], %2 {strides = array<i32>} : memref<22x32x16xf32, #tpu.memory_space<vmem>>, vector<3x32x16xf32>,
    %cst_5 = arith.constant 0.000000e+00 : f32
    %4 = vector.broadcast %cst_5 : f32 to vector<16x8x16xf32>
    %c3 = arith.constant 3 : index
    %c0_6 = arith.constant 0 : index
    %c0_7 = arith.constant 0 : index
    %5 = vector.load %arg8[%c3, %c0_6, %c0_7] : memref<22x32x16xf32, #tpu.memory_space<vmem>>, vector<16x8x16xf32>
    tpu.vector_store %arg8[%c3, %c0_6, %c0_7], %4 {strides = array<i32>} : memref<22x32x16xf32, #tpu.memory_space<vmem>>, vector<16x8x16xf32>,
    %cst_8 = arith.constant 0.000000e+00 : f32
    %6 = vector.broadcast %cst_8 : f32 to vector<16x8x16xf32>
    %c3_9 = arith.constant 3 : index
    %c24 = arith.constant 24 : index
    %c0_10 = arith.constant 0 : index
    %7 = vector.load %arg8[%c3_9, %c24, %c0_10] : memref<22x32x16xf32, #tpu.memory_space<vmem>>, vector<16x8x16xf32>
    tpu.vector_store %arg8[%c3_9, %c24, %c0_10], %6 {strides = array<i32>} : memref<22x32x16xf32, #tpu.memory_space<vmem>>, vector<16x8x16xf32>,
    %c0_11 = arith.constant 0 : index
    %c0_12 = arith.constant 0 : index
    %c0_13 = arith.constant 0 : index
    %c0_14 = arith.constant 0 : index
    %8 = vector.load %arg1[%c0_11, %c0_12, %c0_13, %c0_14] : memref<1x16x16x16xf32, #tpu.memory_space<vmem>>, vector<1x16x16x16xf32>
    %9 = vector.shape_cast %8 : vector<1x16x16x16xf32> to vector<16x16x16xf32>
    %c3_15 = arith.constant 3 : index
    %c8 = arith.constant 8 : index
    %c0_16 = arith.constant 0 : index
    %10 = vector.load %arg8[%c3_15, %c8, %c0_16] : memref<22x32x16xf32, #tpu.memory_space<vmem>>, vector<16x16x16xf32>
    tpu.vector_store %arg8[%c3_15, %c8, %c0_16], %9 {strides = array<i32>} : memref<22x32x16xf32, #tpu.memory_space<vmem>>, vector<16x16x16xf32>,
    %c0_17 = arith.constant 0 : index
    %c0_18 = arith.constant 0 : index
    %11 = vector.load %arg3[%c0_17, %c0_18] : memref<5x16xf32, #tpu.memory_space<vmem>>, vector<1x16xf32>
    %12 = vector.shape_cast %11 : vector<1x16xf32> to vector<16xf32>
    %c1 = arith.constant 1 : index
    %c0_19 = arith.constant 0 : index
    %13 = vector.load %arg3[%c1, %c0_19] : memref<5x16xf32, #tpu.memory_space<vmem>>, vector<1x16xf32>
    %14 = vector.shape_cast %13 : vector<1x16xf32> to vector<16xf32>
    %c2 = arith.constant 2 : index
    %c0_20 = arith.constant 0 : index
    %15 = vector.load %arg3[%c2, %c0_20] : memref<5x16xf32, #tpu.memory_space<vmem>>, vector<1x16xf32>
    %16 = vector.shape_cast %15 : vector<1x16xf32> to vector<16xf32>
    %c0_i32 = arith.constant 0 : i32
    %c2_i32 = arith.constant 2 : i32
    %17 = arith.addi %c0_i32, %c2_i32 : i32
    %c1_i32 = arith.constant 1 : i32
    scf.for %arg11 = %c0_i32 to %17 step %c1_i32  : i32 {
      %c8_i32 = arith.constant 8 : i32
      %58 = arith.muli %arg11, %c8_i32 : i32
      %59 = arith.index_cast %58 : i32 to index
      %c5 = arith.constant 5 : index
      %c0_48 = arith.constant 0 : index
      %60 = vector.load %arg8[%59, %c5, %c0_48] : memref<22x32x16xf32, #tpu.memory_space<vmem>>, vector<14x16x16xf32>
      %c0_49 = arith.constant 0 : index
      %c0_50 = arith.constant 0 : index
      %c0_51 = arith.constant 0 : index
      %61 = vector.load %arg9[%c0_49, %c0_50, %c0_51] : memref<28x16x16xf32, #tpu.memory_space<vmem>>, vector<14x16x16xf32>
      tpu.vector_store %arg9[%c0_49, %c0_50, %c0_51], %60 {strides = array<i32>} : memref<28x16x16xf32, #tpu.memory_space<vmem>>, vector<14x16x16xf32>,
      %c0_52 = arith.constant 0 : index
      %c0_53 = arith.constant 0 : index
      %c0_54 = arith.constant 0 : index
      %62 = vector.load %arg9[%c0_52, %c0_53, %c0_54] : memref<28x16x16xf32, #tpu.memory_space<vmem>>, vector<8x16x16xf32>
      %c0_55 = arith.constant 0 : index
      %c0_56 = arith.constant 0 : index
      %63 = vector.load %arg2[%c0_55, %c0_56] : memref<49x16xf32, #tpu.memory_space<vmem>>, vector<1x16xf32>
      %64 = vector.shape_cast %63 : vector<1x16xf32> to vector<16xf32>
      %65 = vector.shape_cast %64 : vector<16xf32> to vector<1x1x16xf32>
      %66 = vector.broadcast %65 : vector<1x1x16xf32> to vector<8x16x16xf32>
      %67 = arith.mulf %62, %66 : vector<8x16x16xf32>
      %68 = vector.shape_cast %12 : vector<16xf32> to vector<1x1x16xf32>
      %69 = vector.broadcast %68 : vector<1x1x16xf32> to vector<8x16x16xf32>
      %70 = arith.addf %67, %69 : vector<8x16x16xf32>
      %c1_57 = arith.constant 1 : index
      %c0_58 = arith.constant 0 : index
      %c0_59 = arith.constant 0 : index
      %71 = vector.load %arg9[%c1_57, %c0_58, %c0_59] : memref<28x16x16xf32, #tpu.memory_space<vmem>>, vector<8x16x16xf32>
      %c7 = arith.constant 7 : index
      %c0_60 = arith.constant 0 : index
      %72 = vector.load %arg2[%c7, %c0_60] : memref<49x16xf32, #tpu.memory_space<vmem>>, vector<1x16xf32>
      %73 = vector.shape_cast %72 : vector<1x16xf32> to vector<16xf32>
      %74 = vector.shape_cast %73 : vector<16xf32> to vector<1x1x16xf32>
      %75 = vector.broadcast %74 : vector<1x1x16xf32> to vector<8x16x16xf32>
      %76 = arith.mulf %71, %75 : vector<8x16x16xf32>
      %77 = arith.addf %70, %76 : vector<8x16x16xf32>
      %c2_61 = arith.constant 2 : index
      %c0_62 = arith.constant 0 : index
      %c0_63 = arith.constant 0 : index
      %78 = vector.load %arg9[%c2_61, %c0_62, %c0_63] : memref<28x16x16xf32, #tpu.memory_space<vmem>>, vector<8x16x16xf32>
      %c14 = arith.constant 14 : index
      %c0_64 = arith.constant 0 : index
      %79 = vector.load %arg2[%c14, %c0_64] : memref<49x16xf32, #tpu.memory_space<vmem>>, vector<1x16xf32>
      %80 = vector.shape_cast %79 : vector<1x16xf32> to vector<16xf32>
      %81 = vector.shape_cast %80 : vector<16xf32> to vector<1x1x16xf32>
      %82 = vector.broadcast %81 : vector<1x1x16xf32> to vector<8x16x16xf32>
      %83 = arith.mulf %78, %82 : vector<8x16x16xf32>
      %84 = arith.addf %77, %83 : vector<8x16x16xf32>
      %c3_65 = arith.constant 3 : index
      %c0_66 = arith.constant 0 : index
      %c0_67 = arith.constant 0 : index
      %85 = vector.load %arg9[%c3_65, %c0_66, %c0_67] : memref<28x16x16xf32, #tpu.memory_space<vmem>>, vector<8x16x16xf32>
      %c21 = arith.constant 21 : index
      %c0_68 = arith.constant 0 : index
      %86 = vector.load %arg2[%c21, %c0_68] : memref<49x16xf32, #tpu.memory_space<vmem>>, vector<1x16xf32>
      %87 = vector.shape_cast %86 : vector<1x16xf32> to vector<16xf32>
      %88 = vector.shape_cast %87 : vector<16xf32> to vector<1x1x16xf32>
      %89 = vector.broadcast %88 : vector<1x1x16xf32> to vector<8x16x16xf32>
      %90 = arith.mulf %85, %89 : vector<8x16x16xf32>
      %91 = arith.addf %84, %90 : vector<8x16x16xf32>
      %c4_69 = arith.constant 4 : index
      %c0_70 = arith.constant 0 : index
      %c0_71 = arith.constant 0 : index
      %92 = vector.load %arg9[%c4_69, %c0_70, %c0_71] : memref<28x16x16xf32, #tpu.memory_space<vmem>>, vector<8x16x16xf32>
      %c28 = arith.constant 28 : index
      %c0_72 = arith.constant 0 : index
      %93 = vector.load %arg2[%c28, %c0_72] : memref<49x16xf32, #tpu.memory_space<vmem>>, vector<1x16xf32>
      %94 = vector.shape_cast %93 : vector<1x16xf32> to vector<16xf32>
      %95 = vector.shape_cast %94 : vector<16xf32> to vector<1x1x16xf32>
      %96 = vector.broadcast %95 : vector<1x1x16xf32> to vector<8x16x16xf32>
      %97 = arith.mulf %92, %96 : vector<8x16x16xf32>
      %98 = arith.addf %91, %97 : vector<8x16x16xf32>
      %c5_73 = arith.constant 5 : index
      %c0_74 = arith.constant 0 : index
      %c0_75 = arith.constant 0 : index
      %99 = vector.load %arg9[%c5_73, %c0_74, %c0_75] : memref<28x16x16xf32, #tpu.memory_space<vmem>>, vector<8x16x16xf32>
      %c35 = arith.constant 35 : index
      %c0_76 = arith.constant 0 : index
      %100 = vector.load %arg2[%c35, %c0_76] : memref<49x16xf32, #tpu.memory_space<vmem>>, vector<1x16xf32>
      %101 = vector.shape_cast %100 : vector<1x16xf32> to vector<16xf32>
      %102 = vector.shape_cast %101 : vector<16xf32> to vector<1x1x16xf32>
      %103 = vector.broadcast %102 : vector<1x1x16xf32> to vector<8x16x16xf32>
      %104 = arith.mulf %99, %103 : vector<8x16x16xf32>
      %105 = arith.addf %98, %104 : vector<8x16x16xf32>
      %c6 = arith.constant 6 : index
      %c0_77 = arith.constant 0 : index
      %c0_78 = arith.constant 0 : index
      %106 = vector.load %arg9[%c6, %c0_77, %c0_78] : memref<28x16x16xf32, #tpu.memory_space<vmem>>, vector<8x16x16xf32>
      %c42 = arith.constant 42 : index
      %c0_79 = arith.constant 0 : index
      %107 = vector.load %arg2[%c42, %c0_79] : memref<49x16xf32, #tpu.memory_space<vmem>>, vector<1x16xf32>
      %108 = vector.shape_cast %107 : vector<1x16xf32> to vector<16xf32>
      %109 = vector.shape_cast %108 : vector<16xf32> to vector<1x1x16xf32>
      %110 = vector.broadcast %109 : vector<1x1x16xf32> to vector<8x16x16xf32>
      %111 = arith.mulf %106, %110 : vector<8x16x16xf32>
      %112 = arith.addf %105, %111 : vector<8x16x16xf32>
      %113 = arith.index_cast %58 : i32 to index
      %c6_80 = arith.constant 6 : index
      %c0_81 = arith.constant 0 : index
      %114 = vector.load %arg8[%113, %c6_80, %c0_81] : memref<22x32x16xf32, #tpu.memory_space<vmem>>, vector<14x16x16xf32>
      %c14_82 = arith.constant 14 : index
      %c0_83 = arith.constant 0 : index
      %c0_84 = arith.constant 0 : index
      %115 = vector.load %arg9[%c14_82, %c0_83, %c0_84] : memref<28x16x16xf32, #tpu.memory_space<vmem>>, vector<14x16x16xf32>
      tpu.vector_store %arg9[%c14_82, %c0_83, %c0_84], %114 {strides = array<i32>} : memref<28x16x16xf32, #tpu.memory_space<vmem>>, vector<14x16x16xf32>,
      %c14_85 = arith.constant 14 : index
      %c0_86 = arith.constant 0 : index
      %c0_87 = arith.constant 0 : index
      %116 = vector.load %arg9[%c14_85, %c0_86, %c0_87] : memref<28x16x16xf32, #tpu.memory_space<vmem>>, vector<8x16x16xf32>
      %c1_88 = arith.constant 1 : index
      %c0_89 = arith.constant 0 : index
      %117 = vector.load %arg2[%c1_88, %c0_89] : memref<49x16xf32, #tpu.memory_space<vmem>>, vector<1x16xf32>
      %118 = vector.shape_cast %117 : vector<1x16xf32> to vector<16xf32>
      %119 = vector.shape_cast %118 : vector<16xf32> to vector<1x1x16xf32>
      %120 = vector.broadcast %119 : vector<1x1x16xf32> to vector<8x16x16xf32>
      %121 = arith.mulf %116, %120 : vector<8x16x16xf32>
      %122 = arith.addf %112, %121 : vector<8x16x16xf32>
      %c15 = arith.constant 15 : index
      %c0_90 = arith.constant 0 : index
      %c0_91 = arith.constant 0 : index
      %123 = vector.load %arg9[%c15, %c0_90, %c0_91] : memref<28x16x16xf32, #tpu.memory_space<vmem>>, vector<8x16x16xf32>
      %c8_92 = arith.constant 8 : index
      %c0_93 = arith.constant 0 : index
      %124 = vector.load %arg2[%c8_92, %c0_93] : memref<49x16xf32, #tpu.memory_space<vmem>>, vector<1x16xf32>
      %125 = vector.shape_cast %124 : vector<1x16xf32> to vector<16xf32>
      %126 = vector.shape_cast %125 : vector<16xf32> to vector<1x1x16xf32>
      %127 = vector.broadcast %126 : vector<1x1x16xf32> to vector<8x16x16xf32>
      %128 = arith.mulf %123, %127 : vector<8x16x16xf32>
      %129 = arith.addf %122, %128 : vector<8x16x16xf32>
      %c16 = arith.constant 16 : index
      %c0_94 = arith.constant 0 : index
      %c0_95 = arith.constant 0 : index
      %130 = vector.load %arg9[%c16, %c0_94, %c0_95] : memref<28x16x16xf32, #tpu.memory_space<vmem>>, vector<8x16x16xf32>
      %c15_96 = arith.constant 15 : index
      %c0_97 = arith.constant 0 : index
      %131 = vector.load %arg2[%c15_96, %c0_97] : memref<49x16xf32, #tpu.memory_space<vmem>>, vector<1x16xf32>
      %132 = vector.shape_cast %131 : vector<1x16xf32> to vector<16xf32>
      %133 = vector.shape_cast %132 : vector<16xf32> to vector<1x1x16xf32>
      %134 = vector.broadcast %133 : vector<1x1x16xf32> to vector<8x16x16xf32>
      %135 = arith.mulf %130, %134 : vector<8x16x16xf32>
      %136 = arith.addf %129, %135 : vector<8x16x16xf32>
      %c17 = arith.constant 17 : index
      %c0_98 = arith.constant 0 : index
      %c0_99 = arith.constant 0 : index
      %137 = vector.load %arg9[%c17, %c0_98, %c0_99] : memref<28x16x16xf32, #tpu.memory_space<vmem>>, vector<8x16x16xf32>
      %c22 = arith.constant 22 : index
      %c0_100 = arith.constant 0 : index
      %138 = vector.load %arg2[%c22, %c0_100] : memref<49x16xf32, #tpu.memory_space<vmem>>, vector<1x16xf32>
      %139 = vector.shape_cast %138 : vector<1x16xf32> to vector<16xf32>
      %140 = vector.shape_cast %139 : vector<16xf32> to vector<1x1x16xf32>
      %141 = vector.broadcast %140 : vector<1x1x16xf32> to vector<8x16x16xf32>
      %142 = arith.mulf %137, %141 : vector<8x16x16xf32>
      %143 = arith.addf %136, %142 : vector<8x16x16xf32>
      %c18 = arith.constant 18 : index
      %c0_101 = arith.constant 0 : index
      %c0_102 = arith.constant 0 : index
      %144 = vector.load %arg9[%c18, %c0_101, %c0_102] : memref<28x16x16xf32, #tpu.memory_space<vmem>>, vector<8x16x16xf32>
      %c29 = arith.constant 29 : index
      %c0_103 = arith.constant 0 : index
      %145 = vector.load %arg2[%c29, %c0_103] : memref<49x16xf32, #tpu.memory_space<vmem>>, vector<1x16xf32>
      %146 = vector.shape_cast %145 : vector<1x16xf32> to vector<16xf32>
      %147 = vector.shape_cast %146 : vector<16xf32> to vector<1x1x16xf32>
      %148 = vector.broadcast %147 : vector<1x1x16xf32> to vector<8x16x16xf32>
      %149 = arith.mulf %144, %148 : vector<8x16x16xf32>
      %150 = arith.addf %143, %149 : vector<8x16x16xf32>
      %c19_104 = arith.constant 19 : index
      %c0_105 = arith.constant 0 : index
      %c0_106 = arith.constant 0 : index
      %151 = vector.load %arg9[%c19_104, %c0_105, %c0_106] : memref<28x16x16xf32, #tpu.memory_space<vmem>>, vector<8x16x16xf32>
      %c36 = arith.constant 36 : index
      %c0_107 = arith.constant 0 : index
      %152 = vector.load %arg2[%c36, %c0_107] : memref<49x16xf32, #tpu.memory_space<vmem>>, vector<1x16xf32>
      %153 = vector.shape_cast %152 : vector<1x16xf32> to vector<16xf32>
      %154 = vector.shape_cast %153 : vector<16xf32> to vector<1x1x16xf32>
      %155 = vector.broadcast %154 : vector<1x1x16xf32> to vector<8x16x16xf32>
      %156 = arith.mulf %151, %155 : vector<8x16x16xf32>
      %157 = arith.addf %150, %156 : vector<8x16x16xf32>
      %c20 = arith.constant 20 : index
      %c0_108 = arith.constant 0 : index
      %c0_109 = arith.constant 0 : index
      %158 = vector.load %arg9[%c20, %c0_108, %c0_109] : memref<28x16x16xf32, #tpu.memory_space<vmem>>, vector<8x16x16xf32>
      %c43 = arith.constant 43 : index
      %c0_110 = arith.constant 0 : index
      %159 = vector.load %arg2[%c43, %c0_110] : memref<49x16xf32, #tpu.memory_space<vmem>>, vector<1x16xf32>
      %160 = vector.shape_cast %159 : vector<1x16xf32> to vector<16xf32>
      %161 = vector.shape_cast %160 : vector<16xf32> to vector<1x1x16xf32>
      %162 = vector.broadcast %161 : vector<1x1x16xf32> to vector<8x16x16xf32>
      %163 = arith.mulf %158, %162 : vector<8x16x16xf32>
      %164 = arith.addf %157, %163 : vector<8x16x16xf32>
      %165 = arith.index_cast %58 : i32 to index
      %c7_111 = arith.constant 7 : index
      %c0_112 = arith.constant 0 : index
      %166 = vector.load %arg8[%165, %c7_111, %c0_112] : memref<22x32x16xf32, #tpu.memory_space<vmem>>, vector<14x16x16xf32>
      %c0_113 = arith.constant 0 : index
      %c0_114 = arith.constant 0 : index
      %c0_115 = arith.constant 0 : index
      %167 = vector.load %arg9[%c0_113, %c0_114, %c0_115] : memref<28x16x16xf32, #tpu.memory_space<vmem>>, vector<14x16x16xf32>
      tpu.vector_store %arg9[%c0_113, %c0_114, %c0_115], %166 {strides = array<i32>} : memref<28x16x16xf32, #tpu.memory_space<vmem>>, vector<14x16x16xf32>,
      %c0_116 = arith.constant 0 : index
      %c0_117 = arith.constant 0 : index
      %c0_118 = arith.constant 0 : index
      %168 = vector.load %arg9[%c0_116, %c0_117, %c0_118] : memref<28x16x16xf32, #tpu.memory_space<vmem>>, vector<8x16x16xf32>
      %c2_119 = arith.constant 2 : index
      %c0_120 = arith.constant 0 : index
      %169 = vector.load %arg2[%c2_119, %c0_120] : memref<49x16xf32, #tpu.memory_space<vmem>>, vector<1x16xf32>
      %170 = vector.shape_cast %169 : vector<1x16xf32> to vector<16xf32>
      %171 = vector.shape_cast %170 : vector<16xf32> to vector<1x1x16xf32>
      %172 = vector.broadcast %171 : vector<1x1x16xf32> to vector<8x16x16xf32>
      %173 = arith.mulf %168, %172 : vector<8x16x16xf32>
      %174 = arith.addf %164, %173 : vector<8x16x16xf32>
      %c1_121 = arith.constant 1 : index
      %c0_122 = arith.constant 0 : index
      %c0_123 = arith.constant 0 : index
      %175 = vector.load %arg9[%c1_121, %c0_122, %c0_123] : memref<28x16x16xf32, #tpu.memory_space<vmem>>, vector<8x16x16xf32>
      %c9 = arith.constant 9 : index
      %c0_124 = arith.constant 0 : index
      %176 = vector.load %arg2[%c9, %c0_124] : memref<49x16xf32, #tpu.memory_space<vmem>>, vector<1x16xf32>
      %177 = vector.shape_cast %176 : vector<1x16xf32> to vector<16xf32>
      %178 = vector.shape_cast %177 : vector<16xf32> to vector<1x1x16xf32>
      %179 = vector.broadcast %178 : vector<1x1x16xf32> to vector<8x16x16xf32>
      %180 = arith.mulf %175, %179 : vector<8x16x16xf32>
      %181 = arith.addf %174, %180 : vector<8x16x16xf32>
      %c2_125 = arith.constant 2 : index
      %c0_126 = arith.constant 0 : index
      %c0_127 = arith.constant 0 : index
      %182 = vector.load %arg9[%c2_125, %c0_126, %c0_127] : memref<28x16x16xf32, #tpu.memory_space<vmem>>, vector<8x16x16xf32>
      %c16_128 = arith.constant 16 : index
      %c0_129 = arith.constant 0 : index
      %183 = vector.load %arg2[%c16_128, %c0_129] : memref<49x16xf32, #tpu.memory_space<vmem>>, vector<1x16xf32>
      %184 = vector.shape_cast %183 : vector<1x16xf32> to vector<16xf32>
      %185 = vector.shape_cast %184 : vector<16xf32> to vector<1x1x16xf32>
      %186 = vector.broadcast %185 : vector<1x1x16xf32> to vector<8x16x16xf32>
      %187 = arith.mulf %182, %186 : vector<8x16x16xf32>
      %188 = arith.addf %181, %187 : vector<8x16x16xf32>
      %c3_130 = arith.constant 3 : index
      %c0_131 = arith.constant 0 : index
      %c0_132 = arith.constant 0 : index
      %189 = vector.load %arg9[%c3_130, %c0_131, %c0_132] : memref<28x16x16xf32, #tpu.memory_space<vmem>>, vector<8x16x16xf32>
      %c23 = arith.constant 23 : index
      %c0_133 = arith.constant 0 : index
      %190 = vector.load %arg2[%c23, %c0_133] : memref<49x16xf32, #tpu.memory_space<vmem>>, vector<1x16xf32>
      %191 = vector.shape_cast %190 : vector<1x16xf32> to vector<16xf32>
      %192 = vector.shape_cast %191 : vector<16xf32> to vector<1x1x16xf32>
      %193 = vector.broadcast %192 : vector<1x1x16xf32> to vector<8x16x16xf32>
      %194 = arith.mulf %189, %193 : vector<8x16x16xf32>
      %195 = arith.addf %188, %194 : vector<8x16x16xf32>
      %c4_134 = arith.constant 4 : index
      %c0_135 = arith.constant 0 : index
      %c0_136 = arith.constant 0 : index
      %196 = vector.load %arg9[%c4_134, %c0_135, %c0_136] : memref<28x16x16xf32, #tpu.memory_space<vmem>>, vector<8x16x16xf32>
      %c30 = arith.constant 30 : index
      %c0_137 = arith.constant 0 : index
      %197 = vector.load %arg2[%c30, %c0_137] : memref<49x16xf32, #tpu.memory_space<vmem>>, vector<1x16xf32>
      %198 = vector.shape_cast %197 : vector<1x16xf32> to vector<16xf32>
      %199 = vector.shape_cast %198 : vector<16xf32> to vector<1x1x16xf32>
      %200 = vector.broadcast %199 : vector<1x1x16xf32> to vector<8x16x16xf32>
      %201 = arith.mulf %196, %200 : vector<8x16x16xf32>
      %202 = arith.addf %195, %201 : vector<8x16x16xf32>
      %c5_138 = arith.constant 5 : index
      %c0_139 = arith.constant 0 : index
      %c0_140 = arith.constant 0 : index
      %203 = vector.load %arg9[%c5_138, %c0_139, %c0_140] : memref<28x16x16xf32, #tpu.memory_space<vmem>>, vector<8x16x16xf32>
      %c37 = arith.constant 37 : index
      %c0_141 = arith.constant 0 : index
      %204 = vector.load %arg2[%c37, %c0_141] : memref<49x16xf32, #tpu.memory_space<vmem>>, vector<1x16xf32>
      %205 = vector.shape_cast %204 : vector<1x16xf32> to vector<16xf32>
      %206 = vector.shape_cast %205 : vector<16xf32> to vector<1x1x16xf32>
      %207 = vector.broadcast %206 : vector<1x1x16xf32> to vector<8x16x16xf32>
      %208 = arith.mulf %203, %207 : vector<8x16x16xf32>
      %209 = arith.addf %202, %208 : vector<8x16x16xf32>
      %c6_142 = arith.constant 6 : index
      %c0_143 = arith.constant 0 : index
      %c0_144 = arith.constant 0 : index
      %210 = vector.load %arg9[%c6_142, %c0_143, %c0_144] : memref<28x16x16xf32, #tpu.memory_space<vmem>>, vector<8x16x16xf32>
      %c44 = arith.constant 44 : index
      %c0_145 = arith.constant 0 : index
      %211 = vector.load %arg2[%c44, %c0_145] : memref<49x16xf32, #tpu.memory_space<vmem>>, vector<1x16xf32>
      %212 = vector.shape_cast %211 : vector<1x16xf32> to vector<16xf32>
      %213 = vector.shape_cast %212 : vector<16xf32> to vector<1x1x16xf32>
      %214 = vector.broadcast %213 : vector<1x1x16xf32> to vector<8x16x16xf32>
      %215 = arith.mulf %210, %214 : vector<8x16x16xf32>
      %216 = arith.addf %209, %215 : vector<8x16x16xf32>
      %217 = arith.index_cast %58 : i32 to index
      %c8_146 = arith.constant 8 : index
      %c0_147 = arith.constant 0 : index
      %218 = vector.load %arg8[%217, %c8_146, %c0_147] : memref<22x32x16xf32, #tpu.memory_space<vmem>>, vector<14x16x16xf32>
      %c14_148 = arith.constant 14 : index
      %c0_149 = arith.constant 0 : index
      %c0_150 = arith.constant 0 : index
      %219 = vector.load %arg9[%c14_148, %c0_149, %c0_150] : memref<28x16x16xf32, #tpu.memory_space<vmem>>, vector<14x16x16xf32>
      tpu.vector_store %arg9[%c14_148, %c0_149, %c0_150], %218 {strides = array<i32>} : memref<28x16x16xf32, #tpu.memory_space<vmem>>, vector<14x16x16xf32>,
      %c14_151 = arith.constant 14 : index
      %c0_152 = arith.constant 0 : index
      %c0_153 = arith.constant 0 : index
      %220 = vector.load %arg9[%c14_151, %c0_152, %c0_153] : memref<28x16x16xf32, #tpu.memory_space<vmem>>, vector<8x16x16xf32>
      %c3_154 = arith.constant 3 : index
      %c0_155 = arith.constant 0 : index
      %221 = vector.load %arg2[%c3_154, %c0_155] : memref<49x16xf32, #tpu.memory_space<vmem>>, vector<1x16xf32>
      %222 = vector.shape_cast %221 : vector<1x16xf32> to vector<16xf32>
      %223 = vector.shape_cast %222 : vector<16xf32> to vector<1x1x16xf32>
      %224 = vector.broadcast %223 : vector<1x1x16xf32> to vector<8x16x16xf32>
      %225 = arith.mulf %220, %224 : vector<8x16x16xf32>
      %226 = arith.addf %216, %225 : vector<8x16x16xf32>
      %c15_156 = arith.constant 15 : index
      %c0_157 = arith.constant 0 : index
      %c0_158 = arith.constant 0 : index
      %227 = vector.load %arg9[%c15_156, %c0_157, %c0_158] : memref<28x16x16xf32, #tpu.memory_space<vmem>>, vector<8x16x16xf32>
      %c10 = arith.constant 10 : index
      %c0_159 = arith.constant 0 : index
      %228 = vector.load %arg2[%c10, %c0_159] : memref<49x16xf32, #tpu.memory_space<vmem>>, vector<1x16xf32>
      %229 = vector.shape_cast %228 : vector<1x16xf32> to vector<16xf32>
      %230 = vector.shape_cast %229 : vector<16xf32> to vector<1x1x16xf32>
      %231 = vector.broadcast %230 : vector<1x1x16xf32> to vector<8x16x16xf32>
      %232 = arith.mulf %227, %231 : vector<8x16x16xf32>
      %233 = arith.addf %226, %232 : vector<8x16x16xf32>
      %c16_160 = arith.constant 16 : index
      %c0_161 = arith.constant 0 : index
      %c0_162 = arith.constant 0 : index
      %234 = vector.load %arg9[%c16_160, %c0_161, %c0_162] : memref<28x16x16xf32, #tpu.memory_space<vmem>>, vector<8x16x16xf32>
      %c17_163 = arith.constant 17 : index
      %c0_164 = arith.constant 0 : index
      %235 = vector.load %arg2[%c17_163, %c0_164] : memref<49x16xf32, #tpu.memory_space<vmem>>, vector<1x16xf32>
      %236 = vector.shape_cast %235 : vector<1x16xf32> to vector<16xf32>
      %237 = vector.shape_cast %236 : vector<16xf32> to vector<1x1x16xf32>
      %238 = vector.broadcast %237 : vector<1x1x16xf32> to vector<8x16x16xf32>
      %239 = arith.mulf %234, %238 : vector<8x16x16xf32>
      %240 = arith.addf %233, %239 : vector<8x16x16xf32>
      %c17_165 = arith.constant 17 : index
      %c0_166 = arith.constant 0 : index
      %c0_167 = arith.constant 0 : index
      %241 = vector.load %arg9[%c17_165, %c0_166, %c0_167] : memref<28x16x16xf32, #tpu.memory_space<vmem>>, vector<8x16x16xf32>
      %c24_168 = arith.constant 24 : index
      %c0_169 = arith.constant 0 : index
      %242 = vector.load %arg2[%c24_168, %c0_169] : memref<49x16xf32, #tpu.memory_space<vmem>>, vector<1x16xf32>
      %243 = vector.shape_cast %242 : vector<1x16xf32> to vector<16xf32>
      %244 = vector.shape_cast %243 : vector<16xf32> to vector<1x1x16xf32>
      %245 = vector.broadcast %244 : vector<1x1x16xf32> to vector<8x16x16xf32>
      %246 = arith.mulf %241, %245 : vector<8x16x16xf32>
      %247 = arith.addf %240, %246 : vector<8x16x16xf32>
      %c18_170 = arith.constant 18 : index
      %c0_171 = arith.constant 0 : index
      %c0_172 = arith.constant 0 : index
      %248 = vector.load %arg9[%c18_170, %c0_171, %c0_172] : memref<28x16x16xf32, #tpu.memory_space<vmem>>, vector<8x16x16xf32>
      %c31 = arith.constant 31 : index
      %c0_173 = arith.constant 0 : index
      %249 = vector.load %arg2[%c31, %c0_173] : memref<49x16xf32, #tpu.memory_space<vmem>>, vector<1x16xf32>
      %250 = vector.shape_cast %249 : vector<1x16xf32> to vector<16xf32>
      %251 = vector.shape_cast %250 : vector<16xf32> to vector<1x1x16xf32>
      %252 = vector.broadcast %251 : vector<1x1x16xf32> to vector<8x16x16xf32>
      %253 = arith.mulf %248, %252 : vector<8x16x16xf32>
      %254 = arith.addf %247, %253 : vector<8x16x16xf32>
      %c19_174 = arith.constant 19 : index
      %c0_175 = arith.constant 0 : index
      %c0_176 = arith.constant 0 : index
      %255 = vector.load %arg9[%c19_174, %c0_175, %c0_176] : memref<28x16x16xf32, #tpu.memory_space<vmem>>, vector<8x16x16xf32>
      %c38 = arith.constant 38 : index
      %c0_177 = arith.constant 0 : index
      %256 = vector.load %arg2[%c38, %c0_177] : memref<49x16xf32, #tpu.memory_space<vmem>>, vector<1x16xf32>
      %257 = vector.shape_cast %256 : vector<1x16xf32> to vector<16xf32>
      %258 = vector.shape_cast %257 : vector<16xf32> to vector<1x1x16xf32>
      %259 = vector.broadcast %258 : vector<1x1x16xf32> to vector<8x16x16xf32>
      %260 = arith.mulf %255, %259 : vector<8x16x16xf32>
      %261 = arith.addf %254, %260 : vector<8x16x16xf32>
      %c20_178 = arith.constant 20 : index
      %c0_179 = arith.constant 0 : index
      %c0_180 = arith.constant 0 : index
      %262 = vector.load %arg9[%c20_178, %c0_179, %c0_180] : memref<28x16x16xf32, #tpu.memory_space<vmem>>, vector<8x16x16xf32>
      %c45 = arith.constant 45 : index
      %c0_181 = arith.constant 0 : index
      %263 = vector.load %arg2[%c45, %c0_181] : memref<49x16xf32, #tpu.memory_space<vmem>>, vector<1x16xf32>
      %264 = vector.shape_cast %263 : vector<1x16xf32> to vector<16xf32>
      %265 = vector.shape_cast %264 : vector<16xf32> to vector<1x1x16xf32>
      %266 = vector.broadcast %265 : vector<1x1x16xf32> to vector<8x16x16xf32>
      %267 = arith.mulf %262, %266 : vector<8x16x16xf32>
      %268 = arith.addf %261, %267 : vector<8x16x16xf32>
      %269 = arith.index_cast %58 : i32 to index
      %c9_182 = arith.constant 9 : index
      %c0_183 = arith.constant 0 : index
      %270 = vector.load %arg8[%269, %c9_182, %c0_183] : memref<22x32x16xf32, #tpu.memory_space<vmem>>, vector<14x16x16xf32>
      %c0_184 = arith.constant 0 : index
      %c0_185 = arith.constant 0 : index
      %c0_186 = arith.constant 0 : index
      %271 = vector.load %arg9[%c0_184, %c0_185, %c0_186] : memref<28x16x16xf32, #tpu.memory_space<vmem>>, vector<14x16x16xf32>
      tpu.vector_store %arg9[%c0_184, %c0_185, %c0_186], %270 {strides = array<i32>} : memref<28x16x16xf32, #tpu.memory_space<vmem>>, vector<14x16x16xf32>,
      %c0_187 = arith.constant 0 : index
      %c0_188 = arith.constant 0 : index
      %c0_189 = arith.constant 0 : index
      %272 = vector.load %arg9[%c0_187, %c0_188, %c0_189] : memref<28x16x16xf32, #tpu.memory_space<vmem>>, vector<8x16x16xf32>
      %c4_190 = arith.constant 4 : index
      %c0_191 = arith.constant 0 : index
      %273 = vector.load %arg2[%c4_190, %c0_191] : memref<49x16xf32, #tpu.memory_space<vmem>>, vector<1x16xf32>
      %274 = vector.shape_cast %273 : vector<1x16xf32> to vector<16xf32>
      %275 = vector.shape_cast %274 : vector<16xf32> to vector<1x1x16xf32>
      %276 = vector.broadcast %275 : vector<1x1x16xf32> to vector<8x16x16xf32>
      %277 = arith.mulf %272, %276 : vector<8x16x16xf32>
      %278 = arith.addf %268, %277 : vector<8x16x16xf32>
      %c1_192 = arith.constant 1 : index
      %c0_193 = arith.constant 0 : index
      %c0_194 = arith.constant 0 : index
      %279 = vector.load %arg9[%c1_192, %c0_193, %c0_194] : memref<28x16x16xf32, #tpu.memory_space<vmem>>, vector<8x16x16xf32>
      %c11 = arith.constant 11 : index
      %c0_195 = arith.constant 0 : index
      %280 = vector.load %arg2[%c11, %c0_195] : memref<49x16xf32, #tpu.memory_space<vmem>>, vector<1x16xf32>
      %281 = vector.shape_cast %280 : vector<1x16xf32> to vector<16xf32>
      %282 = vector.shape_cast %281 : vector<16xf32> to vector<1x1x16xf32>
      %283 = vector.broadcast %282 : vector<1x1x16xf32> to vector<8x16x16xf32>
      %284 = arith.mulf %279, %283 : vector<8x16x16xf32>
      %285 = arith.addf %278, %284 : vector<8x16x16xf32>
      %c2_196 = arith.constant 2 : index
      %c0_197 = arith.constant 0 : index
      %c0_198 = arith.constant 0 : index
      %286 = vector.load %arg9[%c2_196, %c0_197, %c0_198] : memref<28x16x16xf32, #tpu.memory_space<vmem>>, vector<8x16x16xf32>
      %c18_199 = arith.constant 18 : index
      %c0_200 = arith.constant 0 : index
      %287 = vector.load %arg2[%c18_199, %c0_200] : memref<49x16xf32, #tpu.memory_space<vmem>>, vector<1x16xf32>
      %288 = vector.shape_cast %287 : vector<1x16xf32> to vector<16xf32>
      %289 = vector.shape_cast %288 : vector<16xf32> to vector<1x1x16xf32>
      %290 = vector.broadcast %289 : vector<1x1x16xf32> to vector<8x16x16xf32>
      %291 = arith.mulf %286, %290 : vector<8x16x16xf32>
      %292 = arith.addf %285, %291 : vector<8x16x16xf32>
      %c3_201 = arith.constant 3 : index
      %c0_202 = arith.constant 0 : index
      %c0_203 = arith.constant 0 : index
      %293 = vector.load %arg9[%c3_201, %c0_202, %c0_203] : memref<28x16x16xf32, #tpu.memory_space<vmem>>, vector<8x16x16xf32>
      %c25 = arith.constant 25 : index
      %c0_204 = arith.constant 0 : index
      %294 = vector.load %arg2[%c25, %c0_204] : memref<49x16xf32, #tpu.memory_space<vmem>>, vector<1x16xf32>
      %295 = vector.shape_cast %294 : vector<1x16xf32> to vector<16xf32>
      %296 = vector.shape_cast %295 : vector<16xf32> to vector<1x1x16xf32>
      %297 = vector.broadcast %296 : vector<1x1x16xf32> to vector<8x16x16xf32>
      %298 = arith.mulf %293, %297 : vector<8x16x16xf32>
      %299 = arith.addf %292, %298 : vector<8x16x16xf32>
      %c4_205 = arith.constant 4 : index
      %c0_206 = arith.constant 0 : index
      %c0_207 = arith.constant 0 : index
      %300 = vector.load %arg9[%c4_205, %c0_206, %c0_207] : memref<28x16x16xf32, #tpu.memory_space<vmem>>, vector<8x16x16xf32>
      %c32 = arith.constant 32 : index
      %c0_208 = arith.constant 0 : index
      %301 = vector.load %arg2[%c32, %c0_208] : memref<49x16xf32, #tpu.memory_space<vmem>>, vector<1x16xf32>
      %302 = vector.shape_cast %301 : vector<1x16xf32> to vector<16xf32>
      %303 = vector.shape_cast %302 : vector<16xf32> to vector<1x1x16xf32>
      %304 = vector.broadcast %303 : vector<1x1x16xf32> to vector<8x16x16xf32>
      %305 = arith.mulf %300, %304 : vector<8x16x16xf32>
      %306 = arith.addf %299, %305 : vector<8x16x16xf32>
      %c5_209 = arith.constant 5 : index
      %c0_210 = arith.constant 0 : index
      %c0_211 = arith.constant 0 : index
      %307 = vector.load %arg9[%c5_209, %c0_210, %c0_211] : memref<28x16x16xf32, #tpu.memory_space<vmem>>, vector<8x16x16xf32>
      %c39 = arith.constant 39 : index
      %c0_212 = arith.constant 0 : index
      %308 = vector.load %arg2[%c39, %c0_212] : memref<49x16xf32, #tpu.memory_space<vmem>>, vector<1x16xf32>
      %309 = vector.shape_cast %308 : vector<1x16xf32> to vector<16xf32>
      %310 = vector.shape_cast %309 : vector<16xf32> to vector<1x1x16xf32>
      %311 = vector.broadcast %310 : vector<1x1x16xf32> to vector<8x16x16xf32>
      %312 = arith.mulf %307, %311 : vector<8x16x16xf32>
      %313 = arith.addf %306, %312 : vector<8x16x16xf32>
      %c6_213 = arith.constant 6 : index
      %c0_214 = arith.constant 0 : index
      %c0_215 = arith.constant 0 : index
      %314 = vector.load %arg9[%c6_213, %c0_214, %c0_215] : memref<28x16x16xf32, #tpu.memory_space<vmem>>, vector<8x16x16xf32>
      %c46 = arith.constant 46 : index
      %c0_216 = arith.constant 0 : index
      %315 = vector.load %arg2[%c46, %c0_216] : memref<49x16xf32, #tpu.memory_space<vmem>>, vector<1x16xf32>
      %316 = vector.shape_cast %315 : vector<1x16xf32> to vector<16xf32>
      %317 = vector.shape_cast %316 : vector<16xf32> to vector<1x1x16xf32>
      %318 = vector.broadcast %317 : vector<1x1x16xf32> to vector<8x16x16xf32>
      %319 = arith.mulf %314, %318 : vector<8x16x16xf32>
      %320 = arith.addf %313, %319 : vector<8x16x16xf32>
      %321 = arith.index_cast %58 : i32 to index
      %c10_217 = arith.constant 10 : index
      %c0_218 = arith.constant 0 : index
      %322 = vector.load %arg8[%321, %c10_217, %c0_218] : memref<22x32x16xf32, #tpu.memory_space<vmem>>, vector<14x16x16xf32>
      %c14_219 = arith.constant 14 : index
      %c0_220 = arith.constant 0 : index
      %c0_221 = arith.constant 0 : index
      %323 = vector.load %arg9[%c14_219, %c0_220, %c0_221] : memref<28x16x16xf32, #tpu.memory_space<vmem>>, vector<14x16x16xf32>
      tpu.vector_store %arg9[%c14_219, %c0_220, %c0_221], %322 {strides = array<i32>} : memref<28x16x16xf32, #tpu.memory_space<vmem>>, vector<14x16x16xf32>,
      %c14_222 = arith.constant 14 : index
      %c0_223 = arith.constant 0 : index
      %c0_224 = arith.constant 0 : index
      %324 = vector.load %arg9[%c14_222, %c0_223, %c0_224] : memref<28x16x16xf32, #tpu.memory_space<vmem>>, vector<8x16x16xf32>
      %c5_225 = arith.constant 5 : index
      %c0_226 = arith.constant 0 : index
      %325 = vector.load %arg2[%c5_225, %c0_226] : memref<49x16xf32, #tpu.memory_space<vmem>>, vector<1x16xf32>
      %326 = vector.shape_cast %325 : vector<1x16xf32> to vector<16xf32>
      %327 = vector.shape_cast %326 : vector<16xf32> to vector<1x1x16xf32>
      %328 = vector.broadcast %327 : vector<1x1x16xf32> to vector<8x16x16xf32>
      %329 = arith.mulf %324, %328 : vector<8x16x16xf32>
      %330 = arith.addf %320, %329 : vector<8x16x16xf32>
      %c15_227 = arith.constant 15 : index
      %c0_228 = arith.constant 0 : index
      %c0_229 = arith.constant 0 : index
      %331 = vector.load %arg9[%c15_227, %c0_228, %c0_229] : memref<28x16x16xf32, #tpu.memory_space<vmem>>, vector<8x16x16xf32>
      %c12 = arith.constant 12 : index
      %c0_230 = arith.constant 0 : index
      %332 = vector.load %arg2[%c12, %c0_230] : memref<49x16xf32, #tpu.memory_space<vmem>>, vector<1x16xf32>
      %333 = vector.shape_cast %332 : vector<1x16xf32> to vector<16xf32>
      %334 = vector.shape_cast %333 : vector<16xf32> to vector<1x1x16xf32>
      %335 = vector.broadcast %334 : vector<1x1x16xf32> to vector<8x16x16xf32>
      %336 = arith.mulf %331, %335 : vector<8x16x16xf32>
      %337 = arith.addf %330, %336 : vector<8x16x16xf32>
      %c16_231 = arith.constant 16 : index
      %c0_232 = arith.constant 0 : index
      %c0_233 = arith.constant 0 : index
      %338 = vector.load %arg9[%c16_231, %c0_232, %c0_233] : memref<28x16x16xf32, #tpu.memory_space<vmem>>, vector<8x16x16xf32>
      %c19_234 = arith.constant 19 : index
      %c0_235 = arith.constant 0 : index
      %339 = vector.load %arg2[%c19_234, %c0_235] : memref<49x16xf32, #tpu.memory_space<vmem>>, vector<1x16xf32>
      %340 = vector.shape_cast %339 : vector<1x16xf32> to vector<16xf32>
      %341 = vector.shape_cast %340 : vector<16xf32> to vector<1x1x16xf32>
      %342 = vector.broadcast %341 : vector<1x1x16xf32> to vector<8x16x16xf32>
      %343 = arith.mulf %338, %342 : vector<8x16x16xf32>
      %344 = arith.addf %337, %343 : vector<8x16x16xf32>
      %c17_236 = arith.constant 17 : index
      %c0_237 = arith.constant 0 : index
      %c0_238 = arith.constant 0 : index
      %345 = vector.load %arg9[%c17_236, %c0_237, %c0_238] : memref<28x16x16xf32, #tpu.memory_space<vmem>>, vector<8x16x16xf32>
      %c26 = arith.constant 26 : index
      %c0_239 = arith.constant 0 : index
      %346 = vector.load %arg2[%c26, %c0_239] : memref<49x16xf32, #tpu.memory_space<vmem>>, vector<1x16xf32>
      %347 = vector.shape_cast %346 : vector<1x16xf32> to vector<16xf32>
      %348 = vector.shape_cast %347 : vector<16xf32> to vector<1x1x16xf32>
      %349 = vector.broadcast %348 : vector<1x1x16xf32> to vector<8x16x16xf32>
      %350 = arith.mulf %345, %349 : vector<8x16x16xf32>
      %351 = arith.addf %344, %350 : vector<8x16x16xf32>
      %c18_240 = arith.constant 18 : index
      %c0_241 = arith.constant 0 : index
      %c0_242 = arith.constant 0 : index
      %352 = vector.load %arg9[%c18_240, %c0_241, %c0_242] : memref<28x16x16xf32, #tpu.memory_space<vmem>>, vector<8x16x16xf32>
      %c33 = arith.constant 33 : index
      %c0_243 = arith.constant 0 : index
      %353 = vector.load %arg2[%c33, %c0_243] : memref<49x16xf32, #tpu.memory_space<vmem>>, vector<1x16xf32>
      %354 = vector.shape_cast %353 : vector<1x16xf32> to vector<16xf32>
      %355 = vector.shape_cast %354 : vector<16xf32> to vector<1x1x16xf32>
      %356 = vector.broadcast %355 : vector<1x1x16xf32> to vector<8x16x16xf32>
      %357 = arith.mulf %352, %356 : vector<8x16x16xf32>
      %358 = arith.addf %351, %357 : vector<8x16x16xf32>
      %c19_244 = arith.constant 19 : index
      %c0_245 = arith.constant 0 : index
      %c0_246 = arith.constant 0 : index
      %359 = vector.load %arg9[%c19_244, %c0_245, %c0_246] : memref<28x16x16xf32, #tpu.memory_space<vmem>>, vector<8x16x16xf32>
      %c40 = arith.constant 40 : index
      %c0_247 = arith.constant 0 : index
      %360 = vector.load %arg2[%c40, %c0_247] : memref<49x16xf32, #tpu.memory_space<vmem>>, vector<1x16xf32>
      %361 = vector.shape_cast %360 : vector<1x16xf32> to vector<16xf32>
      %362 = vector.shape_cast %361 : vector<16xf32> to vector<1x1x16xf32>
      %363 = vector.broadcast %362 : vector<1x1x16xf32> to vector<8x16x16xf32>
      %364 = arith.mulf %359, %363 : vector<8x16x16xf32>
      %365 = arith.addf %358, %364 : vector<8x16x16xf32>
      %c20_248 = arith.constant 20 : index
      %c0_249 = arith.constant 0 : index
      %c0_250 = arith.constant 0 : index
      %366 = vector.load %arg9[%c20_248, %c0_249, %c0_250] : memref<28x16x16xf32, #tpu.memory_space<vmem>>, vector<8x16x16xf32>
      %c47 = arith.constant 47 : index
      %c0_251 = arith.constant 0 : index
      %367 = vector.load %arg2[%c47, %c0_251] : memref<49x16xf32, #tpu.memory_space<vmem>>, vector<1x16xf32>
      %368 = vector.shape_cast %367 : vector<1x16xf32> to vector<16xf32>
      %369 = vector.shape_cast %368 : vector<16xf32> to vector<1x1x16xf32>
      %370 = vector.broadcast %369 : vector<1x1x16xf32> to vector<8x16x16xf32>
      %371 = arith.mulf %366, %370 : vector<8x16x16xf32>
      %372 = arith.addf %365, %371 : vector<8x16x16xf32>
      %373 = arith.index_cast %58 : i32 to index
      %c11_252 = arith.constant 11 : index
      %c0_253 = arith.constant 0 : index
      %374 = vector.load %arg8[%373, %c11_252, %c0_253] : memref<22x32x16xf32, #tpu.memory_space<vmem>>, vector<14x16x16xf32>
      %c0_254 = arith.constant 0 : index
      %c0_255 = arith.constant 0 : index
      %c0_256 = arith.constant 0 : index
      %375 = vector.load %arg9[%c0_254, %c0_255, %c0_256] : memref<28x16x16xf32, #tpu.memory_space<vmem>>, vector<14x16x16xf32>
      tpu.vector_store %arg9[%c0_254, %c0_255, %c0_256], %374 {strides = array<i32>} : memref<28x16x16xf32, #tpu.memory_space<vmem>>, vector<14x16x16xf32>,
      %c0_257 = arith.constant 0 : index
      %c0_258 = arith.constant 0 : index
      %c0_259 = arith.constant 0 : index
      %376 = vector.load %arg9[%c0_257, %c0_258, %c0_259] : memref<28x16x16xf32, #tpu.memory_space<vmem>>, vector<8x16x16xf32>
      %c6_260 = arith.constant 6 : index
      %c0_261 = arith.constant 0 : index
      %377 = vector.load %arg2[%c6_260, %c0_261] : memref<49x16xf32, #tpu.memory_space<vmem>>, vector<1x16xf32>
      %378 = vector.shape_cast %377 : vector<1x16xf32> to vector<16xf32>
      %379 = vector.shape_cast %378 : vector<16xf32> to vector<1x1x16xf32>
      %380 = vector.broadcast %379 : vector<1x1x16xf32> to vector<8x16x16xf32>
      %381 = arith.mulf %376, %380 : vector<8x16x16xf32>
      %382 = arith.addf %372, %381 : vector<8x16x16xf32>
      %c1_262 = arith.constant 1 : index
      %c0_263 = arith.constant 0 : index
      %c0_264 = arith.constant 0 : index
      %383 = vector.load %arg9[%c1_262, %c0_263, %c0_264] : memref<28x16x16xf32, #tpu.memory_space<vmem>>, vector<8x16x16xf32>
      %c13 = arith.constant 13 : index
      %c0_265 = arith.constant 0 : index
      %384 = vector.load %arg2[%c13, %c0_265] : memref<49x16xf32, #tpu.memory_space<vmem>>, vector<1x16xf32>
      %385 = vector.shape_cast %384 : vector<1x16xf32> to vector<16xf32>
      %386 = vector.shape_cast %385 : vector<16xf32> to vector<1x1x16xf32>
      %387 = vector.broadcast %386 : vector<1x1x16xf32> to vector<8x16x16xf32>
      %388 = arith.mulf %383, %387 : vector<8x16x16xf32>
      %389 = arith.addf %382, %388 : vector<8x16x16xf32>
      %c2_266 = arith.constant 2 : index
      %c0_267 = arith.constant 0 : index
      %c0_268 = arith.constant 0 : index
      %390 = vector.load %arg9[%c2_266, %c0_267, %c0_268] : memref<28x16x16xf32, #tpu.memory_space<vmem>>, vector<8x16x16xf32>
      %c20_269 = arith.constant 20 : index
      %c0_270 = arith.constant 0 : index
      %391 = vector.load %arg2[%c20_269, %c0_270] : memref<49x16xf32, #tpu.memory_space<vmem>>, vector<1x16xf32>
      %392 = vector.shape_cast %391 : vector<1x16xf32> to vector<16xf32>
      %393 = vector.shape_cast %392 : vector<16xf32> to vector<1x1x16xf32>
      %394 = vector.broadcast %393 : vector<1x1x16xf32> to vector<8x16x16xf32>
      %395 = arith.mulf %390, %394 : vector<8x16x16xf32>
      %396 = arith.addf %389, %395 : vector<8x16x16xf32>
      %c3_271 = arith.constant 3 : index
      %c0_272 = arith.constant 0 : index
      %c0_273 = arith.constant 0 : index
      %397 = vector.load %arg9[%c3_271, %c0_272, %c0_273] : memref<28x16x16xf32, #tpu.memory_space<vmem>>, vector<8x16x16xf32>
      %c27 = arith.constant 27 : index
      %c0_274 = arith.constant 0 : index
      %398 = vector.load %arg2[%c27, %c0_274] : memref<49x16xf32, #tpu.memory_space<vmem>>, vector<1x16xf32>
      %399 = vector.shape_cast %398 : vector<1x16xf32> to vector<16xf32>
      %400 = vector.shape_cast %399 : vector<16xf32> to vector<1x1x16xf32>
      %401 = vector.broadcast %400 : vector<1x1x16xf32> to vector<8x16x16xf32>
      %402 = arith.mulf %397, %401 : vector<8x16x16xf32>
      %403 = arith.addf %396, %402 : vector<8x16x16xf32>
      %c4_275 = arith.constant 4 : index
      %c0_276 = arith.constant 0 : index
      %c0_277 = arith.constant 0 : index
      %404 = vector.load %arg9[%c4_275, %c0_276, %c0_277] : memref<28x16x16xf32, #tpu.memory_space<vmem>>, vector<8x16x16xf32>
      %c34 = arith.constant 34 : index
      %c0_278 = arith.constant 0 : index
      %405 = vector.load %arg2[%c34, %c0_278] : memref<49x16xf32, #tpu.memory_space<vmem>>, vector<1x16xf32>
      %406 = vector.shape_cast %405 : vector<1x16xf32> to vector<16xf32>
      %407 = vector.shape_cast %406 : vector<16xf32> to vector<1x1x16xf32>
      %408 = vector.broadcast %407 : vector<1x1x16xf32> to vector<8x16x16xf32>
      %409 = arith.mulf %404, %408 : vector<8x16x16xf32>
      %410 = arith.addf %403, %409 : vector<8x16x16xf32>
      %c5_279 = arith.constant 5 : index
      %c0_280 = arith.constant 0 : index
      %c0_281 = arith.constant 0 : index
      %411 = vector.load %arg9[%c5_279, %c0_280, %c0_281] : memref<28x16x16xf32, #tpu.memory_space<vmem>>, vector<8x16x16xf32>
      %c41 = arith.constant 41 : index
      %c0_282 = arith.constant 0 : index
      %412 = vector.load %arg2[%c41, %c0_282] : memref<49x16xf32, #tpu.memory_space<vmem>>, vector<1x16xf32>
      %413 = vector.shape_cast %412 : vector<1x16xf32> to vector<16xf32>
      %414 = vector.shape_cast %413 : vector<16xf32> to vector<1x1x16xf32>
      %415 = vector.broadcast %414 : vector<1x1x16xf32> to vector<8x16x16xf32>
      %416 = arith.mulf %411, %415 : vector<8x16x16xf32>
      %417 = arith.addf %410, %416 : vector<8x16x16xf32>
      %c6_283 = arith.constant 6 : index
      %c0_284 = arith.constant 0 : index
      %c0_285 = arith.constant 0 : index
      %418 = vector.load %arg9[%c6_283, %c0_284, %c0_285] : memref<28x16x16xf32, #tpu.memory_space<vmem>>, vector<8x16x16xf32>
      %c48 = arith.constant 48 : index
      %c0_286 = arith.constant 0 : index
      %419 = vector.load %arg2[%c48, %c0_286] : memref<49x16xf32, #tpu.memory_space<vmem>>, vector<1x16xf32>
      %420 = vector.shape_cast %419 : vector<1x16xf32> to vector<16xf32>
      %421 = vector.shape_cast %420 : vector<16xf32> to vector<1x1x16xf32>
      %422 = vector.broadcast %421 : vector<1x1x16xf32> to vector<8x16x16xf32>
      %423 = arith.mulf %418, %422 : vector<8x16x16xf32>
      %424 = arith.addf %417, %423 : vector<8x16x16xf32>
      %cst_287 = arith.constant dense<0.000000e+00> : vector<8x16xf32>
      %425 = vector.multi_reduction <add>, %424, %cst_287 [2] : vector<8x16x16xf32> to vector<8x16xf32>
      %426 = vector.shape_cast %425 : vector<8x16xf32> to vector<8x16x1xf32>
      %cst_288 = arith.constant 1.600000e+01 : f32
      %427 = vector.broadcast %cst_288 : f32 to vector<8x16x1xf32>
      %428 = arith.divf %426, %427 : vector<8x16x1xf32>
      %429 = vector.broadcast %428 : vector<8x16x1xf32> to vector<8x16x16xf32>
      %430 = arith.subf %424, %429 : vector<8x16x16xf32>
      %431 = arith.mulf %430, %430 : vector<8x16x16xf32>
      %cst_289 = arith.constant dense<0.000000e+00> : vector<8x16xf32>
      %432 = vector.multi_reduction <add>, %431, %cst_289 [2] : vector<8x16x16xf32> to vector<8x16xf32>
      %433 = vector.shape_cast %432 : vector<8x16xf32> to vector<8x16x1xf32>
      %cst_290 = arith.constant 1.600000e+01 : f32
      %434 = vector.broadcast %cst_290 : f32 to vector<8x16x1xf32>
      %435 = arith.divf %433, %434 : vector<8x16x1xf32>
      %cst_291 = arith.constant 9.99999997E-7 : f32
      %436 = vector.broadcast %cst_291 : f32 to vector<8x16x1xf32>
      %437 = arith.addf %435, %436 : vector<8x16x1xf32>
      %438 = math.rsqrt %437 : vector<8x16x1xf32>
      %439 = vector.broadcast %438 : vector<8x16x1xf32> to vector<8x16x16xf32>
      %440 = arith.mulf %430, %439 : vector<8x16x16xf32>
      %441 = vector.shape_cast %14 : vector<16xf32> to vector<1x1x16xf32>
      %442 = vector.broadcast %441 : vector<1x1x16xf32> to vector<8x16x16xf32>
      %443 = arith.mulf %440, %442 : vector<8x16x16xf32>
      %444 = vector.shape_cast %16 : vector<16xf32> to vector<1x1x16xf32>
      %445 = vector.broadcast %444 : vector<1x1x16xf32> to vector<8x16x16xf32>
      %446 = arith.addf %443, %445 : vector<8x16x16xf32>
      %447 = arith.truncf %446 : vector<8x16x16xf32> to vector<8x16x16xbf16>
      %448 = arith.index_cast %58 : i32 to index
      %c0_292 = arith.constant 0 : index
      %c0_293 = arith.constant 0 : index
      %449 = vector.load %arg10[%448, %c0_292, %c0_293] : memref<16x16x16xbf16, #tpu.memory_space<vmem>>, vector<8x16x16xbf16>
      tpu.vector_store %arg10[%448, %c0_292, %c0_293], %447 {strides = array<i32>} : memref<16x16x16xbf16, #tpu.memory_space<vmem>>, vector<8x16x16xbf16>,
    }
    %c2_i32_21 = arith.constant 2 : i32
    %c0_22 = arith.constant 0 : index
    %c0_23 = arith.constant 0 : index
    %c0_24 = arith.constant 0 : index
    %18 = vector.load %arg10[%c0_22, %c0_23, %c0_24] : memref<16x16x16xbf16, #tpu.memory_space<vmem>>, vector<16x16x16xbf16>
    %19 = vector.shape_cast %18 : vector<16x16x16xbf16> to vector<256x16xbf16>
    %c0_25 = arith.constant 0 : index
    %c0_26 = arith.constant 0 : index
    %20 = vector.load %arg4[%c0_25, %c0_26] : memref<16x64xbf16, #tpu.memory_space<vmem>>, vector<16x64xbf16>
    %cst_27 = arith.constant dense<0.000000e+00> : vector<256x64xf32>
    %21 = tpu.matmul %19, %20, %cst_27 {dimension_numbers = #tpu.dot_dimension_numbers<[1], [0], [0], [1], [0, 0, 1, 1], [], []>} : vector<256x16xbf16>, vector<16x64xbf16>, vector<256x64xf32> -> vector<256x64xf32>
    %c0_28 = arith.constant 0 : index
    %c0_29 = arith.constant 0 : index
    %22 = vector.load %arg5[%c0_28, %c0_29] : memref<1x64xf32, #tpu.memory_space<vmem>>, vector<1x64xf32>
    %23 = vector.broadcast %22 : vector<1x64xf32> to vector<256x64xf32>
    %24 = arith.addf %21, %23 : vector<256x64xf32>
    %cst_30 = arith.constant 5.000000e-01 : f32
    %25 = vector.broadcast %cst_30 : f32 to vector<256x64xf32>
    %26 = arith.mulf %25, %24 : vector<256x64xf32>
    %cst_31 = arith.constant 4.471500e-02 : f32
    %27 = vector.broadcast %cst_31 : f32 to vector<256x64xf32>
    %28 = arith.mulf %27, %24 : vector<256x64xf32>
    %29 = arith.mulf %28, %24 : vector<256x64xf32>
    %30 = arith.mulf %29, %24 : vector<256x64xf32>
    %31 = arith.addf %24, %30 : vector<256x64xf32>
    %cst_32 = arith.constant 0.797884583 : f32
    %32 = vector.broadcast %cst_32 : f32 to vector<256x64xf32>
    %33 = arith.mulf %32, %31 : vector<256x64xf32>
    %34 = math.tanh %33 : vector<256x64xf32>
    %cst_33 = arith.constant 1.000000e+00 : f32
    %35 = vector.broadcast %cst_33 : f32 to vector<256x64xf32>
    %36 = arith.addf %35, %34 : vector<256x64xf32>
    %37 = arith.mulf %26, %36 : vector<256x64xf32>
    %38 = arith.truncf %37 : vector<256x64xf32> to vector<256x64xbf16>
    %c0_34 = arith.constant 0 : index
    %c0_35 = arith.constant 0 : index
    %39 = vector.load %arg6[%c0_34, %c0_35] : memref<64x16xbf16, #tpu.memory_space<vmem>>, vector<64x16xbf16>
    %cst_36 = arith.constant dense<0.000000e+00> : vector<256x16xf32>
    %40 = tpu.matmul %38, %39, %cst_36 {dimension_numbers = #tpu.dot_dimension_numbers<[1], [0], [0], [1], [0, 0, 1, 1], [], []>} : vector<256x64xbf16>, vector<64x16xbf16>, vector<256x16xf32> -> vector<256x16xf32>
    %c3_37 = arith.constant 3 : index
    %c0_38 = arith.constant 0 : index
    %41 = vector.load %arg3[%c3_37, %c0_38] : memref<5x16xf32, #tpu.memory_space<vmem>>, vector<1x16xf32>
    %42 = vector.shape_cast %41 : vector<1x16xf32> to vector<16xf32>
    %43 = vector.shape_cast %42 : vector<16xf32> to vector<1x16xf32>
    %44 = vector.broadcast %43 : vector<1x16xf32> to vector<256x16xf32>
    %45 = arith.addf %40, %44 : vector<256x16xf32>
    %c4 = arith.constant 4 : index
    %c0_39 = arith.constant 0 : index
    %46 = vector.load %arg3[%c4, %c0_39] : memref<5x16xf32, #tpu.memory_space<vmem>>, vector<1x16xf32>
    %47 = vector.shape_cast %46 : vector<1x16xf32> to vector<16xf32>
    %48 = vector.shape_cast %47 : vector<16xf32> to vector<1x16xf32>
    %49 = vector.broadcast %48 : vector<1x16xf32> to vector<256x16xf32>
    %50 = arith.mulf %45, %49 : vector<256x16xf32>
    %c0_40 = arith.constant 0 : index
    %c0_41 = arith.constant 0 : index
    %c0_42 = arith.constant 0 : index
    %c0_43 = arith.constant 0 : index
    %51 = vector.load %arg1[%c0_40, %c0_41, %c0_42, %c0_43] : memref<1x16x16x16xf32, #tpu.memory_space<vmem>>, vector<1x16x16x16xf32>
    %52 = vector.shape_cast %51 : vector<1x16x16x16xf32> to vector<16x16x16xf32>
    %53 = vector.shape_cast %50 : vector<256x16xf32> to vector<16x16x16xf32>
    %54 = arith.addf %52, %53 : vector<16x16x16xf32>
    %c0_44 = arith.constant 0 : index
    %c0_45 = arith.constant 0 : index
    %c0_46 = arith.constant 0 : index
    %c0_47 = arith.constant 0 : index
    %55 = vector.load %arg7[%c0_44, %c0_45, %c0_46, %c0_47] : memref<1x16x16x16xf32, #tpu.memory_space<vmem>>, vector<1x16x16x16xf32>
    %56 = vector.shape_cast %55 : vector<1x16x16x16xf32> to vector<16x16x16xf32>
    %57 = vector.shape_cast %54 : vector<16x16x16xf32> to vector<1x16x16x16xf32>
    tpu.vector_store %arg7[%c0_44, %c0_45, %c0_46, %c0_47], %57 {strides = array<i32>} : memref<1x16x16x16xf32, #tpu.memory_space<vmem>>, vector<1x16x16x16xf32>,
    return
  }
  func.func @transform_0(%arg0: i32) -> (i32, i32, i32, i32) {
    %c0_i32 = arith.constant 0 : i32
    %c0_i32_0 = arith.constant 0 : i32
    %c0_i32_1 = arith.constant 0 : i32
    %c0_i32_2 = arith.constant 0 : i32
    return %arg0, %c0_i32, %c0_i32_0, %c0_i32_1 : i32, i32, i32, i32
  }
  func.func @transform_1(%arg0: i32) -> (i32, i32) {
    %c0_i32 = arith.constant 0 : i32
    %c0_i32_0 = arith.constant 0 : i32
    %c0_i32_1 = arith.constant 0 : i32
    return %c0_i32, %c0_i32_0 : i32, i32
  }
  func.func @transform_2(%arg0: i32) -> (i32, i32) {
    %c0_i32 = arith.constant 0 : i32
    %c0_i32_0 = arith.constant 0 : i32
    %c0_i32_1 = arith.constant 0 : i32
    return %c0_i32, %c0_i32_0 : i32, i32
  }
  func.func @transform_3(%arg0: i32) -> (i32, i32) {
    %c0_i32 = arith.constant 0 : i32
    %c0_i32_0 = arith.constant 0 : i32
    %c0_i32_1 = arith.constant 0 : i32
    return %c0_i32, %c0_i32_0 : i32, i32
  }
  func.func @transform_4(%arg0: i32) -> (i32, i32) {
    %c0_i32 = arith.constant 0 : i32
    %c0_i32_0 = arith.constant 0 : i32
    %c0_i32_1 = arith.constant 0 : i32
    return %c0_i32, %c0_i32_0 : i32, i32
  }
  func.func @transform_5(%arg0: i32) -> (i32, i32) {
    %c0_i32 = arith.constant 0 : i32
    %c0_i32_0 = arith.constant 0 : i32
    %c0_i32_1 = arith.constant 0 : i32
    return %c0_i32, %c0_i32_0 : i32, i32
  }
  func.func @transform_6(%arg0: i32) -> (i32, i32, i32, i32) {
    %c0_i32 = arith.constant 0 : i32
    %c0_i32_0 = arith.constant 0 : i32
    %c0_i32_1 = arith.constant 0 : i32
    %c0_i32_2 = arith.constant 0 : i32
    return %arg0, %c0_i32, %c0_i32_0, %c0_i32_1 : i32, i32, i32, i32
  }
}

</mosaic_0001>

<llo_original>
// kernel: _lambda_.1
$region0: #{_lambda_.1}
  #allocation0 [shape = 'u32[]', space=smem, size = 0x4, offset = 0x4, fixed_abs, tag = 'smem constant byte address 0x4 - core index']
  #allocation1 [shape = 'u32[72,128]{1,0:T(1,128)}', space=vmem, size = 0x9000, scoped, tag = 'internal scratch']
  #allocation2 [shape = 'f32[22,32,16]{2,1,0:T(8,128)}', space=vmem, size = 0x58000, scoped, tag = 'scratch operand']
  #allocation3 [shape = 'f32[28,16,16]{2,1,0:T(8,128)}', space=vmem, size = 0x38000, scoped, tag = 'scratch operand']
  #allocation4 [shape = 'bf16[16,16,16]{2,1,0:T(8,128)(2,1)}', space=vmem, size = 0x10000, scoped, tag = 'scratch operand']
  %s0 = inlined_call_operand.vmem [shape: f32[2,16,16,16], index: 0, kind: input, shape index: {}]
  %s1 = inlined_call_operand.vmem [shape: f32[49,16], index: 1, kind: input, shape index: {}]
  %s2 = inlined_call_operand.vmem [shape: f32[5,16], index: 2, kind: input, shape index: {}]
  %s3 = inlined_call_operand.vmem [shape: bf16[16,64], index: 3, kind: input, shape index: {}]
  %s4 = inlined_call_operand.vmem [shape: f32[1,64], index: 4, kind: input, shape index: {}]
  %s5 = inlined_call_operand.vmem [shape: bf16[64,16], index: 5, kind: input, shape index: {}]
  %s6 = inlined_call_operand.vmem [shape: f32[2,16,16,16], index: 6, kind: output, shape index: {}]
  %s7 = sld [smem:[#allocation0]]
  $region64: #{_lambda_.1} parent=0
    _
  %s9 = ssub.s32 1, %s7
  %s10 = scalar_select 0, %s9, %s7
  loop: start=0, step=1, limit=4
  $region2: #{_lambda_.1} parent=0 // loop_pre_header
    _
  $region3: #{_lambda_.1} parent=0 // loop_header
    %s12 = sphi 0, %s16
    %p13 = scmp.ge.s32.totalorder %s12, 4
    %s22 = sphi 0, %s24
    %s25 = sphi 0, %s22
    %s26 = sphi 0, %s25
    %s42 = sphi 0, %s26
    %s46 = sphi 0, %s46
    %s48 = sphi 0, %s46
    %s49 = sphi 0, %s48
    %s63 = sphi 0, %s49
    %s67 = sphi 0, %s67
    %s69 = sphi 0, %s67
    %s70 = sphi 0, %s69
    %s84 = sphi 0, %s70
    %s88 = sphi 0, %s88
    %s90 = sphi 0, %s88
    %s91 = sphi 0, %s90
    %s105 = sphi 0, %s91
    %s109 = sphi 0, %s109
    %s111 = sphi 0, %s109
    %s112 = sphi 0, %s111
    %s126 = sphi 0, %s112
    %s130 = sphi 0, %s130
    %s132 = sphi 0, %s130
    %s133 = sphi 0, %s132
    %s147 = sphi 0, %s133
    %s153 = sphi 0, %s155
    %s156 = sphi 0, %s153
    %s157 = sphi 0, %s156
    %s173 = sphi 0, %s157
  $region4: #{_lambda_.1} parent=0 // loop_header_branch
    %15 = sbr.rel (%p13) target = $region8
  $region5: #{_lambda_.1} parent=0 // loop_body
    %s17 = ssub.s32 %s12, 1
    %s18 = ssub.s32 %s12, 2
    %s19 = sadd.s32 %s12, 1
    %s20 = ssub.s32 %s12, %s19
    %p21 = scmp.eq.s32.totalorder %s20, 0
    %s23 = sadd.s32 %s22, 1
    %s24 = scalar_select %p21, %s22, %s23
    %p27 = pneg %p21
    %p28 = scmp.eq.s32.totalorder %s12, 1
    %p29 = por %p27, %p28
    %p30 = scmp.ne.s32.totalorder %s22, %s25
    %p31 = scmp.eq.s32.totalorder %s12, 0
    %p32 = por %p30, %p31
    %p33 = scmp.ne.s32.totalorder %s22, %s25
    %p34 = scmp.eq.s32.totalorder %s17, 1
    %p35 = por %p33, %p34
    %p36 = scmp.ne.s32.totalorder %s25, %s26
    %p37 = scmp.eq.s32.totalorder %s17, 0
    %p38 = por %p36, %p37
    %p39 = scmp.ne.s32.totalorder %s25, %s26
    %p40 = scmp.eq.s32.totalorder %s18, 1
    %p41 = por %p39, %p40
    %p43 = scmp.ne.s32.totalorder %s26, %s42
    %p44 = scmp.eq.s32.totalorder %s18, 0
    %p45 = por %p43, %p44
    %s47 = sadd.s32 %s46, 1
    %p50 = scmp.eq.s32.totalorder %s12, 1
    %p51 = scmp.ne.s32.totalorder %s46, %s48
    %p52 = scmp.eq.s32.totalorder %s12, 0
    %p53 = por %p51, %p52
    %p54 = scmp.ne.s32.totalorder %s46, %s48
    %p55 = scmp.eq.s32.totalorder %s17, 1
    %p56 = por %p54, %p55
    %p57 = scmp.ne.s32.totalorder %s48, %s49
    %p58 = scmp.eq.s32.totalorder %s17, 0
    %p59 = por %p57, %p58
    %p60 = scmp.ne.s32.totalorder %s48, %s49
    %p61 = scmp.eq.s32.totalorder %s18, 1
    %p62 = por %p60, %p61
    %p64 = scmp.ne.s32.totalorder %s49, %s63
    %p65 = scmp.eq.s32.totalorder %s18, 0
    %p66 = por %p64, %p65
    %s68 = sadd.s32 %s67, 1
    %p71 = scmp.eq.s32.totalorder %s12, 1
    %p72 = scmp.ne.s32.totalorder %s67, %s69
    %p73 = scmp.eq.s32.totalorder %s12, 0
    %p74 = por %p72, %p73
    %p75 = scmp.ne.s32.totalorder %s67, %s69
    %p76 = scmp.eq.s32.totalorder %s17, 1
    %p77 = por %p75, %p76
    %p78 = scmp.ne.s32.totalorder %s69, %s70
    %p79 = scmp.eq.s32.totalorder %s17, 0
    %p80 = por %p78, %p79
    %p81 = scmp.ne.s32.totalorder %s69, %s70
    %p82 = scmp.eq.s32.totalorder %s18, 1
    %p83 = por %p81, %p82
    %p85 = scmp.ne.s32.totalorder %s70, %s84
    %p86 = scmp.eq.s32.totalorder %s18, 0
    %p87 = por %p85, %p86
    %s89 = sadd.s32 %s88, 1
    %p92 = scmp.eq.s32.totalorder %s12, 1
    %p93 = scmp.ne.s32.totalorder %s88, %s90
    %p94 = scmp.eq.s32.totalorder %s12, 0
    %p95 = por %p93, %p94
    %p96 = scmp.ne.s32.totalorder %s88, %s90
    %p97 = scmp.eq.s32.totalorder %s17, 1
    %p98 = por %p96, %p97
    %p99 = scmp.ne.s32.totalorder %s90, %s91
    %p100 = scmp.eq.s32.totalorder %s17, 0
    %p101 = por %p99, %p100
    %p102 = scmp.ne.s32.totalorder %s90, %s91
    %p103 = scmp.eq.s32.totalorder %s18, 1
    %p104 = por %p102, %p103
    %p106 = scmp.ne.s32.totalorder %s91, %s105
    %p107 = scmp.eq.s32.totalorder %s18, 0
    %p108 = por %p106, %p107
    %s110 = sadd.s32 %s109, 1
    %p113 = scmp.eq.s32.totalorder %s12, 1
    %p114 = scmp.ne.s32.totalorder %s109, %s111
    %p115 = scmp.eq.s32.totalorder %s12, 0
    %p116 = por %p114, %p115
    %p117 = scmp.ne.s32.totalorder %s109, %s111
    %p118 = scmp.eq.s32.totalorder %s17, 1
    %p119 = por %p117, %p118
    %p120 = scmp.ne.s32.totalorder %s111, %s112
    %p121 = scmp.eq.s32.totalorder %s17, 0
    %p122 = por %p120, %p121
    %p123 = scmp.ne.s32.totalorder %s111, %s112
    %p124 = scmp.eq.s32.totalorder %s18, 1
    %p125 = por %p123, %p124
    %p127 = scmp.ne.s32.totalorder %s112, %s126
    %p128 = scmp.eq.s32.totalorder %s18, 0
    %p129 = por %p127, %p128
    %s131 = sadd.s32 %s130, 1
    %p134 = scmp.eq.s32.totalorder %s12, 1
    %p135 = scmp.ne.s32.totalorder %s130, %s132
    %p136 = scmp.eq.s32.totalorder %s12, 0
    %p137 = por %p135, %p136
    %p138 = scmp.ne.s32.totalorder %s130, %s132
    %p139 = scmp.eq.s32.totalorder %s17, 1
    %p140 = por %p138, %p139
    %p141 = scmp.ne.s32.totalorder %s132, %s133
    %p142 = scmp.eq.s32.totalorder %s17, 0
    %p143 = por %p141, %p142
    %p144 = scmp.ne.s32.totalorder %s132, %s133
    %p145 = scmp.eq.s32.totalorder %s18, 1
    %p146 = por %p144, %p145
    %p148 = scmp.ne.s32.totalorder %s133, %s147
    %p149 = scmp.eq.s32.totalorder %s18, 0
    %p150 = por %p148, %p149
    %s151 = ssub.s32 %s12, %s19
    %p152 = scmp.eq.s32.totalorder %s151, 0
    %s154 = sadd.s32 %s153, 1
    %s155 = scalar_select %p152, %s153, %s154
    %p158 = pneg %p152
    %p159 = scmp.eq.s32.totalorder %s12, 1
    %p160 = por %p158, %p159
    %p161 = scmp.ne.s32.totalorder %s153, %s156
    %p162 = scmp.eq.s32.totalorder %s12, 0
    %p163 = por %p161, %p162
    %p164 = scmp.ne.s32.totalorder %s153, %s156
    %p165 = scmp.eq.s32.totalorder %s17, 1
    %p166 = por %p164, %p165
    %p167 = scmp.ne.s32.totalorder %s156, %s157
    %p168 = scmp.eq.s32.totalorder %s17, 0
    %p169 = por %p167, %p168
    %p170 = scmp.ne.s32.totalorder %s156, %s157
    %p171 = scmp.eq.s32.totalorder %s18, 1
    %p172 = por %p170, %p171
    %p174 = scmp.ne.s32.totalorder %s157, %s173
    %p175 = scmp.eq.s32.totalorder %s18, 0
    %p176 = por %p174, %p175
    %p177 = scmp.le.s32.totalorder 1, %s12
    %p178 = scmp.lt.s32.totalorder %s12, 3
    %p179 = pnand %p177, %p178
    %p180 = pneg %p179
    // Predicated region
    $region9: #{_lambda_.1} parent=5 // pred_check
      _
    $region10: #{_lambda_.1} parent=5 // pred_check_branch
      %182 = sbr.rel (%p179) target = $region12
    $region11: #{_lambda_.1} parent=5 // pred_region
      %s183 = ssub.s32 %s12, 1
      // Predicated region
      $region13: #{_lambda_.1} parent=11 // pred_check
        %p184 = pneg %p59
      $region14: #{_lambda_.1} parent=11 // pred_check_branch
        %186 = sbr.rel (%p184) target = $region16
      $region15: #{_lambda_.1} parent=11 // pred_region
        _
      $region16: #{_lambda_.1} parent=11 // pred_fallthru
        _
      // Predicated region
      $region17: #{_lambda_.1} parent=11 // pred_check
        %p187 = pneg %p80
      $region18: #{_lambda_.1} parent=11 // pred_check_branch
        %189 = sbr.rel (%p187) target = $region20
      $region19: #{_lambda_.1} parent=11 // pred_region
        _
      $region20: #{_lambda_.1} parent=11 // pred_fallthru
        _
      // Predicated region
      $region21: #{_lambda_.1} parent=11 // pred_check
        %p190 = pneg %p101
      $region22: #{_lambda_.1} parent=11 // pred_check_branch
        %192 = sbr.rel (%p190) target = $region24
      $region23: #{_lambda_.1} parent=11 // pred_region
        _
      $region24: #{_lambda_.1} parent=11 // pred_fallthru
        _
      // Predicated region
      $region25: #{_lambda_.1} parent=11 // pred_check
        %p193 = pneg %p122
      $region26: #{_lambda_.1} parent=11 // pred_check_branch
        %195 = sbr.rel (%p193) target = $region28
      $region27: #{_lambda_.1} parent=11 // pred_region
        _
      $region28: #{_lambda_.1} parent=11 // pred_fallthru
        _
      // Predicated region
      $region29: #{_lambda_.1} parent=11 // pred_check
        %p196 = pneg %p143
      $region30: #{_lambda_.1} parent=11 // pred_check_branch
        %198 = sbr.rel (%p196) target = $region32
      $region31: #{_lambda_.1} parent=11 // pred_region
        _
      $region32: #{_lambda_.1} parent=11 // pred_fallthru
        _
    $region12: #{_lambda_.1} parent=5 // pred_fallthru
      _
    %p199 = scmp.lt.s32.totalorder %s12, 2
    // Predicated region
    $region33: #{_lambda_.1} parent=5 // pred_check
      %p200 = pneg %p199
    $region34: #{_lambda_.1} parent=5 // pred_check_branch
      %202 = sbr.rel (%p200) target = $region36
    $region35: #{_lambda_.1} parent=5 // pred_region
      // Predicated region
      $region37: #{_lambda_.1} parent=35 // pred_check
        %p203 = pneg %p32
      $region38: #{_lambda_.1} parent=35 // pred_check_branch
        %205 = sbr.rel (%p203) target = $region40
      $region39: #{_lambda_.1} parent=35 // pred_region
        %p206 = scmp.lt.s32.totalorder %s12, 1
        %s207 = scalar_select %p206, %s12, 1
        %s208 = smul.addr %s207, 32
        %s209 = smul.addr %s208, 8
        %s210 = scalar_lea.vmem %s0, %s209
      $region40: #{_lambda_.1} parent=35 // pred_fallthru
        _
    $region36: #{_lambda_.1} parent=5 // pred_fallthru
      _
    %p211 = scmp.le.s32.totalorder 1, %s12
    %p212 = scmp.lt.s32.totalorder %s12, 3
    %p213 = pnand %p211, %p212
    %p214 = pneg %p213
    // Predicated region
    $region41: #{_lambda_.1} parent=5 // pred_check
      _
    $region42: #{_lambda_.1} parent=5 // pred_check_branch
      %216 = sbr.rel (%p213) target = $region44
    $region43: #{_lambda_.1} parent=5 // pred_region
      %s217 = ssub.s32 %s12, 1
      %p218 = scmp.lt.s32.totalorder %s17, 1
      %s219 = scalar_select %p218, %s17, 1
      %s220 = smul.addr %s219, 32
      %s221 = smul.addr %s220, 8
      %s222 = scalar_lea.vmem %s0, %s221
      %p223 = pneg %p38
      %p224 = pneg %p35
      %p225 = pneg %p59
      %p226 = pneg %p56
      %p227 = pneg %p80
      %p228 = pneg %p77
      %p229 = pneg %p101
      %p230 = pneg %p98
      %p231 = pneg %p122
      %p232 = pneg %p119
      %p233 = pneg %p143
      %p234 = pneg %p140
      %p235 = pneg %p169
      %p236 = pneg %p166
      %p237 = scmp.lt.s32.totalorder %s17, 1
      %s238 = scalar_select %p237, %s17, 1
      %s239 = smul.addr %s238, 32
      %s240 = smul.addr %s239, 8
      %s241 = scalar_lea.vmem %s6, %s240
      %p242 = scmp.lt.s32.totalorder %s17, 1
      %s243 = scalar_select %p242, %s17, 1
      %s244 = smul.addr %s243, 32
      %s245 = smul.addr %s244, 8
      %s246 = scalar_lea.vmem %s0, %s245
      %p247 = scmp.lt.s32.totalorder %s17, 1
      %s248 = scalar_select %p247, %s17, 1
      %s249 = smul.addr %s248, 32
      %s250 = smul.addr %s249, 8
      %s251 = scalar_lea.vmem %s6, %s250
      %vm253 = vcmask 130048
      %254 = vst.msk [vmem:[#allocation2] sm:$0xff] %vm253, 0.0
      %255 = vst.msk [vmem:[#allocation2 + $0x8] sm:$0xff] %vm253, 0.0
      %256 = vst.msk [vmem:[#allocation2 + $0x10] sm:$0xff] %vm253, 0.0
      %257 = vst.msk [vmem:[#allocation2 + $0x18] sm:$0xff] %vm253, 0.0
      %258 = vst.msk [vmem:[#allocation2 + $0x20] sm:$0xff] %vm253, 0.0
      %259 = vst.msk [vmem:[#allocation2 + $0x28] sm:$0xff] %vm253, 0.0
      %260 = vst.msk [vmem:[#allocation2 + $0x30] sm:$0xff] %vm253, 0.0
      %261 = vst.msk [vmem:[#allocation2 + $0x38] sm:$0xff] %vm253, 0.0
      %262 = vst.msk [vmem:[#allocation2 + $0x40] sm:$0xff] %vm253, 0.0
      %263 = vst.msk [vmem:[#allocation2 + $0x48] sm:$0xff] %vm253, 0.0
      %264 = vst.msk [vmem:[#allocation2 + $0x50] sm:$0xff] %vm253, 0.0
      %265 = vst.msk [vmem:[#allocation2 + $0x58] sm:$0xff] %vm253, 0.0
      %s266 = scalar_lea.vmem [#allocation2], 608
      %267 = vst.msk [vmem:[%s266] sm:$0xff] %vm253, 0.0
      %268 = vst.msk [vmem:[%s266 + $0x8] sm:$0xff] %vm253, 0.0
      %269 = vst.msk [vmem:[%s266 + $0x10] sm:$0xff] %vm253, 0.0
      %270 = vst.msk [vmem:[%s266 + $0x18] sm:$0xff] %vm253, 0.0
      %271 = vst.msk [vmem:[%s266 + $0x20] sm:$0xff] %vm253, 0.0
      %272 = vst.msk [vmem:[%s266 + $0x28] sm:$0xff] %vm253, 0.0
      %273 = vst.msk [vmem:[%s266 + $0x30] sm:$0xff] %vm253, 0.0
      %274 = vst.msk [vmem:[%s266 + $0x38] sm:$0xff] %vm253, 0.0
      %275 = vst.msk [vmem:[%s266 + $0x40] sm:$0xff] %vm253, 0.0
      %276 = vst.msk [vmem:[%s266 + $0x48] sm:$0xff] %vm253, 0.0
      %277 = vst.msk [vmem:[%s266 + $0x50] sm:$0xff] %vm253, 0.0
      %278 = vst.msk [vmem:[%s266 + $0x58] sm:$0xff] %vm253, 0.0
      %s279 = scalar_lea.vmem [#allocation2], 96
      %280 = vst.msk [vmem:[%s279] sm:$0xff] %vm253, 0.0
      %281 = vst.msk [vmem:[%s279 + $0x20] sm:$0xff] %vm253, 0.0
      %282 = vst.msk [vmem:[%s279 + $0x40] sm:$0xff] %vm253, 0.0
      %283 = vst.msk [vmem:[%s279 + $0x60] sm:$0xff] %vm253, 0.0
      %284 = vst.msk [vmem:[%s279 + $0x80] sm:$0xff] %vm253, 0.0
      %285 = vst.msk [vmem:[%s279 + $0xa0] sm:$0xff] %vm253, 0.0
      %286 = vst.msk [vmem:[%s279 + $0xc0] sm:$0xff] %vm253, 0.0
      %287 = vst.msk [vmem:[%s279 + $0xe0] sm:$0xff] %vm253, 0.0
      %288 = vst.msk [vmem:[%s279 + $0x100] sm:$0xff] %vm253, 0.0
      %289 = vst.msk [vmem:[%s279 + $0x120] sm:$0xff] %vm253, 0.0
      %290 = vst.msk [vmem:[%s279 + $0x140] sm:$0xff] %vm253, 0.0
      %291 = vst.msk [vmem:[%s279 + $0x160] sm:$0xff] %vm253, 0.0
      %292 = vst.msk [vmem:[%s279 + $0x180] sm:$0xff] %vm253, 0.0
      %293 = vst.msk [vmem:[%s279 + $0x1a0] sm:$0xff] %vm253, 0.0
      %294 = vst.msk [vmem:[%s279 + $0x1c0] sm:$0xff] %vm253, 0.0
      %295 = vst.msk [vmem:[%s279 + $0x1e0] sm:$0xff] %vm253, 0.0
      %296 = vst.msk [vmem:[%s279 + $0x18] sm:$0xff] %vm253, 0.0
      %297 = vst.msk [vmem:[%s279 + $0x38] sm:$0xff] %vm253, 0.0
      %298 = vst.msk [vmem:[%s279 + $0x58] sm:$0xff] %vm253, 0.0
      %299 = vst.msk [vmem:[%s279 + $0x78] sm:$0xff] %vm253, 0.0
      %300 = vst.msk [vmem:[%s279 + $0x98] sm:$0xff] %vm253, 0.0
      %301 = vst.msk [vmem:[%s279 + $0xb8] sm:$0xff] %vm253, 0.0
      %302 = vst.msk [vmem:[%s279 + $0xd8] sm:$0xff] %vm253, 0.0
      %303 = vst.msk [vmem:[%s279 + $0xf8] sm:$0xff] %vm253, 0.0
      %304 = vst.msk [vmem:[%s279 + $0x118] sm:$0xff] %vm253, 0.0
      %305 = vst.msk [vmem:[%s279 + $0x138] sm:$0xff] %vm253, 0.0
      %306 = vst.msk [vmem:[%s279 + $0x158] sm:$0xff] %vm253, 0.0
      %307 = vst.msk [vmem:[%s279 + $0x178] sm:$0xff] %vm253, 0.0
      %308 = vst.msk [vmem:[%s279 + $0x198] sm:$0xff] %vm253, 0.0
      %309 = vst.msk [vmem:[%s279 + $0x1b8] sm:$0xff] %vm253, 0.0
      %310 = vst.msk [vmem:[%s279 + $0x1d8] sm:$0xff] %vm253, 0.0
      %311 = vst.msk [vmem:[%s279 + $0x1f8] sm:$0xff] %vm253, 0.0
      %v312 = vld [vmem:[%s246] sm:$0xff]
      %v313 = vld [vmem:[%s246 + $0x8] sm:$0xff]
      %v314 = vld [vmem:[%s246 + $0x10] sm:$0xff]
      %v315 = vld [vmem:[%s246 + $0x18] sm:$0xff]
      %v316 = vld [vmem:[%s246 + $0x20] sm:$0xff]
      %v317 = vld [vmem:[%s246 + $0x28] sm:$0xff]
      %v318 = vld [vmem:[%s246 + $0x30] sm:$0xff]
      %v319 = vld [vmem:[%s246 + $0x38] sm:$0xff]
      %v320 = vld [vmem:[%s246 + $0x40] sm:$0xff]
      %v321 = vld [vmem:[%s246 + $0x48] sm:$0xff]
      %v322 = vld [vmem:[%s246 + $0x50] sm:$0xff]
      %v323 = vld [vmem:[%s246 + $0x58] sm:$0xff]
      %v324 = vld [vmem:[%s246 + $0x60] sm:$0xff]
      %v325 = vld [vmem:[%s246 + $0x68] sm:$0xff]
      %v326 = vld [vmem:[%s246 + $0x70] sm:$0xff]
      %v327 = vld [vmem:[%s246 + $0x78] sm:$0xff]
      %v328 = vld [vmem:[%s246 + $0x80] sm:$0xff]
      %v329 = vld [vmem:[%s246 + $0x88] sm:$0xff]
      %v330 = vld [vmem:[%s246 + $0x90] sm:$0xff]
      %v331 = vld [vmem:[%s246 + $0x98] sm:$0xff]
      %v332 = vld [vmem:[%s246 + $0xa0] sm:$0xff]
      %v333 = vld [vmem:[%s246 + $0xa8] sm:$0xff]
      %v334 = vld [vmem:[%s246 + $0xb0] sm:$0xff]
      %v335 = vld [vmem:[%s246 + $0xb8] sm:$0xff]
      %v336 = vld [vmem:[%s246 + $0xc0] sm:$0xff]
      %v337 = vld [vmem:[%s246 + $0xc8] sm:$0xff]
      %v338 = vld [vmem:[%s246 + $0xd0] sm:$0xff]
      %v339 = vld [vmem:[%s246 + $0xd8] sm:$0xff]
      %v340 = vld [vmem:[%s246 + $0xe0] sm:$0xff]
      %v341 = vld [vmem:[%s246 + $0xe8] sm:$0xff]
      %v342 = vld [vmem:[%s246 + $0xf0] sm:$0xff]
      %v343 = vld [vmem:[%s246 + $0xf8] sm:$0xff]
      %344 = vst.msk [vmem:[%s279 + $0x8] sm:$0xff] %vm253, %v312
      %345 = vst.msk [vmem:[%s279 + $0x10] sm:$0xff] %vm253, %v313
      %346 = vst.msk [vmem:[%s279 + $0x28] sm:$0xff] %vm253, %v314
      %347 = vst.msk [vmem:[%s279 + $0x30] sm:$0xff] %vm253, %v315
      %348 = vst.msk [vmem:[%s279 + $0x48] sm:$0xff] %vm253, %v316
      %349 = vst.msk [vmem:[%s279 + $0x50] sm:$0xff] %vm253, %v317
      %350 = vst.msk [vmem:[%s279 + $0x68] sm:$0xff] %vm253, %v318
      %351 = vst.msk [vmem:[%s279 + $0x70] sm:$0xff] %vm253, %v319
      %352 = vst.msk [vmem:[%s279 + $0x88] sm:$0xff] %vm253, %v320
      %353 = vst.msk [vmem:[%s279 + $0x90] sm:$0xff] %vm253, %v321
      %354 = vst.msk [vmem:[%s279 + $0xa8] sm:$0xff] %vm253, %v322
      %355 = vst.msk [vmem:[%s279 + $0xb0] sm:$0xff] %vm253, %v323
      %356 = vst.msk [vmem:[%s279 + $0xc8] sm:$0xff] %vm253, %v324
      %357 = vst.msk [vmem:[%s279 + $0xd0] sm:$0xff] %vm253, %v325
      %358 = vst.msk [vmem:[%s279 + $0xe8] sm:$0xff] %vm253, %v326
      %359 = vst.msk [vmem:[%s279 + $0xf0] sm:$0xff] %vm253, %v327
      %360 = vst.msk [vmem:[%s279 + $0x108] sm:$0xff] %vm253, %v328
      %361 = vst.msk [vmem:[%s279 + $0x110] sm:$0xff] %vm253, %v329
      %362 = vst.msk [vmem:[%s279 + $0x128] sm:$0xff] %vm253, %v330
      %363 = vst.msk [vmem:[%s279 + $0x130] sm:$0xff] %vm253, %v331
      %364 = vst.msk [vmem:[%s279 + $0x148] sm:$0xff] %vm253, %v332
      %365 = vst.msk [vmem:[%s279 + $0x150] sm:$0xff] %vm253, %v333
      %366 = vst.msk [vmem:[%s279 + $0x168] sm:$0xff] %vm253, %v334
      %367 = vst.msk [vmem:[%s279 + $0x170] sm:$0xff] %vm253, %v335
      %368 = vst.msk [vmem:[%s279 + $0x188] sm:$0xff] %vm253, %v336
      %369 = vst.msk [vmem:[%s279 + $0x190] sm:$0xff] %vm253, %v337
      %370 = vst.msk [vmem:[%s279 + $0x1a8] sm:$0xff] %vm253, %v338
      %371 = vst.msk [vmem:[%s279 + $0x1b0] sm:$0xff] %vm253, %v339
      %372 = vst.msk [vmem:[%s279 + $0x1c8] sm:$0xff] %vm253, %v340
      %373 = vst.msk [vmem:[%s279 + $0x1d0] sm:$0xff] %vm253, %v341
      %374 = vst.msk [vmem:[%s279 + $0x1e8] sm:$0xff] %vm253, %v342
      %375 = vst.msk [vmem:[%s279 + $0x1f0] sm:$0xff] %vm253, %v343
      %v376 = vld [vmem:[%s2] sm:$0x1]
      %v377 = vld [vmem:[%s2 + $0x1] sm:$0x1]
      %v378 = vld [vmem:[%s2 + $0x2] sm:$0x1]
      loop: start=0, step=1, limit=2
      $region45: #{_lambda_.1} parent=43 // loop_pre_header
        _
      $region46: #{_lambda_.1} parent=43 // loop_header
        %s380 = sphi 0, %s384
        %p381 = scmp.ge.s32.totalorder %s380, 2
      $region47: #{_lambda_.1} parent=43 // loop_header_branch
        %383 = sbr.rel (%p381) target = $region51
      $region48: #{_lambda_.1} parent=43 // loop_body
        %s385 = smul.u32 %s380, 8
        %s386 = smul.u32 %s385, 32
        %s387 = scalar_lea.vmem [#allocation2], %s386
        %v388 = vld [vmem:[%s387 + $0x5] sm:$0xff]
        %v389 = vld [vmem:[%s387 + $0xd] sm:$0xff]
        %v390 = vld [vmem:[%s387 + $0x25] sm:$0xff]
        %v391 = vld [vmem:[%s387 + $0x2d] sm:$0xff]
        %v392 = vld [vmem:[%s387 + $0x45] sm:$0xff]
        %v393 = vld [vmem:[%s387 + $0x4d] sm:$0xff]
        %v394 = vld [vmem:[%s387 + $0x65] sm:$0xff]
        %v395 = vld [vmem:[%s387 + $0x6d] sm:$0xff]
        %v396 = vld [vmem:[%s387 + $0x85] sm:$0xff]
        %v397 = vld [vmem:[%s387 + $0x8d] sm:$0xff]
        %v398 = vld [vmem:[%s387 + $0xa5] sm:$0xff]
        %v399 = vld [vmem:[%s387 + $0xad] sm:$0xff]
        %v400 = vld [vmem:[%s387 + $0xc5] sm:$0xff]
        %v401 = vld [vmem:[%s387 + $0xcd] sm:$0xff]
        %v402 = vld [vmem:[%s387 + $0xe5] sm:$0xff]
        %v403 = vld [vmem:[%s387 + $0xed] sm:$0xff]
        %v404 = vld [vmem:[%s387 + $0x105] sm:$0xff]
        %v405 = vld [vmem:[%s387 + $0x10d] sm:$0xff]
        %v406 = vld [vmem:[%s387 + $0x125] sm:$0xff]
        %v407 = vld [vmem:[%s387 + $0x12d] sm:$0xff]
        %v408 = vld [vmem:[%s387 + $0x145] sm:$0xff]
        %v409 = vld [vmem:[%s387 + $0x14d] sm:$0xff]
        %v410 = vld [vmem:[%s387 + $0x165] sm:$0xff]
        %v411 = vld [vmem:[%s387 + $0x16d] sm:$0xff]
        %v412 = vld [vmem:[%s387 + $0x185] sm:$0xff]
        %v413 = vld [vmem:[%s387 + $0x18d] sm:$0xff]
        %v414 = vld [vmem:[%s387 + $0x1a5] sm:$0xff]
        %v415 = vld [vmem:[%s387 + $0x1ad] sm:$0xff]
        %416 = vst.msk [vmem:[#allocation3] sm:$0xff] %vm253, %v388
        %417 = vst.msk [vmem:[#allocation3 + $0x8] sm:$0xff] %vm253, %v389
        %418 = vst.msk [vmem:[#allocation3 + $0x10] sm:$0xff] %vm253, %v390
        %419 = vst.msk [vmem:[#allocation3 + $0x18] sm:$0xff] %vm253, %v391
        %420 = vst.msk [vmem:[#allocation3 + $0x20] sm:$0xff] %vm253, %v392
        %421 = vst.msk [vmem:[#allocation3 + $0x28] sm:$0xff] %vm253, %v393
        %422 = vst.msk [vmem:[#allocation3 + $0x30] sm:$0xff] %vm253, %v394
        %423 = vst.msk [vmem:[#allocation3 + $0x38] sm:$0xff] %vm253, %v395
        %424 = vst.msk [vmem:[#allocation3 + $0x40] sm:$0xff] %vm253, %v396
        %425 = vst.msk [vmem:[#allocation3 + $0x48] sm:$0xff] %vm253, %v397
        %426 = vst.msk [vmem:[#allocation3 + $0x50] sm:$0xff] %vm253, %v398
        %427 = vst.msk [vmem:[#allocation3 + $0x58] sm:$0xff] %vm253, %v399
        %428 = vst.msk [vmem:[#allocation3 + $0x60] sm:$0xff] %vm253, %v400
        %429 = vst.msk [vmem:[#allocation3 + $0x68] sm:$0xff] %vm253, %v401
        %430 = vst.msk [vmem:[#allocation3 + $0x70] sm:$0xff] %vm253, %v402
        %431 = vst.msk [vmem:[#allocation3 + $0x78] sm:$0xff] %vm253, %v403
        %432 = vst.msk [vmem:[#allocation3 + $0x80] sm:$0xff] %vm253, %v404
        %433 = vst.msk [vmem:[#allocation3 + $0x88] sm:$0xff] %vm253, %v405
        %434 = vst.msk [vmem:[#allocation3 + $0x90] sm:$0xff] %vm253, %v406
        %435 = vst.msk [vmem:[#allocation3 + $0x98] sm:$0xff] %vm253, %v407
        %436 = vst.msk [vmem:[#allocation3 + $0xa0] sm:$0xff] %vm253, %v408
        %437 = vst.msk [vmem:[#allocation3 + $0xa8] sm:$0xff] %vm253, %v409
        %438 = vst.msk [vmem:[#allocation3 + $0xb0] sm:$0xff] %vm253, %v410
        %439 = vst.msk [vmem:[#allocation3 + $0xb8] sm:$0xff] %vm253, %v411
        %440 = vst.msk [vmem:[#allocation3 + $0xc0] sm:$0xff] %vm253, %v412
        %441 = vst.msk [vmem:[#allocation3 + $0xc8] sm:$0xff] %vm253, %v413
        %442 = vst.msk [vmem:[#allocation3 + $0xd0] sm:$0xff] %vm253, %v414
        %443 = vst.msk [vmem:[#allocation3 + $0xd8] sm:$0xff] %vm253, %v415
        %v444 = vld [vmem:[#allocation3] sm:$0xff]
        %v445 = vld [vmem:[#allocation3 + $0x8] sm:$0xff]
        %v446 = vld [vmem:[#allocation3 + $0x10] sm:$0xff]
        %v447 = vld [vmem:[#allocation3 + $0x18] sm:$0xff]
        %v448 = vld [vmem:[#allocation3 + $0x20] sm:$0xff]
        %v449 = vld [vmem:[#allocation3 + $0x28] sm:$0xff]
        %v450 = vld [vmem:[#allocation3 + $0x30] sm:$0xff]
        %v451 = vld [vmem:[#allocation3 + $0x38] sm:$0xff]
        %v452 = vld [vmem:[#allocation3 + $0x40] sm:$0xff]
        %v453 = vld [vmem:[#allocation3 + $0x48] sm:$0xff]
        %v454 = vld [vmem:[#allocation3 + $0x50] sm:$0xff]
        %v455 = vld [vmem:[#allocation3 + $0x58] sm:$0xff]
        %v456 = vld [vmem:[#allocation3 + $0x60] sm:$0xff]
        %v457 = vld [vmem:[#allocation3 + $0x68] sm:$0xff]
        %v458 = vld [vmem:[#allocation3 + $0x70] sm:$0xff]
        %v459 = vld [vmem:[#allocation3 + $0x78] sm:$0xff]
        %v460 = vld [vmem:[%s1] sm:$0x1]
        %v461 = vperm.slane %v460, 0
        %v462 = vmul.f32 %v444, %v461
        %v463 = vmul.f32 %v445, %v461
        %v464 = vmul.f32 %v446, %v461
        %v465 = vmul.f32 %v447, %v461
        %v466 = vmul.f32 %v448, %v461
        %v467 = vmul.f32 %v449, %v461
        %v468 = vmul.f32 %v450, %v461
        %v469 = vmul.f32 %v451, %v461
        %v470 = vmul.f32 %v452, %v461
        %v471 = vmul.f32 %v453, %v461
        %v472 = vmul.f32 %v454, %v461
        %v473 = vmul.f32 %v455, %v461
        %v474 = vmul.f32 %v456, %v461
        %v475 = vmul.f32 %v457, %v461
        %v476 = vmul.f32 %v458, %v461
        %v477 = vmul.f32 %v459, %v461
        %v478 = vperm.slane %v376, 0
        %v479 = vadd.f32 %v462, %v478
        %v480 = vadd.f32 %v463, %v478
        %v481 = vadd.f32 %v464, %v478
        %v482 = vadd.f32 %v465, %v478
        %v483 = vadd.f32 %v466, %v478
        %v484 = vadd.f32 %v467, %v478
        %v485 = vadd.f32 %v468, %v478
        %v486 = vadd.f32 %v469, %v478
        %v487 = vadd.f32 %v470, %v478
        %v488 = vadd.f32 %v471, %v478
        %v489 = vadd.f32 %v472, %v478
        %v490 = vadd.f32 %v473, %v478
        %v491 = vadd.f32 %v474, %v478
        %v492 = vadd.f32 %v475, %v478
        %v493 = vadd.f32 %v476, %v478
        %v494 = vadd.f32 %v477, %v478
        %s495 = scalar_lea.vmem [#allocation3], 16
        %v496 = vld [vmem:[%s495] sm:$0xff]
        %v497 = vld [vmem:[%s495 + $0x8] sm:$0xff]
        %v498 = vld [vmem:[%s495 + $0x10] sm:$0xff]
        %v499 = vld [vmem:[%s495 + $0x18] sm:$0xff]
        %v500 = vld [vmem:[%s495 + $0x20] sm:$0xff]
        %v501 = vld [vmem:[%s495 + $0x28] sm:$0xff]
        %v502 = vld [vmem:[%s495 + $0x30] sm:$0xff]
        %v503 = vld [vmem:[%s495 + $0x38] sm:$0xff]
        %v504 = vld [vmem:[%s495 + $0x40] sm:$0xff]
        %v505 = vld [vmem:[%s495 + $0x48] sm:$0xff]
        %v506 = vld [vmem:[%s495 + $0x50] sm:$0xff]
        %v507 = vld [vmem:[%s495 + $0x58] sm:$0xff]
        %v508 = vld [vmem:[%s495 + $0x60] sm:$0xff]
        %v509 = vld [vmem:[%s495 + $0x68] sm:$0xff]
        %v510 = vld [vmem:[%s495 + $0x70] sm:$0xff]
        %v511 = vld [vmem:[%s495 + $0x78] sm:$0xff]
        %v512 = vld [vmem:[%s1 + $0x7] sm:$0x1]
        %v513 = vperm.slane %v512, 0
        %v514 = vmul.f32 %v496, %v513
        %v515 = vmul.f32 %v497, %v513
        %v516 = vmul.f32 %v498, %v513
        %v517 = vmul.f32 %v499, %v513
        %v518 = vmul.f32 %v500, %v513
        %v519 = vmul.f32 %v501, %v513
        %v520 = vmul.f32 %v502, %v513
        %v521 = vmul.f32 %v503, %v513
        %v522 = vmul.f32 %v504, %v513
        %v523 = vmul.f32 %v505, %v513
        %v524 = vmul.f32 %v506, %v513
        %v525 = vmul.f32 %v507, %v513
        %v526 = vmul.f32 %v508, %v513
        %v527 = vmul.f32 %v509, %v513
        %v528 = vmul.f32 %v510, %v513
        %v529 = vmul.f32 %v511, %v513
        %v530 = vadd.f32 %v479, %v514
        %v531 = vadd.f32 %v480, %v515
        %v532 = vadd.f32 %v481, %v516
        %v533 = vadd.f32 %v482, %v517
        %v534 = vadd.f32 %v483, %v518
        %v535 = vadd.f32 %v484, %v519
        %v536 = vadd.f32 %v485, %v520
        %v537 = vadd.f32 %v486, %v521
        %v538 = vadd.f32 %v487, %v522
        %v539 = vadd.f32 %v488, %v523
        %v540 = vadd.f32 %v489, %v524
        %v541 = vadd.f32 %v490, %v525
        %v542 = vadd.f32 %v491, %v526
        %v543 = vadd.f32 %v492, %v527
        %v544 = vadd.f32 %v493, %v528
        %v545 = vadd.f32 %v494, %v529
        %s546 = scalar_lea.vmem [#allocation3], 32
        %v547 = vld [vmem:[%s546] sm:$0xff]
        %v548 = vld [vmem:[%s546 + $0x8] sm:$0xff]
        %v549 = vld [vmem:[%s546 + $0x10] sm:$0xff]
        %v550 = vld [vmem:[%s546 + $0x18] sm:$0xff]
        %v551 = vld [vmem:[%s546 + $0x20] sm:$0xff]
        %v552 = vld [vmem:[%s546 + $0x28] sm:$0xff]
        %v553 = vld [vmem:[%s546 + $0x30] sm:$0xff]
        %v554 = vld [vmem:[%s546 + $0x38] sm:$0xff]
        %v555 = vld [vmem:[%s546 + $0x40] sm:$0xff]
        %v556 = vld [vmem:[%s546 + $0x48] sm:$0xff]
        %v557 = vld [vmem:[%s546 + $0x50] sm:$0xff]
        %v558 = vld [vmem:[%s546 + $0x58] sm:$0xff]
        %v559 = vld [vmem:[%s546 + $0x60] sm:$0xff]
        %v560 = vld [vmem:[%s546 + $0x68] sm:$0xff]
        %v561 = vld [vmem:[%s546 + $0x70] sm:$0xff]
        %v562 = vld [vmem:[%s546 + $0x78] sm:$0xff]
        %v563 = vld [vmem:[%s1 + $0xe] sm:$0x1]
        %v564 = vperm.slane %v563, 0
        %v565 = vmul.f32 %v547, %v564
        %v566 = vmul.f32 %v548, %v564
        %v567 = vmul.f32 %v549, %v564
        %v568 = vmul.f32 %v550, %v564
        %v569 = vmul.f32 %v551, %v564
        %v570 = vmul.f32 %v552, %v564
        %v571 = vmul.f32 %v553, %v564
        %v572 = vmul.f32 %v554, %v564
        %v573 = vmul.f32 %v555, %v564
        %v574 = vmul.f32 %v556, %v564
        %v575 = vmul.f32 %v557, %v564
        %v576 = vmul.f32 %v558, %v564
        %v577 = vmul.f32 %v559, %v564
        %v578 = vmul.f32 %v560, %v564
        %v579 = vmul.f32 %v561, %v564
        %v580 = vmul.f32 %v562, %v564
        %v581 = vadd.f32 %v530, %v565
        %v582 = vadd.f32 %v531, %v566
        %v583 = vadd.f32 %v532, %v567
        %v584 = vadd.f32 %v533, %v568
        %v585 = vadd.f32 %v534, %v569
        %v586 = vadd.f32 %v535, %v570
        %v587 = vadd.f32 %v536, %v571
        %v588 = vadd.f32 %v537, %v572
        %v589 = vadd.f32 %v538, %v573
        %v590 = vadd.f32 %v539, %v574
        %v591 = vadd.f32 %v540, %v575
        %v592 = vadd.f32 %v541, %v576
        %v593 = vadd.f32 %v542, %v577
        %v594 = vadd.f32 %v543, %v578
        %v595 = vadd.f32 %v544, %v579
        %v596 = vadd.f32 %v545, %v580
        %s597 = scalar_lea.vmem [#allocation3], 48
        %v598 = vld [vmem:[%s597] sm:$0xff]
        %v599 = vld [vmem:[%s597 + $0x8] sm:$0xff]
        %v600 = vld [vmem:[%s597 + $0x10] sm:$0xff]
        %v601 = vld [vmem:[%s597 + $0x18] sm:$0xff]
        %v602 = vld [vmem:[%s597 + $0x20] sm:$0xff]
        %v603 = vld [vmem:[%s597 + $0x28] sm:$0xff]
        %v604 = vld [vmem:[%s597 + $0x30] sm:$0xff]
        %v605 = vld [vmem:[%s597 + $0x38] sm:$0xff]
        %v606 = vld [vmem:[%s597 + $0x40] sm:$0xff]
        %v607 = vld [vmem:[%s597 + $0x48] sm:$0xff]
        %v608 = vld [vmem:[%s597 + $0x50] sm:$0xff]
        %v609 = vld [vmem:[%s597 + $0x58] sm:$0xff]
        %v610 = vld [vmem:[%s597 + $0x60] sm:$0xff]
        %v611 = vld [vmem:[%s597 + $0x68] sm:$0xff]
        %v612 = vld [vmem:[%s597 + $0x70] sm:$0xff]
        %v613 = vld [vmem:[%s597 + $0x78] sm:$0xff]
        %v614 = vld [vmem:[%s1 + $0x15] sm:$0x1]
        %v615 = vperm.slane %v614, 0
        %v616 = vmul.f32 %v598, %v615
        %v617 = vmul.f32 %v599, %v615
        %v618 = vmul.f32 %v600, %v615
        %v619 = vmul.f32 %v601, %v615
        %v620 = vmul.f32 %v602, %v615
        %v621 = vmul.f32 %v603, %v615
        %v622 = vmul.f32 %v604, %v615
        %v623 = vmul.f32 %v605, %v615
        %v624 = vmul.f32 %v606, %v615
        %v625 = vmul.f32 %v607, %v615
        %v626 = vmul.f32 %v608, %v615
        %v627 = vmul.f32 %v609, %v615
        %v628 = vmul.f32 %v610, %v615
        %v629 = vmul.f32 %v611, %v615
        %v630 = vmul.f32 %v612, %v615
        %v631 = vmul.f32 %v613, %v615
        %v632 = vadd.f32 %v581, %v616
        %v633 = vadd.f32 %v582, %v617
        %v634 = vadd.f32 %v583, %v618
        %v635 = vadd.f32 %v584, %v619
        %v636 = vadd.f32 %v585, %v620
        %v637 = vadd.f32 %v586, %v621
        %v638 = vadd.f32 %v587, %v622
        %v639 = vadd.f32 %v588, %v623
        %v640 = vadd.f32 %v589, %v624
        %v641 = vadd.f32 %v590, %v625
        %v642 = vadd.f32 %v591, %v626
        %v643 = vadd.f32 %v592, %v627
        %v644 = vadd.f32 %v593, %v628
        %v645 = vadd.f32 %v594, %v629
        %v646 = vadd.f32 %v595, %v630
        %v647 = vadd.f32 %v596, %v631
        %s648 = scalar_lea.vmem [#allocation3], 64
        %v649 = vld [vmem:[%s648] sm:$0xff]
        %v650 = vld [vmem:[%s648 + $0x8] sm:$0xff]
        %v651 = vld [vmem:[%s648 + $0x10] sm:$0xff]
        %v652 = vld [vmem:[%s648 + $0x18] sm:$0xff]
        %v653 = vld [vmem:[%s648 + $0x20] sm:$0xff]
        %v654 = vld [vmem:[%s648 + $0x28] sm:$0xff]
        %v655 = vld [vmem:[%s648 + $0x30] sm:$0xff]
        %v656 = vld [vmem:[%s648 + $0x38] sm:$0xff]
        %v657 = vld [vmem:[%s648 + $0x40] sm:$0xff]
        %v658 = vld [vmem:[%s648 + $0x48] sm:$0xff]
        %v659 = vld [vmem:[%s648 + $0x50] sm:$0xff]
        %v660 = vld [vmem:[%s648 + $0x58] sm:$0xff]
        %v661 = vld [vmem:[%s648 + $0x60] sm:$0xff]
        %v662 = vld [vmem:[%s648 + $0x68] sm:$0xff]
        %v663 = vld [vmem:[%s648 + $0x70] sm:$0xff]
        %v664 = vld [vmem:[%s648 + $0x78] sm:$0xff]
        %v665 = vld [vmem:[%s1 + $0x1c] sm:$0x1]
        %v666 = vperm.slane %v665, 0
        %v667 = vmul.f32 %v649, %v666
        %v668 = vmul.f32 %v650, %v666
        %v669 = vmul.f32 %v651, %v666
        %v670 = vmul.f32 %v652, %v666
        %v671 = vmul.f32 %v653, %v666
        %v672 = vmul.f32 %v654, %v666
        %v673 = vmul.f32 %v655, %v666
        %v674 = vmul.f32 %v656, %v666
        %v675 = vmul.f32 %v657, %v666
        %v676 = vmul.f32 %v658, %v666
        %v677 = vmul.f32 %v659, %v666
        %v678 = vmul.f32 %v660, %v666
        %v679 = vmul.f32 %v661, %v666
        %v680 = vmul.f32 %v662, %v666
        %v681 = vmul.f32 %v663, %v666
        %v682 = vmul.f32 %v664, %v666
        %v683 = vadd.f32 %v632, %v667
        %v684 = vadd.f32 %v633, %v668
        %v685 = vadd.f32 %v634, %v669
        %v686 = vadd.f32 %v635, %v670
        %v687 = vadd.f32 %v636, %v671
        %v688 = vadd.f32 %v637, %v672
        %v689 = vadd.f32 %v638, %v673
        %v690 = vadd.f32 %v639, %v674
        %v691 = vadd.f32 %v640, %v675
        %v692 = vadd.f32 %v641, %v676
        %v693 = vadd.f32 %v642, %v677
        %v694 = vadd.f32 %v643, %v678
        %v695 = vadd.f32 %v644, %v679
        %v696 = vadd.f32 %v645, %v680
        %v697 = vadd.f32 %v646, %v681
        %v698 = vadd.f32 %v647, %v682
        %s699 = scalar_lea.vmem [#allocation3], 80
        %v700 = vld [vmem:[%s699] sm:$0xff]
        %v701 = vld [vmem:[%s699 + $0x8] sm:$0xff]
        %v702 = vld [vmem:[%s699 + $0x10] sm:$0xff]
        %v703 = vld [vmem:[%s699 + $0x18] sm:$0xff]
        %v704 = vld [vmem:[%s699 + $0x20] sm:$0xff]
        %v705 = vld [vmem:[%s699 + $0x28] sm:$0xff]
        %v706 = vld [vmem:[%s699 + $0x30] sm:$0xff]
        %v707 = vld [vmem:[%s699 + $0x38] sm:$0xff]
        %v708 = vld [vmem:[%s699 + $0x40] sm:$0xff]
        %v709 = vld [vmem:[%s699 + $0x48] sm:$0xff]
        %v710 = vld [vmem:[%s699 + $0x50] sm:$0xff]
        %v711 = vld [vmem:[%s699 + $0x58] sm:$0xff]
        %v712 = vld [vmem:[%s699 + $0x60] sm:$0xff]
        %v713 = vld [vmem:[%s699 + $0x68] sm:$0xff]
        %v714 = vld [vmem:[%s699 + $0x70] sm:$0xff]
        %v715 = vld [vmem:[%s699 + $0x78] sm:$0xff]
        %v716 = vld [vmem:[%s1 + $0x23] sm:$0x1]
        %v717 = vperm.slane %v716, 0
        %v718 = vmul.f32 %v700, %v717
        %v719 = vmul.f32 %v701, %v717
        %v720 = vmul.f32 %v702, %v717
        %v721 = vmul.f32 %v703, %v717
        %v722 = vmul.f32 %v704, %v717
        %v723 = vmul.f32 %v705, %v717
        %v724 = vmul.f32 %v706, %v717
        %v725 = vmul.f32 %v707, %v717
        %v726 = vmul.f32 %v708, %v717
        %v727 = vmul.f32 %v709, %v717
        %v728 = vmul.f32 %v710, %v717
        %v729 = vmul.f32 %v711, %v717
        %v730 = vmul.f32 %v712, %v717
        %v731 = vmul.f32 %v713, %v717
        %v732 = vmul.f32 %v714, %v717
        %v733 = vmul.f32 %v715, %v717
        %v734 = vadd.f32 %v683, %v718
        %v735 = vadd.f32 %v684, %v719
        %v736 = vadd.f32 %v685, %v720
        %v737 = vadd.f32 %v686, %v721
        %v738 = vadd.f32 %v687, %v722
        %v739 = vadd.f32 %v688, %v723
        %v740 = vadd.f32 %v689, %v724
        %v741 = vadd.f32 %v690, %v725
        %v742 = vadd.f32 %v691, %v726
        %v743 = vadd.f32 %v692, %v727
        %v744 = vadd.f32 %v693, %v728
        %v745 = vadd.f32 %v694, %v729
        %v746 = vadd.f32 %v695, %v730
        %v747 = vadd.f32 %v696, %v731
        %v748 = vadd.f32 %v697, %v732
        %v749 = vadd.f32 %v698, %v733
        %s750 = scalar_lea.vmem [#allocation3], 96
        %v751 = vld [vmem:[%s750] sm:$0xff]
        %v752 = vld [vmem:[%s750 + $0x8] sm:$0xff]
        %v753 = vld [vmem:[%s750 + $0x10] sm:$0xff]
        %v754 = vld [vmem:[%s750 + $0x18] sm:$0xff]
        %v755 = vld [vmem:[%s750 + $0x20] sm:$0xff]
        %v756 = vld [vmem:[%s750 + $0x28] sm:$0xff]
        %v757 = vld [vmem:[%s750 + $0x30] sm:$0xff]
        %v758 = vld [vmem:[%s750 + $0x38] sm:$0xff]
        %v759 = vld [vmem:[%s750 + $0x40] sm:$0xff]
        %v760 = vld [vmem:[%s750 + $0x48] sm:$0xff]
        %v761 = vld [vmem:[%s750 + $0x50] sm:$0xff]
        %v762 = vld [vmem:[%s750 + $0x58] sm:$0xff]
        %v763 = vld [vmem:[%s750 + $0x60] sm:$0xff]
        %v764 = vld [vmem:[%s750 + $0x68] sm:$0xff]
        %v765 = vld [vmem:[%s750 + $0x70] sm:$0xff]
        %v766 = vld [vmem:[%s750 + $0x78] sm:$0xff]
        %v767 = vld [vmem:[%s1 + $0x2a] sm:$0x1]
        %v768 = vperm.slane %v767, 0
        %v769 = vmul.f32 %v751, %v768
        %v770 = vmul.f32 %v752, %v768
        %v771 = vmul.f32 %v753, %v768
        %v772 = vmul.f32 %v754, %v768
        %v773 = vmul.f32 %v755, %v768
        %v774 = vmul.f32 %v756, %v768
        %v775 = vmul.f32 %v757, %v768
        %v776 = vmul.f32 %v758, %v768
        %v777 = vmul.f32 %v759, %v768
        %v778 = vmul.f32 %v760, %v768
        %v779 = vmul.f32 %v761, %v768
        %v780 = vmul.f32 %v762, %v768
        %v781 = vmul.f32 %v763, %v768
        %v782 = vmul.f32 %v764, %v768
        %v783 = vmul.f32 %v765, %v768
        %v784 = vmul.f32 %v766, %v768
        %v785 = vadd.f32 %v734, %v769
        %v786 = vadd.f32 %v735, %v770
        %v787 = vadd.f32 %v736, %v771
        %v788 = vadd.f32 %v737, %v772
        %v789 = vadd.f32 %v738, %v773
        %v790 = vadd.f32 %v739, %v774
        %v791 = vadd.f32 %v740, %v775
        %v792 = vadd.f32 %v741, %v776
        %v793 = vadd.f32 %v742, %v777
        %v794 = vadd.f32 %v743, %v778
        %v795 = vadd.f32 %v744, %v779
        %v796 = vadd.f32 %v745, %v780
        %v797 = vadd.f32 %v746, %v781
        %v798 = vadd.f32 %v747, %v782
        %v799 = vadd.f32 %v748, %v783
        %v800 = vadd.f32 %v749, %v784
        %v801 = vld [vmem:[%s387 + $0x6] sm:$0xff]
        %v802 = vld [vmem:[%s387 + $0xe] sm:$0xff]
        %v803 = vld [vmem:[%s387 + $0x26] sm:$0xff]
        %v804 = vld [vmem:[%s387 + $0x2e] sm:$0xff]
        %v805 = vld [vmem:[%s387 + $0x46] sm:$0xff]
        %v806 = vld [vmem:[%s387 + $0x4e] sm:$0xff]
        %v807 = vld [vmem:[%s387 + $0x66] sm:$0xff]
        %v808 = vld [vmem:[%s387 + $0x6e] sm:$0xff]
        %v809 = vld [vmem:[%s387 + $0x86] sm:$0xff]
        %v810 = vld [vmem:[%s387 + $0x8e] sm:$0xff]
        %v811 = vld [vmem:[%s387 + $0xa6] sm:$0xff]
        %v812 = vld [vmem:[%s387 + $0xae] sm:$0xff]
        %v813 = vld [vmem:[%s387 + $0xc6] sm:$0xff]
        %v814 = vld [vmem:[%s387 + $0xce] sm:$0xff]
        %v815 = vld [vmem:[%s387 + $0xe6] sm:$0xff]
        %v816 = vld [vmem:[%s387 + $0xee] sm:$0xff]
        %v817 = vld [vmem:[%s387 + $0x106] sm:$0xff]
        %v818 = vld [vmem:[%s387 + $0x10e] sm:$0xff]
        %v819 = vld [vmem:[%s387 + $0x126] sm:$0xff]
        %v820 = vld [vmem:[%s387 + $0x12e] sm:$0xff]
        %v821 = vld [vmem:[%s387 + $0x146] sm:$0xff]
        %v822 = vld [vmem:[%s387 + $0x14e] sm:$0xff]
        %v823 = vld [vmem:[%s387 + $0x166] sm:$0xff]
        %v824 = vld [vmem:[%s387 + $0x16e] sm:$0xff]
        %v825 = vld [vmem:[%s387 + $0x186] sm:$0xff]
        %v826 = vld [vmem:[%s387 + $0x18e] sm:$0xff]
        %v827 = vld [vmem:[%s387 + $0x1a6] sm:$0xff]
        %v828 = vld [vmem:[%s387 + $0x1ae] sm:$0xff]
        %s829 = scalar_lea.vmem [#allocation3], 224
        %830 = vst.msk [vmem:[%s829] sm:$0xff] %vm253, %v801
        %831 = vst.msk [vmem:[%s829 + $0x8] sm:$0xff] %vm253, %v802
        %832 = vst.msk [vmem:[%s829 + $0x10] sm:$0xff] %vm253, %v803
        %833 = vst.msk [vmem:[%s829 + $0x18] sm:$0xff] %vm253, %v804
        %834 = vst.msk [vmem:[%s829 + $0x20] sm:$0xff] %vm253, %v805
        %835 = vst.msk [vmem:[%s829 + $0x28] sm:$0xff] %vm253, %v806
        %836 = vst.msk [vmem:[%s829 + $0x30] sm:$0xff] %vm253, %v807
        %837 = vst.msk [vmem:[%s829 + $0x38] sm:$0xff] %vm253, %v808
        %838 = vst.msk [vmem:[%s829 + $0x40] sm:$0xff] %vm253, %v809
        %839 = vst.msk [vmem:[%s829 + $0x48] sm:$0xff] %vm253, %v810
        %840 = vst.msk [vmem:[%s829 + $0x50] sm:$0xff] %vm253, %v811
        %841 = vst.msk [vmem:[%s829 + $0x58] sm:$0xff] %vm253, %v812
        %842 = vst.msk [vmem:[%s829 + $0x60] sm:$0xff] %vm253, %v813
        %843 = vst.msk [vmem:[%s829 + $0x68] sm:$0xff] %vm253, %v814
        %844 = vst.msk [vmem:[%s829 + $0x70] sm:$0xff] %vm253, %v815
        %845 = vst.msk [vmem:[%s829 + $0x78] sm:$0xff] %vm253, %v816
        %846 = vst.msk [vmem:[%s829 + $0x80] sm:$0xff] %vm253, %v817
        %847 = vst.msk [vmem:[%s829 + $0x88] sm:$0xff] %vm253, %v818
        %848 = vst.msk [vmem:[%s829 + $0x90] sm:$0xff] %vm253, %v819
        %849 = vst.msk [vmem:[%s829 + $0x98] sm:$0xff] %vm253, %v820
        %850 = vst.msk [vmem:[%s829 + $0xa0] sm:$0xff] %vm253, %v821
        %851 = vst.msk [vmem:[%s829 + $0xa8] sm:$0xff] %vm253, %v822
        %852 = vst.msk [vmem:[%s829 + $0xb0] sm:$0xff] %vm253, %v823
        %853 = vst.msk [vmem:[%s829 + $0xb8] sm:$0xff] %vm253, %v824
        %854 = vst.msk [vmem:[%s829 + $0xc0] sm:$0xff] %vm253, %v825
        %855 = vst.msk [vmem:[%s829 + $0xc8] sm:$0xff] %vm253, %v826
        %856 = vst.msk [vmem:[%s829 + $0xd0] sm:$0xff] %vm253, %v827
        %857 = vst.msk [vmem:[%s829 + $0xd8] sm:$0xff] %vm253, %v828
        %v858 = vld [vmem:[%s829] sm:$0xff]
        %v859 = vld [vmem:[%s829 + $0x8] sm:$0xff]
        %v860 = vld [vmem:[%s829 + $0x10] sm:$0xff]
        %v861 = vld [vmem:[%s829 + $0x18] sm:$0xff]
        %v862 = vld [vmem:[%s829 + $0x20] sm:$0xff]
        %v863 = vld [vmem:[%s829 + $0x28] sm:$0xff]
        %v864 = vld [vmem:[%s829 + $0x30] sm:$0xff]
        %v865 = vld [vmem:[%s829 + $0x38] sm:$0xff]
        %v866 = vld [vmem:[%s829 + $0x40] sm:$0xff]
        %v867 = vld [vmem:[%s829 + $0x48] sm:$0xff]
        %v868 = vld [vmem:[%s829 + $0x50] sm:$0xff]
        %v869 = vld [vmem:[%s829 + $0x58] sm:$0xff]
        %v870 = vld [vmem:[%s829 + $0x60] sm:$0xff]
        %v871 = vld [vmem:[%s829 + $0x68] sm:$0xff]
        %v872 = vld [vmem:[%s829 + $0x70] sm:$0xff]
        %v873 = vld [vmem:[%s829 + $0x78] sm:$0xff]
        %v874 = vld [vmem:[%s1 + $0x1] sm:$0x1]
        %v875 = vperm.slane %v874, 0
        %v876 = vmul.f32 %v858, %v875
        %v877 = vmul.f32 %v859, %v875
        %v878 = vmul.f32 %v860, %v875
        %v879 = vmul.f32 %v861, %v875
        %v880 = vmul.f32 %v862, %v875
        %v881 = vmul.f32 %v863, %v875
        %v882 = vmul.f32 %v864, %v875
        %v883 = vmul.f32 %v865, %v875
        %v884 = vmul.f32 %v866, %v875
        %v885 = vmul.f32 %v867, %v875
        %v886 = vmul.f32 %v868, %v875
        %v887 = vmul.f32 %v869, %v875
        %v888 = vmul.f32 %v870, %v875
        %v889 = vmul.f32 %v871, %v875
        %v890 = vmul.f32 %v872, %v875
        %v891 = vmul.f32 %v873, %v875
        %v892 = vadd.f32 %v785, %v876
        %v893 = vadd.f32 %v786, %v877
        %v894 = vadd.f32 %v787, %v878
        %v895 = vadd.f32 %v788, %v879
        %v896 = vadd.f32 %v789, %v880
        %v897 = vadd.f32 %v790, %v881
        %v898 = vadd.f32 %v791, %v882
        %v899 = vadd.f32 %v792, %v883
        %v900 = vadd.f32 %v793, %v884
        %v901 = vadd.f32 %v794, %v885
        %v902 = vadd.f32 %v795, %v886
        %v903 = vadd.f32 %v796, %v887
        %v904 = vadd.f32 %v797, %v888
        %v905 = vadd.f32 %v798, %v889
        %v906 = vadd.f32 %v799, %v890
        %v907 = vadd.f32 %v800, %v891
        %s908 = scalar_lea.vmem [#allocation3], 240
        %v909 = vld [vmem:[%s908] sm:$0xff]
        %v910 = vld [vmem:[%s908 + $0x8] sm:$0xff]
        %v911 = vld [vmem:[%s908 + $0x10] sm:$0xff]
        %v912 = vld [vmem:[%s908 + $0x18] sm:$0xff]
        %v913 = vld [vmem:[%s908 + $0x20] sm:$0xff]
        %v914 = vld [vmem:[%s908 + $0x28] sm:$0xff]
        %v915 = vld [vmem:[%s908 + $0x30] sm:$0xff]
        %v916 = vld [vmem:[%s908 + $0x38] sm:$0xff]
        %v917 = vld [vmem:[%s908 + $0x40] sm:$0xff]
        %v918 = vld [vmem:[%s908 + $0x48] sm:$0xff]
        %v919 = vld [vmem:[%s908 + $0x50] sm:$0xff]
        %v920 = vld [vmem:[%s908 + $0x58] sm:$0xff]
        %v921 = vld [vmem:[%s908 + $0x60] sm:$0xff]
        %v922 = vld [vmem:[%s908 + $0x68] sm:$0xff]
        %v923 = vld [vmem:[%s908 + $0x70] sm:$0xff]
        %v924 = vld [vmem:[%s908 + $0x78] sm:$0xff]
        %v925 = vld [vmem:[%s1 + $0x8] sm:$0x1]
        %v926 = vperm.slane %v925, 0
        %v927 = vmul.f32 %v909, %v926
        %v928 = vmul.f32 %v910, %v926
        %v929 = vmul.f32 %v911, %v926
        %v930 = vmul.f32 %v912, %v926
        %v931 = vmul.f32 %v913, %v926
        %v932 = vmul.f32 %v914, %v926
        %v933 = vmul.f32 %v915, %v926
        %v934 = vmul.f32 %v916, %v926
        %v935 = vmul.f32 %v917, %v926
        %v936 = vmul.f32 %v918, %v926
        %v937 = vmul.f32 %v919, %v926
        %v938 = vmul.f32 %v920, %v926
        %v939 = vmul.f32 %v921, %v926
        %v940 = vmul.f32 %v922, %v926
        %v941 = vmul.f32 %v923, %v926
        %v942 = vmul.f32 %v924, %v926
        %v943 = vadd.f32 %v892, %v927
        %v944 = vadd.f32 %v893, %v928
        %v945 = vadd.f32 %v894, %v929
        %v946 = vadd.f32 %v895, %v930
        %v947 = vadd.f32 %v896, %v931
        %v948 = vadd.f32 %v897, %v932
        %v949 = vadd.f32 %v898, %v933
        %v950 = vadd.f32 %v899, %v934
        %v951 = vadd.f32 %v900, %v935
        %v952 = vadd.f32 %v901, %v936
        %v953 = vadd.f32 %v902, %v937
        %v954 = vadd.f32 %v903, %v938
        %v955 = vadd.f32 %v904, %v939
        %v956 = vadd.f32 %v905, %v940
        %v957 = vadd.f32 %v906, %v941
        %v958 = vadd.f32 %v907, %v942
        %s959 = scalar_lea.vmem [#allocation3], 256
        %v960 = vld [vmem:[%s959] sm:$0xff]
        %v961 = vld [vmem:[%s959 + $0x8] sm:$0xff]
        %v962 = vld [vmem:[%s959 + $0x10] sm:$0xff]
        %v963 = vld [vmem:[%s959 + $0x18] sm:$0xff]
        %v964 = vld [vmem:[%s959 + $0x20] sm:$0xff]
        %v965 = vld [vmem:[%s959 + $0x28] sm:$0xff]
        %v966 = vld [vmem:[%s959 + $0x30] sm:$0xff]
        %v967 = vld [vmem:[%s959 + $0x38] sm:$0xff]
        %v968 = vld [vmem:[%s959 + $0x40] sm:$0xff]
        %v969 = vld [vmem:[%s959 + $0x48] sm:$0xff]
        %v970 = vld [vmem:[%s959 + $0x50] sm:$0xff]
        %v971 = vld [vmem:[%s959 + $0x58] sm:$0xff]
        %v972 = vld [vmem:[%s959 + $0x60] sm:$0xff]
        %v973 = vld [vmem:[%s959 + $0x68] sm:$0xff]
        %v974 = vld [vmem:[%s959 + $0x70] sm:$0xff]
        %v975 = vld [vmem:[%s959 + $0x78] sm:$0xff]
        %v976 = vld [vmem:[%s1 + $0xf] sm:$0x1]
        %v977 = vperm.slane %v976, 0
        %v978 = vmul.f32 %v960, %v977
        %v979 = vmul.f32 %v961, %v977
        %v980 = vmul.f32 %v962, %v977
        %v981 = vmul.f32 %v963, %v977
        %v982 = vmul.f32 %v964, %v977
        %v983 = vmul.f32 %v965, %v977
        %v984 = vmul.f32 %v966, %v977
        %v985 = vmul.f32 %v967, %v977
        %v986 = vmul.f32 %v968, %v977
        %v987 = vmul.f32 %v969, %v977
        %v988 = vmul.f32 %v970, %v977
        %v989 = vmul.f32 %v971, %v977
        %v990 = vmul.f32 %v972, %v977
        %v991 = vmul.f32 %v973, %v977
        %v992 = vmul.f32 %v974, %v977
        %v993 = vmul.f32 %v975, %v977
        %v994 = vadd.f32 %v943, %v978
        %v995 = vadd.f32 %v944, %v979
        %v996 = vadd.f32 %v945, %v980
        %v997 = vadd.f32 %v946, %v981
        %v998 = vadd.f32 %v947, %v982
        %v999 = vadd.f32 %v948, %v983
        %v1000 = vadd.f32 %v949, %v984
        %v1001 = vadd.f32 %v950, %v985
        %v1002 = vadd.f32 %v951, %v986
        %v1003 = vadd.f32 %v952, %v987
        %v1004 = vadd.f32 %v953, %v988
        %v1005 = vadd.f32 %v954, %v989
        %v1006 = vadd.f32 %v955, %v990
        %v1007 = vadd.f32 %v956, %v991
        %v1008 = vadd.f32 %v957, %v992
        %v1009 = vadd.f32 %v958, %v993
        %s1010 = scalar_lea.vmem [#allocation3], 272
        %v1011 = vld [vmem:[%s1010] sm:$0xff]
        %v1012 = vld [vmem:[%s1010 + $0x8] sm:$0xff]
        %v1013 = vld [vmem:[%s1010 + $0x10] sm:$0xff]
        %v1014 = vld [vmem:[%s1010 + $0x18] sm:$0xff]
        %v1015 = vld [vmem:[%s1010 + $0x20] sm:$0xff]
        %v1016 = vld [vmem:[%s1010 + $0x28] sm:$0xff]
        %v1017 = vld [vmem:[%s1010 + $0x30] sm:$0xff]
        %v1018 = vld [vmem:[%s1010 + $0x38] sm:$0xff]
        %v1019 = vld [vmem:[%s1010 + $0x40] sm:$0xff]
        %v1020 = vld [vmem:[%s1010 + $0x48] sm:$0xff]
        %v1021 = vld [vmem:[%s1010 + $0x50] sm:$0xff]
        %v1022 = vld [vmem:[%s1010 + $0x58] sm:$0xff]
        %v1023 = vld [vmem:[%s1010 + $0x60] sm:$0xff]
        %v1024 = vld [vmem:[%s1010 + $0x68] sm:$0xff]
        %v1025 = vld [vmem:[%s1010 + $0x70] sm:$0xff]
        %v1026 = vld [vmem:[%s1010 + $0x78] sm:$0xff]
        %v1027 = vld [vmem:[%s1 + $0x16] sm:$0x1]
        %v1028 = vperm.slane %v1027, 0
        %v1029 = vmul.f32 %v1011, %v1028
        %v1030 = vmul.f32 %v1012, %v1028
        %v1031 = vmul.f32 %v1013, %v1028
        %v1032 = vmul.f32 %v1014, %v1028
        %v1033 = vmul.f32 %v1015, %v1028
        %v1034 = vmul.f32 %v1016, %v1028
        %v1035 = vmul.f32 %v1017, %v1028
        %v1036 = vmul.f32 %v1018, %v1028
        %v1037 = vmul.f32 %v1019, %v1028
        %v1038 = vmul.f32 %v1020, %v1028
        %v1039 = vmul.f32 %v1021, %v1028
        %v1040 = vmul.f32 %v1022, %v1028
        %v1041 = vmul.f32 %v1023, %v1028
        %v1042 = vmul.f32 %v1024, %v1028
        %v1043 = vmul.f32 %v1025, %v1028
        %v1044 = vmul.f32 %v1026, %v1028
        %v1045 = vadd.f32 %v994, %v1029
        %v1046 = vadd.f32 %v995, %v1030
        %v1047 = vadd.f32 %v996, %v1031
        %v1048 = vadd.f32 %v997, %v1032
        %v1049 = vadd.f32 %v998, %v1033
        %v1050 = vadd.f32 %v999, %v1034
        %v1051 = vadd.f32 %v1000, %v1035
        %v1052 = vadd.f32 %v1001, %v1036
        %v1053 = vadd.f32 %v1002, %v1037
        %v1054 = vadd.f32 %v1003, %v1038
        %v1055 = vadd.f32 %v1004, %v1039
        %v1056 = vadd.f32 %v1005, %v1040
        %v1057 = vadd.f32 %v1006, %v1041
        %v1058 = vadd.f32 %v1007, %v1042
        %v1059 = vadd.f32 %v1008, %v1043
        %v1060 = vadd.f32 %v1009, %v1044
        %s1061 = scalar_lea.vmem [#allocation3], 288
        %v1062 = vld [vmem:[%s1061] sm:$0xff]
        %v1063 = vld [vmem:[%s1061 + $0x8] sm:$0xff]
        %v1064 = vld [vmem:[%s1061 + $0x10] sm:$0xff]
        %v1065 = vld [vmem:[%s1061 + $0x18] sm:$0xff]
        %v1066 = vld [vmem:[%s1061 + $0x20] sm:$0xff]
        %v1067 = vld [vmem:[%s1061 + $0x28] sm:$0xff]
        %v1068 = vld [vmem:[%s1061 + $0x30] sm:$0xff]
        %v1069 = vld [vmem:[%s1061 + $0x38] sm:$0xff]
        %v1070 = vld [vmem:[%s1061 + $0x40] sm:$0xff]
        %v1071 = vld [vmem:[%s1061 + $0x48] sm:$0xff]
        %v1072 = vld [vmem:[%s1061 + $0x50] sm:$0xff]
        %v1073 = vld [vmem:[%s1061 + $0x58] sm:$0xff]
        %v1074 = vld [vmem:[%s1061 + $0x60] sm:$0xff]
        %v1075 = vld [vmem:[%s1061 + $0x68] sm:$0xff]
        %v1076 = vld [vmem:[%s1061 + $0x70] sm:$0xff]
        %v1077 = vld [vmem:[%s1061 + $0x78] sm:$0xff]
        %v1078 = vld [vmem:[%s1 + $0x1d] sm:$0x1]
        %v1079 = vperm.slane %v1078, 0
        %v1080 = vmul.f32 %v1062, %v1079
        %v1081 = vmul.f32 %v1063, %v1079
        %v1082 = vmul.f32 %v1064, %v1079
        %v1083 = vmul.f32 %v1065, %v1079
        %v1084 = vmul.f32 %v1066, %v1079
        %v1085 = vmul.f32 %v1067, %v1079
        %v1086 = vmul.f32 %v1068, %v1079
        %v1087 = vmul.f32 %v1069, %v1079
        %v1088 = vmul.f32 %v1070, %v1079
        %v1089 = vmul.f32 %v1071, %v1079
        %v1090 = vmul.f32 %v1072, %v1079
        %v1091 = vmul.f32 %v1073, %v1079
        %v1092 = vmul.f32 %v1074, %v1079
        %v1093 = vmul.f32 %v1075, %v1079
        %v1094 = vmul.f32 %v1076, %v1079
        %v1095 = vmul.f32 %v1077, %v1079
        %v1096 = vadd.f32 %v1045, %v1080
        %v1097 = vadd.f32 %v1046, %v1081
        %v1098 = vadd.f32 %v1047, %v1082
        %v1099 = vadd.f32 %v1048, %v1083
        %v1100 = vadd.f32 %v1049, %v1084
        %v1101 = vadd.f32 %v1050, %v1085
        %v1102 = vadd.f32 %v1051, %v1086
        %v1103 = vadd.f32 %v1052, %v1087
        %v1104 = vadd.f32 %v1053, %v1088
        %v1105 = vadd.f32 %v1054, %v1089
        %v1106 = vadd.f32 %v1055, %v1090
        %v1107 = vadd.f32 %v1056, %v1091
        %v1108 = vadd.f32 %v1057, %v1092
        %v1109 = vadd.f32 %v1058, %v1093
        %v1110 = vadd.f32 %v1059, %v1094
        %v1111 = vadd.f32 %v1060, %v1095
        %s1112 = scalar_lea.vmem [#allocation3], 304
        %v1113 = vld [vmem:[%s1112] sm:$0xff]
        %v1114 = vld [vmem:[%s1112 + $0x8] sm:$0xff]
        %v1115 = vld [vmem:[%s1112 + $0x10] sm:$0xff]
        %v1116 = vld [vmem:[%s1112 + $0x18] sm:$0xff]
        %v1117 = vld [vmem:[%s1112 + $0x20] sm:$0xff]
        %v1118 = vld [vmem:[%s1112 + $0x28] sm:$0xff]
        %v1119 = vld [vmem:[%s1112 + $0x30] sm:$0xff]
        %v1120 = vld [vmem:[%s1112 + $0x38] sm:$0xff]
        %v1121 = vld [vmem:[%s1112 + $0x40] sm:$0xff]
        %v1122 = vld [vmem:[%s1112 + $0x48] sm:$0xff]
        %v1123 = vld [vmem:[%s1112 + $0x50] sm:$0xff]
        %v1124 = vld [vmem:[%s1112 + $0x58] sm:$0xff]
        %v1125 = vld [vmem:[%s1112 + $0x60] sm:$0xff]
        %v1126 = vld [vmem:[%s1112 + $0x68] sm:$0xff]
        %v1127 = vld [vmem:[%s1112 + $0x70] sm:$0xff]
        %v1128 = vld [vmem:[%s1112 + $0x78] sm:$0xff]
        %v1129 = vld [vmem:[%s1 + $0x24] sm:$0x1]
        %v1130 = vperm.slane %v1129, 0
        %v1131 = vmul.f32 %v1113, %v1130
        %v1132 = vmul.f32 %v1114, %v1130
        %v1133 = vmul.f32 %v1115, %v1130
        %v1134 = vmul.f32 %v1116, %v1130
        %v1135 = vmul.f32 %v1117, %v1130
        %v1136 = vmul.f32 %v1118, %v1130
        %v1137 = vmul.f32 %v1119, %v1130
        %v1138 = vmul.f32 %v1120, %v1130
        %v1139 = vmul.f32 %v1121, %v1130
        %v1140 = vmul.f32 %v1122, %v1130
        %v1141 = vmul.f32 %v1123, %v1130
        %v1142 = vmul.f32 %v1124, %v1130
        %v1143 = vmul.f32 %v1125, %v1130
        %v1144 = vmul.f32 %v1126, %v1130
        %v1145 = vmul.f32 %v1127, %v1130
        %v1146 = vmul.f32 %v1128, %v1130
        %v1147 = vadd.f32 %v1096, %v1131
        %v1148 = vadd.f32 %v1097, %v1132
        %v1149 = vadd.f32 %v1098, %v1133
        %v1150 = vadd.f32 %v1099, %v1134
        %v1151 = vadd.f32 %v1100, %v1135
        %v1152 = vadd.f32 %v1101, %v1136
        %v1153 = vadd.f32 %v1102, %v1137
        %v1154 = vadd.f32 %v1103, %v1138
        %v1155 = vadd.f32 %v1104, %v1139
        %v1156 = vadd.f32 %v1105, %v1140
        %v1157 = vadd.f32 %v1106, %v1141
        %v1158 = vadd.f32 %v1107, %v1142
        %v1159 = vadd.f32 %v1108, %v1143
        %v1160 = vadd.f32 %v1109, %v1144
        %v1161 = vadd.f32 %v1110, %v1145
        %v1162 = vadd.f32 %v1111, %v1146
        %s1163 = scalar_lea.vmem [#allocation3], 320
        %v1164 = vld [vmem:[%s1163] sm:$0xff]
        %v1165 = vld [vmem:[%s1163 + $0x8] sm:$0xff]
        %v1166 = vld [vmem:[%s1163 + $0x10] sm:$0xff]
        %v1167 = vld [vmem:[%s1163 + $0x18] sm:$0xff]
        %v1168 = vld [vmem:[%s1163 + $0x20] sm:$0xff]
        %v1169 = vld [vmem:[%s1163 + $0x28] sm:$0xff]
        %v1170 = vld [vmem:[%s1163 + $0x30] sm:$0xff]
        %v1171 = vld [vmem:[%s1163 + $0x38] sm:$0xff]
        %v1172 = vld [vmem:[%s1163 + $0x40] sm:$0xff]
        %v1173 = vld [vmem:[%s1163 + $0x48] sm:$0xff]
        %v1174 = vld [vmem:[%s1163 + $0x50] sm:$0xff]
        %v1175 = vld [vmem:[%s1163 + $0x58] sm:$0xff]
        %v1176 = vld [vmem:[%s1163 + $0x60] sm:$0xff]
        %v1177 = vld [vmem:[%s1163 + $0x68] sm:$0xff]
        %v1178 = vld [vmem:[%s1163 + $0x70] sm:$0xff]
        %v1179 = vld [vmem:[%s1163 + $0x78] sm:$0xff]
        %v1180 = vld [vmem:[%s1 + $0x2b] sm:$0x1]
        %v1181 = vperm.slane %v1180, 0
        %v1182 = vmul.f32 %v1164, %v1181
        %v1183 = vmul.f32 %v1165, %v1181
        %v1184 = vmul.f32 %v1166, %v1181
        %v1185 = vmul.f32 %v1167, %v1181
        %v1186 = vmul.f32 %v1168, %v1181
        %v1187 = vmul.f32 %v1169, %v1181
        %v1188 = vmul.f32 %v1170, %v1181
        %v1189 = vmul.f32 %v1171, %v1181
        %v1190 = vmul.f32 %v1172, %v1181
        %v1191 = vmul.f32 %v1173, %v1181
        %v1192 = vmul.f32 %v1174, %v1181
        %v1193 = vmul.f32 %v1175, %v1181
        %v1194 = vmul.f32 %v1176, %v1181
        %v1195 = vmul.f32 %v1177, %v1181
        %v1196 = vmul.f32 %v1178, %v1181
        %v1197 = vmul.f32 %v1179, %v1181
        %v1198 = vadd.f32 %v1147, %v1182
        %v1199 = vadd.f32 %v1148, %v1183
        %v1200 = vadd.f32 %v1149, %v1184
        %v1201 = vadd.f32 %v1150, %v1185
        %v1202 = vadd.f32 %v1151, %v1186
        %v1203 = vadd.f32 %v1152, %v1187
        %v1204 = vadd.f32 %v1153, %v1188
        %v1205 = vadd.f32 %v1154, %v1189
        %v1206 = vadd.f32 %v1155, %v1190
        %v1207 = vadd.f32 %v1156, %v1191
        %v1208 = vadd.f32 %v1157, %v1192
        %v1209 = vadd.f32 %v1158, %v1193
        %v1210 = vadd.f32 %v1159, %v1194
        %v1211 = vadd.f32 %v1160, %v1195
        %v1212 = vadd.f32 %v1161, %v1196
        %v1213 = vadd.f32 %v1162, %v1197
        %v1214 = vld [vmem:[%s387 + $0x7] sm:$0xff]
        %v1215 = vld [vmem:[%s387 + $0xf] sm:$0xff]
        %v1216 = vld [vmem:[%s387 + $0x27] sm:$0xff]
        %v1217 = vld [vmem:[%s387 + $0x2f] sm:$0xff]
        %v1218 = vld [vmem:[%s387 + $0x47] sm:$0xff]
        %v1219 = vld [vmem:[%s387 + $0x4f] sm:$0xff]
        %v1220 = vld [vmem:[%s387 + $0x67] sm:$0xff]
        %v1221 = vld [vmem:[%s387 + $0x6f] sm:$0xff]
        %v1222 = vld [vmem:[%s387 + $0x87] sm:$0xff]
        %v1223 = vld [vmem:[%s387 + $0x8f] sm:$0xff]
        %v1224 = vld [vmem:[%s387 + $0xa7] sm:$0xff]
        %v1225 = vld [vmem:[%s387 + $0xaf] sm:$0xff]
        %v1226 = vld [vmem:[%s387 + $0xc7] sm:$0xff]
        %v1227 = vld [vmem:[%s387 + $0xcf] sm:$0xff]
        %v1228 = vld [vmem:[%s387 + $0xe7] sm:$0xff]
        %v1229 = vld [vmem:[%s387 + $0xef] sm:$0xff]
        %v1230 = vld [vmem:[%s387 + $0x107] sm:$0xff]
        %v1231 = vld [vmem:[%s387 + $0x10f] sm:$0xff]
        %v1232 = vld [vmem:[%s387 + $0x127] sm:$0xff]
        %v1233 = vld [vmem:[%s387 + $0x12f] sm:$0xff]
        %v1234 = vld [vmem:[%s387 + $0x147] sm:$0xff]
        %v1235 = vld [vmem:[%s387 + $0x14f] sm:$0xff]
        %v1236 = vld [vmem:[%s387 + $0x167] sm:$0xff]
        %v1237 = vld [vmem:[%s387 + $0x16f] sm:$0xff]
        %v1238 = vld [vmem:[%s387 + $0x187] sm:$0xff]
        %v1239 = vld [vmem:[%s387 + $0x18f] sm:$0xff]
        %v1240 = vld [vmem:[%s387 + $0x1a7] sm:$0xff]
        %v1241 = vld [vmem:[%s387 + $0x1af] sm:$0xff]
        %1242 = vst.msk [vmem:[#allocation3] sm:$0xff] %vm253, %v1214
        %1243 = vst.msk [vmem:[#allocation3 + $0x8] sm:$0xff] %vm253, %v1215
        %1244 = vst.msk [vmem:[#allocation3 + $0x10] sm:$0xff] %vm253, %v1216
        %1245 = vst.msk [vmem:[#allocation3 + $0x18] sm:$0xff] %vm253, %v1217
        %1246 = vst.msk [vmem:[#allocation3 + $0x20] sm:$0xff] %vm253, %v1218
        %1247 = vst.msk [vmem:[#allocation3 + $0x28] sm:$0xff] %vm253, %v1219
        %1248 = vst.msk [vmem:[#allocation3 + $0x30] sm:$0xff] %vm253, %v1220
        %1249 = vst.msk [vmem:[#allocation3 + $0x38] sm:$0xff] %vm253, %v1221
        %1250 = vst.msk [vmem:[#allocation3 + $0x40] sm:$0xff] %vm253, %v1222
        %1251 = vst.msk [vmem:[#allocation3 + $0x48] sm:$0xff] %vm253, %v1223
        %1252 = vst.msk [vmem:[#allocation3 + $0x50] sm:$0xff] %vm253, %v1224
        %1253 = vst.msk [vmem:[#allocation3 + $0x58] sm:$0xff] %vm253, %v1225
        %1254 = vst.msk [vmem:[#allocation3 + $0x60] sm:$0xff] %vm253, %v1226
        %1255 = vst.msk [vmem:[#allocation3 + $0x68] sm:$0xff] %vm253, %v1227
        %1256 = vst.msk [vmem:[#allocation3 + $0x70] sm:$0xff] %vm253, %v1228
        %1257 = vst.msk [vmem:[#allocation3 + $0x78] sm:$0xff] %vm253, %v1229
        %1258 = vst.msk [vmem:[#allocation3 + $0x80] sm:$0xff] %vm253, %v1230
        %1259 = vst.msk [vmem:[#allocation3 + $0x88] sm:$0xff] %vm253, %v1231
        %1260 = vst.msk [vmem:[#allocation3 + $0x90] sm:$0xff] %vm253, %v1232
        %1261 = vst.msk [vmem:[#allocation3 + $0x98] sm:$0xff] %vm253, %v1233
        %1262 = vst.msk [vmem:[#allocation3 + $0xa0] sm:$0xff] %vm253, %v1234
        %1263 = vst.msk [vmem:[#allocation3 + $0xa8] sm:$0xff] %vm253, %v1235
        %1264 = vst.msk [vmem:[#allocation3 + $0xb0] sm:$0xff] %vm253, %v1236
        %1265 = vst.msk [vmem:[#allocation3 + $0xb8] sm:$0xff] %vm253, %v1237
        %1266 = vst.msk [vmem:[#allocation3 + $0xc0] sm:$0xff] %vm253, %v1238
        %1267 = vst.msk [vmem:[#allocation3 + $0xc8] sm:$0xff] %vm253, %v1239
        %1268 = vst.msk [vmem:[#allocation3 + $0xd0] sm:$0xff] %vm253, %v1240
        %1269 = vst.msk [vmem:[#allocation3 + $0xd8] sm:$0xff] %vm253, %v1241
        %v1270 = vld [vmem:[#allocation3] sm:$0xff]
        %v1271 = vld [vmem:[#allocation3 + $0x8] sm:$0xff]
        %v1272 = vld [vmem:[#allocation3 + $0x10] sm:$0xff]
        %v1273 = vld [vmem:[#allocation3 + $0x18] sm:$0xff]
        %v1274 = vld [vmem:[#allocation3 + $0x20] sm:$0xff]
        %v1275 = vld [vmem:[#allocation3 + $0x28] sm:$0xff]
        %v1276 = vld [vmem:[#allocation3 + $0x30] sm:$0xff]
        %v1277 = vld [vmem:[#allocation3 + $0x38] sm:$0xff]
        %v1278 = vld [vmem:[#allocation3 + $0x40] sm:$0xff]
        %v1279 = vld [vmem:[#allocation3 + $0x48] sm:$0xff]
        %v1280 = vld [vmem:[#allocation3 + $0x50] sm:$0xff]
        %v1281 = vld [vmem:[#allocation3 + $0x58] sm:$0xff]
        %v1282 = vld [vmem:[#allocation3 + $0x60] sm:$0xff]
        %v1283 = vld [vmem:[#allocation3 + $0x68] sm:$0xff]
        %v1284 = vld [vmem:[#allocation3 + $0x70] sm:$0xff]
        %v1285 = vld [vmem:[#allocation3 + $0x78] sm:$0xff]
        %v1286 = vld [vmem:[%s1 + $0x2] sm:$0x1]
        %v1287 = vperm.slane %v1286, 0
        %v1288 = vmul.f32 %v1270, %v1287
        %v1289 = vmul.f32 %v1271, %v1287
        %v1290 = vmul.f32 %v1272, %v1287
        %v1291 = vmul.f32 %v1273, %v1287
        %v1292 = vmul.f32 %v1274, %v1287
        %v1293 = vmul.f32 %v1275, %v1287
        %v1294 = vmul.f32 %v1276, %v1287
        %v1295 = vmul.f32 %v1277, %v1287
        %v1296 = vmul.f32 %v1278, %v1287
        %v1297 = vmul.f32 %v1279, %v1287
        %v1298 = vmul.f32 %v1280, %v1287
        %v1299 = vmul.f32 %v1281, %v1287
        %v1300 = vmul.f32 %v1282, %v1287
        %v1301 = vmul.f32 %v1283, %v1287
        %v1302 = vmul.f32 %v1284, %v1287
        %v1303 = vmul.f32 %v1285, %v1287
        %v1304 = vadd.f32 %v1198, %v1288
        %v1305 = vadd.f32 %v1199, %v1289
        %v1306 = vadd.f32 %v1200, %v1290
        %v1307 = vadd.f32 %v1201, %v1291
        %v1308 = vadd.f32 %v1202, %v1292
        %v1309 = vadd.f32 %v1203, %v1293
        %v1310 = vadd.f32 %v1204, %v1294
        %v1311 = vadd.f32 %v1205, %v1295
        %v1312 = vadd.f32 %v1206, %v1296
        %v1313 = vadd.f32 %v1207, %v1297
        %v1314 = vadd.f32 %v1208, %v1298
        %v1315 = vadd.f32 %v1209, %v1299
        %v1316 = vadd.f32 %v1210, %v1300
        %v1317 = vadd.f32 %v1211, %v1301
        %v1318 = vadd.f32 %v1212, %v1302
        %v1319 = vadd.f32 %v1213, %v1303
        %v1320 = vld [vmem:[%s495] sm:$0xff]
        %v1321 = vld [vmem:[%s495 + $0x8] sm:$0xff]
        %v1322 = vld [vmem:[%s495 + $0x10] sm:$0xff]
        %v1323 = vld [vmem:[%s495 + $0x18] sm:$0xff]
        %v1324 = vld [vmem:[%s495 + $0x20] sm:$0xff]
        %v1325 = vld [vmem:[%s495 + $0x28] sm:$0xff]
        %v1326 = vld [vmem:[%s495 + $0x30] sm:$0xff]
        %v1327 = vld [vmem:[%s495 + $0x38] sm:$0xff]
        %v1328 = vld [vmem:[%s495 + $0x40] sm:$0xff]
        %v1329 = vld [vmem:[%s495 + $0x48] sm:$0xff]
        %v1330 = vld [vmem:[%s495 + $0x50] sm:$0xff]
        %v1331 = vld [vmem:[%s495 + $0x58] sm:$0xff]
        %v1332 = vld [vmem:[%s495 + $0x60] sm:$0xff]
        %v1333 = vld [vmem:[%s495 + $0x68] sm:$0xff]
        %v1334 = vld [vmem:[%s495 + $0x70] sm:$0xff]
        %v1335 = vld [vmem:[%s495 + $0x78] sm:$0xff]
        %v1336 = vld [vmem:[%s1 + $0x9] sm:$0x1]
        %v1337 = vperm.slane %v1336, 0
        %v1338 = vmul.f32 %v1320, %v1337
        %v1339 = vmul.f32 %v1321, %v1337
        %v1340 = vmul.f32 %v1322, %v1337
        %v1341 = vmul.f32 %v1323, %v1337
        %v1342 = vmul.f32 %v1324, %v1337
        %v1343 = vmul.f32 %v1325, %v1337
        %v1344 = vmul.f32 %v1326, %v1337
        %v1345 = vmul.f32 %v1327, %v1337
        %v1346 = vmul.f32 %v1328, %v1337
        %v1347 = vmul.f32 %v1329, %v1337
        %v1348 = vmul.f32 %v1330, %v1337
        %v1349 = vmul.f32 %v1331, %v1337
        %v1350 = vmul.f32 %v1332, %v1337
        %v1351 = vmul.f32 %v1333, %v1337
        %v1352 = vmul.f32 %v1334, %v1337
        %v1353 = vmul.f32 %v1335, %v1337
        %v1354 = vadd.f32 %v1304, %v1338
        %v1355 = vadd.f32 %v1305, %v1339
        %v1356 = vadd.f32 %v1306, %v1340
        %v1357 = vadd.f32 %v1307, %v1341
        %v1358 = vadd.f32 %v1308, %v1342
        %v1359 = vadd.f32 %v1309, %v1343
        %v1360 = vadd.f32 %v1310, %v1344
        %v1361 = vadd.f32 %v1311, %v1345
        %v1362 = vadd.f32 %v1312, %v1346
        %v1363 = vadd.f32 %v1313, %v1347
        %v1364 = vadd.f32 %v1314, %v1348
        %v1365 = vadd.f32 %v1315, %v1349
        %v1366 = vadd.f32 %v1316, %v1350
        %v1367 = vadd.f32 %v1317, %v1351
        %v1368 = vadd.f32 %v1318, %v1352
        %v1369 = vadd.f32 %v1319, %v1353
        %v1370 = vld [vmem:[%s546] sm:$0xff]
        %v1371 = vld [vmem:[%s546 + $0x8] sm:$0xff]
        %v1372 = vld [vmem:[%s546 + $0x10] sm:$0xff]
        %v1373 = vld [vmem:[%s546 + $0x18] sm:$0xff]
        %v1374 = vld [vmem:[%s546 + $0x20] sm:$0xff]
        %v1375 = vld [vmem:[%s546 + $0x28] sm:$0xff]
        %v1376 = vld [vmem:[%s546 + $0x30] sm:$0xff]
        %v1377 = vld [vmem:[%s546 + $0x38] sm:$0xff]
        %v1378 = vld [vmem:[%s546 + $0x40] sm:$0xff]
        %v1379 = vld [vmem:[%s546 + $0x48] sm:$0xff]
        %v1380 = vld [vmem:[%s546 + $0x50] sm:$0xff]
        %v1381 = vld [vmem:[%s546 + $0x58] sm:$0xff]
        %v1382 = vld [vmem:[%s546 + $0x60] sm:$0xff]
        %v1383 = vld [vmem:[%s546 + $0x68] sm:$0xff]
        %v1384 = vld [vmem:[%s546 + $0x70] sm:$0xff]
        %v1385 = vld [vmem:[%s546 + $0x78] sm:$0xff]
        %v1386 = vld [vmem:[%s1 + $0x10] sm:$0x1]
        %v1387 = vperm.slane %v1386, 0
        %v1388 = vmul.f32 %v1370, %v1387
        %v1389 = vmul.f32 %v1371, %v1387
        %v1390 = vmul.f32 %v1372, %v1387
        %v1391 = vmul.f32 %v1373, %v1387
        %v1392 = vmul.f32 %v1374, %v1387
        %v1393 = vmul.f32 %v1375, %v1387
        %v1394 = vmul.f32 %v1376, %v1387
        %v1395 = vmul.f32 %v1377, %v1387
        %v1396 = vmul.f32 %v1378, %v1387
        %v1397 = vmul.f32 %v1379, %v1387
        %v1398 = vmul.f32 %v1380, %v1387
        %v1399 = vmul.f32 %v1381, %v1387
        %v1400 = vmul.f32 %v1382, %v1387
        %v1401 = vmul.f32 %v1383, %v1387
        %v1402 = vmul.f32 %v1384, %v1387
        %v1403 = vmul.f32 %v1385, %v1387
        %v1404 = vadd.f32 %v1354, %v1388
        %v1405 = vadd.f32 %v1355, %v1389
        %v1406 = vadd.f32 %v1356, %v1390
        %v1407 = vadd.f32 %v1357, %v1391
        %v1408 = vadd.f32 %v1358, %v1392
        %v1409 = vadd.f32 %v1359, %v1393
        %v1410 = vadd.f32 %v1360, %v1394
        %v1411 = vadd.f32 %v1361, %v1395
        %v1412 = vadd.f32 %v1362, %v1396
        %v1413 = vadd.f32 %v1363, %v1397
        %v1414 = vadd.f32 %v1364, %v1398
        %v1415 = vadd.f32 %v1365, %v1399
        %v1416 = vadd.f32 %v1366, %v1400
        %v1417 = vadd.f32 %v1367, %v1401
        %v1418 = vadd.f32 %v1368, %v1402
        %v1419 = vadd.f32 %v1369, %v1403
        %v1420 = vld [vmem:[%s597] sm:$0xff]
        %v1421 = vld [vmem:[%s597 + $0x8] sm:$0xff]
        %v1422 = vld [vmem:[%s597 + $0x10] sm:$0xff]
        %v1423 = vld [vmem:[%s597 + $0x18] sm:$0xff]
        %v1424 = vld [vmem:[%s597 + $0x20] sm:$0xff]
        %v1425 = vld [vmem:[%s597 + $0x28] sm:$0xff]
        %v1426 = vld [vmem:[%s597 + $0x30] sm:$0xff]
        %v1427 = vld [vmem:[%s597 + $0x38] sm:$0xff]
        %v1428 = vld [vmem:[%s597 + $0x40] sm:$0xff]
        %v1429 = vld [vmem:[%s597 + $0x48] sm:$0xff]
        %v1430 = vld [vmem:[%s597 + $0x50] sm:$0xff]
        %v1431 = vld [vmem:[%s597 + $0x58] sm:$0xff]
        %v1432 = vld [vmem:[%s597 + $0x60] sm:$0xff]
        %v1433 = vld [vmem:[%s597 + $0x68] sm:$0xff]
        %v1434 = vld [vmem:[%s597 + $0x70] sm:$0xff]
        %v1435 = vld [vmem:[%s597 + $0x78] sm:$0xff]
        %v1436 = vld [vmem:[%s1 + $0x17] sm:$0x1]
        %v1437 = vperm.slane %v1436, 0
        %v1438 = vmul.f32 %v1420, %v1437
        %v1439 = vmul.f32 %v1421, %v1437
        %v1440 = vmul.f32 %v1422, %v1437
        %v1441 = vmul.f32 %v1423, %v1437
        %v1442 = vmul.f32 %v1424, %v1437
        %v1443 = vmul.f32 %v1425, %v1437
        %v1444 = vmul.f32 %v1426, %v1437
        %v1445 = vmul.f32 %v1427, %v1437
        %v1446 = vmul.f32 %v1428, %v1437
        %v1447 = vmul.f32 %v1429, %v1437
        %v1448 = vmul.f32 %v1430, %v1437
        %v1449 = vmul.f32 %v1431, %v1437
        %v1450 = vmul.f32 %v1432, %v1437
        %v1451 = vmul.f32 %v1433, %v1437
        %v1452 = vmul.f32 %v1434, %v1437
        %v1453 = vmul.f32 %v1435, %v1437
        %v1454 = vadd.f32 %v1404, %v1438
        %v1455 = vadd.f32 %v1405, %v1439
        %v1456 = vadd.f32 %v1406, %v1440
        %v1457 = vadd.f32 %v1407, %v1441
        %v1458 = vadd.f32 %v1408, %v1442
        %v1459 = vadd.f32 %v1409, %v1443
        %v1460 = vadd.f32 %v1410, %v1444
        %v1461 = vadd.f32 %v1411, %v1445
        %v1462 = vadd.f32 %v1412, %v1446
        %v1463 = vadd.f32 %v1413, %v1447
        %v1464 = vadd.f32 %v1414, %v1448
        %v1465 = vadd.f32 %v1415, %v1449
        %v1466 = vadd.f32 %v1416, %v1450
        %v1467 = vadd.f32 %v1417, %v1451
        %v1468 = vadd.f32 %v1418, %v1452
        %v1469 = vadd.f32 %v1419, %v1453
        %v1470 = vld [vmem:[%s648] sm:$0xff]
        %v1471 = vld [vmem:[%s648 + $0x8] sm:$0xff]
        %v1472 = vld [vmem:[%s648 + $0x10] sm:$0xff]
        %v1473 = vld [vmem:[%s648 + $0x18] sm:$0xff]
        %v1474 = vld [vmem:[%s648 + $0x20] sm:$0xff]
        %v1475 = vld [vmem:[%s648 + $0x28] sm:$0xff]
        %v1476 = vld [vmem:[%s648 + $0x30] sm:$0xff]
        %v1477 = vld [vmem:[%s648 + $0x38] sm:$0xff]
        %v1478 = vld [vmem:[%s648 + $0x40] sm:$0xff]
        %v1479 = vld [vmem:[%s648 + $0x48] sm:$0xff]
        %v1480 = vld [vmem:[%s648 + $0x50] sm:$0xff]
        %v1481 = vld [vmem:[%s648 + $0x58] sm:$0xff]
        %v1482 = vld [vmem:[%s648 + $0x60] sm:$0xff]
        %v1483 = vld [vmem:[%s648 + $0x68] sm:$0xff]
        %v1484 = vld [vmem:[%s648 + $0x70] sm:$0xff]
        %v1485 = vld [vmem:[%s648 + $0x78] sm:$0xff]
        %v1486 = vld [vmem:[%s1 + $0x1e] sm:$0x1]
        %v1487 = vperm.slane %v1486, 0
        %v1488 = vmul.f32 %v1470, %v1487
        %v1489 = vmul.f32 %v1471, %v1487
        %v1490 = vmul.f32 %v1472, %v1487
        %v1491 = vmul.f32 %v1473, %v1487
        %v1492 = vmul.f32 %v1474, %v1487
        %v1493 = vmul.f32 %v1475, %v1487
        %v1494 = vmul.f32 %v1476, %v1487
        %v1495 = vmul.f32 %v1477, %v1487
        %v1496 = vmul.f32 %v1478, %v1487
        %v1497 = vmul.f32 %v1479, %v1487
        %v1498 = vmul.f32 %v1480, %v1487
        %v1499 = vmul.f32 %v1481, %v1487
        %v1500 = vmul.f32 %v1482, %v1487
        %v1501 = vmul.f32 %v1483, %v1487
        %v1502 = vmul.f32 %v1484, %v1487
        %v1503 = vmul.f32 %v1485, %v1487
        %v1504 = vadd.f32 %v1454, %v1488
        %v1505 = vadd.f32 %v1455, %v1489
        %v1506 = vadd.f32 %v1456, %v1490
        %v1507 = vadd.f32 %v1457, %v1491
        %v1508 = vadd.f32 %v1458, %v1492
        %v1509 = vadd.f32 %v1459, %v1493
        %v1510 = vadd.f32 %v1460, %v1494
        %v1511 = vadd.f32 %v1461, %v1495
        %v1512 = vadd.f32 %v1462, %v1496
        %v1513 = vadd.f32 %v1463, %v1497
        %v1514 = vadd.f32 %v1464, %v1498
        %v1515 = vadd.f32 %v1465, %v1499
        %v1516 = vadd.f32 %v1466, %v1500
        %v1517 = vadd.f32 %v1467, %v1501
        %v1518 = vadd.f32 %v1468, %v1502
        %v1519 = vadd.f32 %v1469, %v1503
        %v1520 = vld [vmem:[%s699] sm:$0xff]
        %v1521 = vld [vmem:[%s699 + $0x8] sm:$0xff]
        %v1522 = vld [vmem:[%s699 + $0x10] sm:$0xff]
        %v1523 = vld [vmem:[%s699 + $0x18] sm:$0xff]
        %v1524 = vld [vmem:[%s699 + $0x20] sm:$0xff]
        %v1525 = vld [vmem:[%s699 + $0x28] sm:$0xff]
        %v1526 = vld [vmem:[%s699 + $0x30] sm:$0xff]
        %v1527 = vld [vmem:[%s699 + $0x38] sm:$0xff]
        %v1528 = vld [vmem:[%s699 + $0x40] sm:$0xff]
        %v1529 = vld [vmem:[%s699 + $0x48] sm:$0xff]
        %v1530 = vld [vmem:[%s699 + $0x50] sm:$0xff]
        %v1531 = vld [vmem:[%s699 + $0x58] sm:$0xff]
        %v1532 = vld [vmem:[%s699 + $0x60] sm:$0xff]
        %v1533 = vld [vmem:[%s699 + $0x68] sm:$0xff]
        %v1534 = vld [vmem:[%s699 + $0x70] sm:$0xff]
        %v1535 = vld [vmem:[%s699 + $0x78] sm:$0xff]
        %v1536 = vld [vmem:[%s1 + $0x25] sm:$0x1]
        %v1537 = vperm.slane %v1536, 0
        %v1538 = vmul.f32 %v1520, %v1537
        %v1539 = vmul.f32 %v1521, %v1537
        %v1540 = vmul.f32 %v1522, %v1537
        %v1541 = vmul.f32 %v1523, %v1537
        %v1542 = vmul.f32 %v1524, %v1537
        %v1543 = vmul.f32 %v1525, %v1537
        %v1544 = vmul.f32 %v1526, %v1537
        %v1545 = vmul.f32 %v1527, %v1537
        %v1546 = vmul.f32 %v1528, %v1537
        %v1547 = vmul.f32 %v1529, %v1537
        %v1548 = vmul.f32 %v1530, %v1537
        %v1549 = vmul.f32 %v1531, %v1537
        %v1550 = vmul.f32 %v1532, %v1537
        %v1551 = vmul.f32 %v1533, %v1537
        %v1552 = vmul.f32 %v1534, %v1537
        %v1553 = vmul.f32 %v1535, %v1537
        %v1554 = vadd.f32 %v1504, %v1538
        %v1555 = vadd.f32 %v1505, %v1539
        %v1556 = vadd.f32 %v1506, %v1540
        %v1557 = vadd.f32 %v1507, %v1541
        %v1558 = vadd.f32 %v1508, %v1542
        %v1559 = vadd.f32 %v1509, %v1543
        %v1560 = vadd.f32 %v1510, %v1544
        %v1561 = vadd.f32 %v1511, %v1545
        %v1562 = vadd.f32 %v1512, %v1546
        %v1563 = vadd.f32 %v1513, %v1547
        %v1564 = vadd.f32 %v1514, %v1548
        %v1565 = vadd.f32 %v1515, %v1549
        %v1566 = vadd.f32 %v1516, %v1550
        %v1567 = vadd.f32 %v1517, %v1551
        %v1568 = vadd.f32 %v1518, %v1552
        %v1569 = vadd.f32 %v1519, %v1553
        %v1570 = vld [vmem:[%s750] sm:$0xff]
        %v1571 = vld [vmem:[%s750 + $0x8] sm:$0xff]
        %v1572 = vld [vmem:[%s750 + $0x10] sm:$0xff]
        %v1573 = vld [vmem:[%s750 + $0x18] sm:$0xff]
        %v1574 = vld [vmem:[%s750 + $0x20] sm:$0xff]
        %v1575 = vld [vmem:[%s750 + $0x28] sm:$0xff]
        %v1576 = vld [vmem:[%s750 + $0x30] sm:$0xff]
        %v1577 = vld [vmem:[%s750 + $0x38] sm:$0xff]
        %v1578 = vld [vmem:[%s750 + $0x40] sm:$0xff]
        %v1579 = vld [vmem:[%s750 + $0x48] sm:$0xff]
        %v1580 = vld [vmem:[%s750 + $0x50] sm:$0xff]
        %v1581 = vld [vmem:[%s750 + $0x58] sm:$0xff]
        %v1582 = vld [vmem:[%s750 + $0x60] sm:$0xff]
        %v1583 = vld [vmem:[%s750 + $0x68] sm:$0xff]
        %v1584 = vld [vmem:[%s750 + $0x70] sm:$0xff]
        %v1585 = vld [vmem:[%s750 + $0x78] sm:$0xff]
        %v1586 = vld [vmem:[%s1 + $0x2c] sm:$0x1]
        %v1587 = vperm.slane %v1586, 0
        %v1588 = vmul.f32 %v1570, %v1587
        %v1589 = vmul.f32 %v1571, %v1587
        %v1590 = vmul.f32 %v1572, %v1587
        %v1591 = vmul.f32 %v1573, %v1587
        %v1592 = vmul.f32 %v1574, %v1587
        %v1593 = vmul.f32 %v1575, %v1587
        %v1594 = vmul.f32 %v1576, %v1587
        %v1595 = vmul.f32 %v1577, %v1587
        %v1596 = vmul.f32 %v1578, %v1587
        %v1597 = vmul.f32 %v1579, %v1587
        %v1598 = vmul.f32 %v1580, %v1587
        %v1599 = vmul.f32 %v1581, %v1587
        %v1600 = vmul.f32 %v1582, %v1587
        %v1601 = vmul.f32 %v1583, %v1587
        %v1602 = vmul.f32 %v1584, %v1587
        %v1603 = vmul.f32 %v1585, %v1587
        %v1604 = vadd.f32 %v1554, %v1588
        %v1605 = vadd.f32 %v1555, %v1589
        %v1606 = vadd.f32 %v1556, %v1590
        %v1607 = vadd.f32 %v1557, %v1591
        %v1608 = vadd.f32 %v1558, %v1592
        %v1609 = vadd.f32 %v1559, %v1593
        %v1610 = vadd.f32 %v1560, %v1594
        %v1611 = vadd.f32 %v1561, %v1595
        %v1612 = vadd.f32 %v1562, %v1596
        %v1613 = vadd.f32 %v1563, %v1597
        %v1614 = vadd.f32 %v1564, %v1598
        %v1615 = vadd.f32 %v1565, %v1599
        %v1616 = vadd.f32 %v1566, %v1600
        %v1617 = vadd.f32 %v1567, %v1601
        %v1618 = vadd.f32 %v1568, %v1602
        %v1619 = vadd.f32 %v1569, %v1603
        %v1620 = vld [vmem:[%s387 + $0x8] sm:$0xff]
        %v1621 = vld [vmem:[%s387 + $0x10] sm:$0xff]
        %v1622 = vld [vmem:[%s387 + $0x28] sm:$0xff]
        %v1623 = vld [vmem:[%s387 + $0x30] sm:$0xff]
        %v1624 = vld [vmem:[%s387 + $0x48] sm:$0xff]
        %v1625 = vld [vmem:[%s387 + $0x50] sm:$0xff]
        %v1626 = vld [vmem:[%s387 + $0x68] sm:$0xff]
        %v1627 = vld [vmem:[%s387 + $0x70] sm:$0xff]
        %v1628 = vld [vmem:[%s387 + $0x88] sm:$0xff]
        %v1629 = vld [vmem:[%s387 + $0x90] sm:$0xff]
        %v1630 = vld [vmem:[%s387 + $0xa8] sm:$0xff]
        %v1631 = vld [vmem:[%s387 + $0xb0] sm:$0xff]
        %v1632 = vld [vmem:[%s387 + $0xc8] sm:$0xff]
        %v1633 = vld [vmem:[%s387 + $0xd0] sm:$0xff]
        %v1634 = vld [vmem:[%s387 + $0xe8] sm:$0xff]
        %v1635 = vld [vmem:[%s387 + $0xf0] sm:$0xff]
        %v1636 = vld [vmem:[%s387 + $0x108] sm:$0xff]
        %v1637 = vld [vmem:[%s387 + $0x110] sm:$0xff]
        %v1638 = vld [vmem:[%s387 + $0x128] sm:$0xff]
        %v1639 = vld [vmem:[%s387 + $0x130] sm:$0xff]
        %v1640 = vld [vmem:[%s387 + $0x148] sm:$0xff]
        %v1641 = vld [vmem:[%s387 + $0x150] sm:$0xff]
        %v1642 = vld [vmem:[%s387 + $0x168] sm:$0xff]
        %v1643 = vld [vmem:[%s387 + $0x170] sm:$0xff]
        %v1644 = vld [vmem:[%s387 + $0x188] sm:$0xff]
        %v1645 = vld [vmem:[%s387 + $0x190] sm:$0xff]
        %v1646 = vld [vmem:[%s387 + $0x1a8] sm:$0xff]
        %v1647 = vld [vmem:[%s387 + $0x1b0] sm:$0xff]
        %1648 = vst.msk [vmem:[%s829] sm:$0xff] %vm253, %v1620
        %1649 = vst.msk [vmem:[%s829 + $0x8] sm:$0xff] %vm253, %v1621
        %1650 = vst.msk [vmem:[%s829 + $0x10] sm:$0xff] %vm253, %v1622
        %1651 = vst.msk [vmem:[%s829 + $0x18] sm:$0xff] %vm253, %v1623
        %1652 = vst.msk [vmem:[%s829 + $0x20] sm:$0xff] %vm253, %v1624
        %1653 = vst.msk [vmem:[%s829 + $0x28] sm:$0xff] %vm253, %v1625
        %1654 = vst.msk [vmem:[%s829 + $0x30] sm:$0xff] %vm253, %v1626
        %1655 = vst.msk [vmem:[%s829 + $0x38] sm:$0xff] %vm253, %v1627
        %1656 = vst.msk [vmem:[%s829 + $0x40] sm:$0xff] %vm253, %v1628
        %1657 = vst.msk [vmem:[%s829 + $0x48] sm:$0xff] %vm253, %v1629
        %1658 = vst.msk [vmem:[%s829 + $0x50] sm:$0xff] %vm253, %v1630
        %1659 = vst.msk [vmem:[%s829 + $0x58] sm:$0xff] %vm253, %v1631
        %1660 = vst.msk [vmem:[%s829 + $0x60] sm:$0xff] %vm253, %v1632
        %1661 = vst.msk [vmem:[%s829 + $0x68] sm:$0xff] %vm253, %v1633
        %1662 = vst.msk [vmem:[%s829 + $0x70] sm:$0xff] %vm253, %v1634
        %1663 = vst.msk [vmem:[%s829 + $0x78] sm:$0xff] %vm253, %v1635
        %1664 = vst.msk [vmem:[%s829 + $0x80] sm:$0xff] %vm253, %v1636
        %1665 = vst.msk [vmem:[%s829 + $0x88] sm:$0xff] %vm253, %v1637
        %1666 = vst.msk [vmem:[%s829 + $0x90] sm:$0xff] %vm253, %v1638
        %1667 = vst.msk [vmem:[%s829 + $0x98] sm:$0xff] %vm253, %v1639
        %1668 = vst.msk [vmem:[%s829 + $0xa0] sm:$0xff] %vm253, %v1640
        %1669 = vst.msk [vmem:[%s829 + $0xa8] sm:$0xff] %vm253, %v1641
        %1670 = vst.msk [vmem:[%s829 + $0xb0] sm:$0xff] %vm253, %v1642
        %1671 = vst.msk [vmem:[%s829 + $0xb8] sm:$0xff] %vm253, %v1643
        %1672 = vst.msk [vmem:[%s829 + $0xc0] sm:$0xff] %vm253, %v1644
        %1673 = vst.msk [vmem:[%s829 + $0xc8] sm:$0xff] %vm253, %v1645
        %1674 = vst.msk [vmem:[%s829 + $0xd0] sm:$0xff] %vm253, %v1646
        %1675 = vst.msk [vmem:[%s829 + $0xd8] sm:$0xff] %vm253, %v1647
        %v1676 = vld [vmem:[%s829] sm:$0xff]
        %v1677 = vld [vmem:[%s829 + $0x8] sm:$0xff]
        %v1678 = vld [vmem:[%s829 + $0x10] sm:$0xff]
        %v1679 = vld [vmem:[%s829 + $0x18] sm:$0xff]
        %v1680 = vld [vmem:[%s829 + $0x20] sm:$0xff]
        %v1681 = vld [vmem:[%s829 + $0x28] sm:$0xff]
        %v1682 = vld [vmem:[%s829 + $0x30] sm:$0xff]
        %v1683 = vld [vmem:[%s829 + $0x38] sm:$0xff]
        %v1684 = vld [vmem:[%s829 + $0x40] sm:$0xff]
        %v1685 = vld [vmem:[%s829 + $0x48] sm:$0xff]
        %v1686 = vld [vmem:[%s829 + $0x50] sm:$0xff]
        %v1687 = vld [vmem:[%s829 + $0x58] sm:$0xff]
        %v1688 = vld [vmem:[%s829 + $0x60] sm:$0xff]
        %v1689 = vld [vmem:[%s829 + $0x68] sm:$0xff]
        %v1690 = vld [vmem:[%s829 + $0x70] sm:$0xff]
        %v1691 = vld [vmem:[%s829 + $0x78] sm:$0xff]
        %v1692 = vld [vmem:[%s1 + $0x3] sm:$0x1]
        %v1693 = vperm.slane %v1692, 0
        %v1694 = vmul.f32 %v1676, %v1693
        %v1695 = vmul.f32 %v1677, %v1693
        %v1696 = vmul.f32 %v1678, %v1693
        %v1697 = vmul.f32 %v1679, %v1693
        %v1698 = vmul.f32 %v1680, %v1693
        %v1699 = vmul.f32 %v1681, %v1693
        %v1700 = vmul.f32 %v1682, %v1693
        %v1701 = vmul.f32 %v1683, %v1693
        %v1702 = vmul.f32 %v1684, %v1693
        %v1703 = vmul.f32 %v1685, %v1693
        %v1704 = vmul.f32 %v1686, %v1693
        %v1705 = vmul.f32 %v1687, %v1693
        %v1706 = vmul.f32 %v1688, %v1693
        %v1707 = vmul.f32 %v1689, %v1693
        %v1708 = vmul.f32 %v1690, %v1693
        %v1709 = vmul.f32 %v1691, %v1693
        %v1710 = vadd.f32 %v1604, %v1694
        %v1711 = vadd.f32 %v1605, %v1695
        %v1712 = vadd.f32 %v1606, %v1696
        %v1713 = vadd.f32 %v1607, %v1697
        %v1714 = vadd.f32 %v1608, %v1698
        %v1715 = vadd.f32 %v1609, %v1699
        %v1716 = vadd.f32 %v1610, %v1700
        %v1717 = vadd.f32 %v1611, %v1701
        %v1718 = vadd.f32 %v1612, %v1702
        %v1719 = vadd.f32 %v1613, %v1703
        %v1720 = vadd.f32 %v1614, %v1704
        %v1721 = vadd.f32 %v1615, %v1705
        %v1722 = vadd.f32 %v1616, %v1706
        %v1723 = vadd.f32 %v1617, %v1707
        %v1724 = vadd.f32 %v1618, %v1708
        %v1725 = vadd.f32 %v1619, %v1709
        %v1726 = vld [vmem:[%s908] sm:$0xff]
        %v1727 = vld [vmem:[%s908 + $0x8] sm:$0xff]
        %v1728 = vld [vmem:[%s908 + $0x10] sm:$0xff]
        %v1729 = vld [vmem:[%s908 + $0x18] sm:$0xff]
        %v1730 = vld [vmem:[%s908 + $0x20] sm:$0xff]
        %v1731 = vld [vmem:[%s908 + $0x28] sm:$0xff]
        %v1732 = vld [vmem:[%s908 + $0x30] sm:$0xff]
        %v1733 = vld [vmem:[%s908 + $0x38] sm:$0xff]
        %v1734 = vld [vmem:[%s908 + $0x40] sm:$0xff]
        %v1735 = vld [vmem:[%s908 + $0x48] sm:$0xff]
        %v1736 = vld [vmem:[%s908 + $0x50] sm:$0xff]
        %v1737 = vld [vmem:[%s908 + $0x58] sm:$0xff]
        %v1738 = vld [vmem:[%s908 + $0x60] sm:$0xff]
        %v1739 = vld [vmem:[%s908 + $0x68] sm:$0xff]
        %v1740 = vld [vmem:[%s908 + $0x70] sm:$0xff]
        %v1741 = vld [vmem:[%s908 + $0x78] sm:$0xff]
        %v1742 = vld [vmem:[%s1 + $0xa] sm:$0x1]
        %v1743 = vperm.slane %v1742, 0
        %v1744 = vmul.f32 %v1726, %v1743
        %v1745 = vmul.f32 %v1727, %v1743
        %v1746 = vmul.f32 %v1728, %v1743
        %v1747 = vmul.f32 %v1729, %v1743
        %v1748 = vmul.f32 %v1730, %v1743
        %v1749 = vmul.f32 %v1731, %v1743
        %v1750 = vmul.f32 %v1732, %v1743
        %v1751 = vmul.f32 %v1733, %v1743
        %v1752 = vmul.f32 %v1734, %v1743
        %v1753 = vmul.f32 %v1735, %v1743
        %v1754 = vmul.f32 %v1736, %v1743
        %v1755 = vmul.f32 %v1737, %v1743
        %v1756 = vmul.f32 %v1738, %v1743
        %v1757 = vmul.f32 %v1739, %v1743
        %v1758 = vmul.f32 %v1740, %v1743
        %v1759 = vmul.f32 %v1741, %v1743
        %v1760 = vadd.f32 %v1710, %v1744
        %v1761 = vadd.f32 %v1711, %v1745
        %v1762 = vadd.f32 %v1712, %v1746
        %v1763 = vadd.f32 %v1713, %v1747
        %v1764 = vadd.f32 %v1714, %v1748
        %v1765 = vadd.f32 %v1715, %v1749
        %v1766 = vadd.f32 %v1716, %v1750
        %v1767 = vadd.f32 %v1717, %v1751
        %v1768 = vadd.f32 %v1718, %v1752
        %v1769 = vadd.f32 %v1719, %v1753
        %v1770 = vadd.f32 %v1720, %v1754
        %v1771 = vadd.f32 %v1721, %v1755
        %v1772 = vadd.f32 %v1722, %v1756
        %v1773 = vadd.f32 %v1723, %v1757
        %v1774 = vadd.f32 %v1724, %v1758
        %v1775 = vadd.f32 %v1725, %v1759
        %v1776 = vld [vmem:[%s959] sm:$0xff]
        %v1777 = vld [vmem:[%s959 + $0x8] sm:$0xff]
        %v1778 = vld [vmem:[%s959 + $0x10] sm:$0xff]
        %v1779 = vld [vmem:[%s959 + $0x18] sm:$0xff]
        %v1780 = vld [vmem:[%s959 + $0x20] sm:$0xff]
        %v1781 = vld [vmem:[%s959 + $0x28] sm:$0xff]
        %v1782 = vld [vmem:[%s959 + $0x30] sm:$0xff]
        %v1783 = vld [vmem:[%s959 + $0x38] sm:$0xff]
        %v1784 = vld [vmem:[%s959 + $0x40] sm:$0xff]
        %v1785 = vld [vmem:[%s959 + $0x48] sm:$0xff]
        %v1786 = vld [vmem:[%s959 + $0x50] sm:$0xff]
        %v1787 = vld [vmem:[%s959 + $0x58] sm:$0xff]
        %v1788 = vld [vmem:[%s959 + $0x60] sm:$0xff]
        %v1789 = vld [vmem:[%s959 + $0x68] sm:$0xff]
        %v1790 = vld [vmem:[%s959 + $0x70] sm:$0xff]
        %v1791 = vld [vmem:[%s959 + $0x78] sm:$0xff]
        %v1792 = vld [vmem:[%s1 + $0x11] sm:$0x1]
        %v1793 = vperm.slane %v1792, 0
        %v1794 = vmul.f32 %v1776, %v1793
        %v1795 = vmul.f32 %v1777, %v1793
        %v1796 = vmul.f32 %v1778, %v1793
        %v1797 = vmul.f32 %v1779, %v1793
        %v1798 = vmul.f32 %v1780, %v1793
        %v1799 = vmul.f32 %v1781, %v1793
        %v1800 = vmul.f32 %v1782, %v1793
        %v1801 = vmul.f32 %v1783, %v1793
        %v1802 = vmul.f32 %v1784, %v1793
        %v1803 = vmul.f32 %v1785, %v1793
        %v1804 = vmul.f32 %v1786, %v1793
        %v1805 = vmul.f32 %v1787, %v1793
        %v1806 = vmul.f32 %v1788, %v1793
        %v1807 = vmul.f32 %v1789, %v1793
        %v1808 = vmul.f32 %v1790, %v1793
        %v1809 = vmul.f32 %v1791, %v1793
        %v1810 = vadd.f32 %v1760, %v1794
        %v1811 = vadd.f32 %v1761, %v1795
        %v1812 = vadd.f32 %v1762, %v1796
        %v1813 = vadd.f32 %v1763, %v1797
        %v1814 = vadd.f32 %v1764, %v1798
        %v1815 = vadd.f32 %v1765, %v1799
        %v1816 = vadd.f32 %v1766, %v1800
        %v1817 = vadd.f32 %v1767, %v1801
        %v1818 = vadd.f32 %v1768, %v1802
        %v1819 = vadd.f32 %v1769, %v1803
        %v1820 = vadd.f32 %v1770, %v1804
        %v1821 = vadd.f32 %v1771, %v1805
        %v1822 = vadd.f32 %v1772, %v1806
        %v1823 = vadd.f32 %v1773, %v1807
        %v1824 = vadd.f32 %v1774, %v1808
        %v1825 = vadd.f32 %v1775, %v1809
        %v1826 = vld [vmem:[%s1010] sm:$0xff]
        %v1827 = vld [vmem:[%s1010 + $0x8] sm:$0xff]
        %v1828 = vld [vmem:[%s1010 + $0x10] sm:$0xff]
        %v1829 = vld [vmem:[%s1010 + $0x18] sm:$0xff]
        %v1830 = vld [vmem:[%s1010 + $0x20] sm:$0xff]
        %v1831 = vld [vmem:[%s1010 + $0x28] sm:$0xff]
        %v1832 = vld [vmem:[%s1010 + $0x30] sm:$0xff]
        %v1833 = vld [vmem:[%s1010 + $0x38] sm:$0xff]
        %v1834 = vld [vmem:[%s1010 + $0x40] sm:$0xff]
        %v1835 = vld [vmem:[%s1010 + $0x48] sm:$0xff]
        %v1836 = vld [vmem:[%s1010 + $0x50] sm:$0xff]
        %v1837 = vld [vmem:[%s1010 + $0x58] sm:$0xff]
        %v1838 = vld [vmem:[%s1010 + $0x60] sm:$0xff]
        %v1839 = vld [vmem:[%s1010 + $0x68] sm:$0xff]
        %v1840 = vld [vmem:[%s1010 + $0x70] sm:$0xff]
        %v1841 = vld [vmem:[%s1010 + $0x78] sm:$0xff]
        %v1842 = vld [vmem:[%s1 + $0x18] sm:$0x1]
        %v1843 = vperm.slane %v1842, 0
        %v1844 = vmul.f32 %v1826, %v1843
        %v1845 = vmul.f32 %v1827, %v1843
        %v1846 = vmul.f32 %v1828, %v1843
        %v1847 = vmul.f32 %v1829, %v1843
        %v1848 = vmul.f32 %v1830, %v1843
        %v1849 = vmul.f32 %v1831, %v1843
        %v1850 = vmul.f32 %v1832, %v1843
        %v1851 = vmul.f32 %v1833, %v1843
        %v1852 = vmul.f32 %v1834, %v1843
        %v1853 = vmul.f32 %v1835, %v1843
        %v1854 = vmul.f32 %v1836, %v1843
        %v1855 = vmul.f32 %v1837, %v1843
        %v1856 = vmul.f32 %v1838, %v1843
        %v1857 = vmul.f32 %v1839, %v1843
        %v1858 = vmul.f32 %v1840, %v1843
        %v1859 = vmul.f32 %v1841, %v1843
        %v1860 = vadd.f32 %v1810, %v1844
        %v1861 = vadd.f32 %v1811, %v1845
        %v1862 = vadd.f32 %v1812, %v1846
        %v1863 = vadd.f32 %v1813, %v1847
        %v1864 = vadd.f32 %v1814, %v1848
        %v1865 = vadd.f32 %v1815, %v1849
        %v1866 = vadd.f32 %v1816, %v1850
        %v1867 = vadd.f32 %v1817, %v1851
        %v1868 = vadd.f32 %v1818, %v1852
        %v1869 = vadd.f32 %v1819, %v1853
        %v1870 = vadd.f32 %v1820, %v1854
        %v1871 = vadd.f32 %v1821, %v1855
        %v1872 = vadd.f32 %v1822, %v1856
        %v1873 = vadd.f32 %v1823, %v1857
        %v1874 = vadd.f32 %v1824, %v1858
        %v1875 = vadd.f32 %v1825, %v1859
        %v1876 = vld [vmem:[%s1061] sm:$0xff]
        %v1877 = vld [vmem:[%s1061 + $0x8] sm:$0xff]
        %v1878 = vld [vmem:[%s1061 + $0x10] sm:$0xff]
        %v1879 = vld [vmem:[%s1061 + $0x18] sm:$0xff]
        %v1880 = vld [vmem:[%s1061 + $0x20] sm:$0xff]
        %v1881 = vld [vmem:[%s1061 + $0x28] sm:$0xff]
        %v1882 = vld [vmem:[%s1061 + $0x30] sm:$0xff]
        %v1883 = vld [vmem:[%s1061 + $0x38] sm:$0xff]
        %v1884 = vld [vmem:[%s1061 + $0x40] sm:$0xff]
        %v1885 = vld [vmem:[%s1061 + $0x48] sm:$0xff]
        %v1886 = vld [vmem:[%s1061 + $0x50] sm:$0xff]
        %v1887 = vld [vmem:[%s1061 + $0x58] sm:$0xff]
        %v1888 = vld [vmem:[%s1061 + $0x60] sm:$0xff]
        %v1889 = vld [vmem:[%s1061 + $0x68] sm:$0xff]
        %v1890 = vld [vmem:[%s1061 + $0x70] sm:$0xff]
        %v1891 = vld [vmem:[%s1061 + $0x78] sm:$0xff]
        %v1892 = vld [vmem:[%s1 + $0x1f] sm:$0x1]
        %v1893 = vperm.slane %v1892, 0
        %v1894 = vmul.f32 %v1876, %v1893
        %v1895 = vmul.f32 %v1877, %v1893
        %v1896 = vmul.f32 %v1878, %v1893
        %v1897 = vmul.f32 %v1879, %v1893
        %v1898 = vmul.f32 %v1880, %v1893
        %v1899 = vmul.f32 %v1881, %v1893
        %v1900 = vmul.f32 %v1882, %v1893
        %v1901 = vmul.f32 %v1883, %v1893
        %v1902 = vmul.f32 %v1884, %v1893
        %v1903 = vmul.f32 %v1885, %v1893
        %v1904 = vmul.f32 %v1886, %v1893
        %v1905 = vmul.f32 %v1887, %v1893
        %v1906 = vmul.f32 %v1888, %v1893
        %v1907 = vmul.f32 %v1889, %v1893
        %v1908 = vmul.f32 %v1890, %v1893
        %v1909 = vmul.f32 %v1891, %v1893
        %v1910 = vadd.f32 %v1860, %v1894
        %v1911 = vadd.f32 %v1861, %v1895
        %v1912 = vadd.f32 %v1862, %v1896
        %v1913 = vadd.f32 %v1863, %v1897
        %v1914 = vadd.f32 %v1864, %v1898
        %v1915 = vadd.f32 %v1865, %v1899
        %v1916 = vadd.f32 %v1866, %v1900
        %v1917 = vadd.f32 %v1867, %v1901
        %v1918 = vadd.f32 %v1868, %v1902
        %v1919 = vadd.f32 %v1869, %v1903
        %v1920 = vadd.f32 %v1870, %v1904
        %v1921 = vadd.f32 %v1871, %v1905
        %v1922 = vadd.f32 %v1872, %v1906
        %v1923 = vadd.f32 %v1873, %v1907
        %v1924 = vadd.f32 %v1874, %v1908
        %v1925 = vadd.f32 %v1875, %v1909
        %v1926 = vld [vmem:[%s1112] sm:$0xff]
        %v1927 = vld [vmem:[%s1112 + $0x8] sm:$0xff]
        %v1928 = vld [vmem:[%s1112 + $0x10] sm:$0xff]
        %v1929 = vld [vmem:[%s1112 + $0x18] sm:$0xff]
        %v1930 = vld [vmem:[%s1112 + $0x20] sm:$0xff]
        %v1931 = vld [vmem:[%s1112 + $0x28] sm:$0xff]
        %v1932 = vld [vmem:[%s1112 + $0x30] sm:$0xff]
        %v1933 = vld [vmem:[%s1112 + $0x38] sm:$0xff]
        %v1934 = vld [vmem:[%s1112 + $0x40] sm:$0xff]
        %v1935 = vld [vmem:[%s1112 + $0x48] sm:$0xff]
        %v1936 = vld [vmem:[%s1112 + $0x50] sm:$0xff]
        %v1937 = vld [vmem:[%s1112 + $0x58] sm:$0xff]
        %v1938 = vld [vmem:[%s1112 + $0x60] sm:$0xff]
        %v1939 = vld [vmem:[%s1112 + $0x68] sm:$0xff]
        %v1940 = vld [vmem:[%s1112 + $0x70] sm:$0xff]
        %v1941 = vld [vmem:[%s1112 + $0x78] sm:$0xff]
        %v1942 = vld [vmem:[%s1 + $0x26] sm:$0x1]
        %v1943 = vperm.slane %v1942, 0
        %v1944 = vmul.f32 %v1926, %v1943
        %v1945 = vmul.f32 %v1927, %v1943
        %v1946 = vmul.f32 %v1928, %v1943
        %v1947 = vmul.f32 %v1929, %v1943
        %v1948 = vmul.f32 %v1930, %v1943
        %v1949 = vmul.f32 %v1931, %v1943
        %v1950 = vmul.f32 %v1932, %v1943
        %v1951 = vmul.f32 %v1933, %v1943
        %v1952 = vmul.f32 %v1934, %v1943
        %v1953 = vmul.f32 %v1935, %v1943
        %v1954 = vmul.f32 %v1936, %v1943
        %v1955 = vmul.f32 %v1937, %v1943
        %v1956 = vmul.f32 %v1938, %v1943
        %v1957 = vmul.f32 %v1939, %v1943
        %v1958 = vmul.f32 %v1940, %v1943
        %v1959 = vmul.f32 %v1941, %v1943
        %v1960 = vadd.f32 %v1910, %v1944
        %v1961 = vadd.f32 %v1911, %v1945
        %v1962 = vadd.f32 %v1912, %v1946
        %v1963 = vadd.f32 %v1913, %v1947
        %v1964 = vadd.f32 %v1914, %v1948
        %v1965 = vadd.f32 %v1915, %v1949
        %v1966 = vadd.f32 %v1916, %v1950
        %v1967 = vadd.f32 %v1917, %v1951
        %v1968 = vadd.f32 %v1918, %v1952
        %v1969 = vadd.f32 %v1919, %v1953
        %v1970 = vadd.f32 %v1920, %v1954
        %v1971 = vadd.f32 %v1921, %v1955
        %v1972 = vadd.f32 %v1922, %v1956
        %v1973 = vadd.f32 %v1923, %v1957
        %v1974 = vadd.f32 %v1924, %v1958
        %v1975 = vadd.f32 %v1925, %v1959
        %v1976 = vld [vmem:[%s1163] sm:$0xff]
        %v1977 = vld [vmem:[%s1163 + $0x8] sm:$0xff]
        %v1978 = vld [vmem:[%s1163 + $0x10] sm:$0xff]
        %v1979 = vld [vmem:[%s1163 + $0x18] sm:$0xff]
        %v1980 = vld [vmem:[%s1163 + $0x20] sm:$0xff]
        %v1981 = vld [vmem:[%s1163 + $0x28] sm:$0xff]
        %v1982 = vld [vmem:[%s1163 + $0x30] sm:$0xff]
        %v1983 = vld [vmem:[%s1163 + $0x38] sm:$0xff]
        %v1984 = vld [vmem:[%s1163 + $0x40] sm:$0xff]
        %v1985 = vld [vmem:[%s1163 + $0x48] sm:$0xff]
        %v1986 = vld [vmem:[%s1163 + $0x50] sm:$0xff]
        %v1987 = vld [vmem:[%s1163 + $0x58] sm:$0xff]
        %v1988 = vld [vmem:[%s1163 + $0x60] sm:$0xff]
        %v1989 = vld [vmem:[%s1163 + $0x68] sm:$0xff]
        %v1990 = vld [vmem:[%s1163 + $0x70] sm:$0xff]
        %v1991 = vld [vmem:[%s1163 + $0x78] sm:$0xff]
        %v1992 = vld [vmem:[%s1 + $0x2d] sm:$0x1]
        %v1993 = vperm.slane %v1992, 0
        %v1994 = vmul.f32 %v1976, %v1993
        %v1995 = vmul.f32 %v1977, %v1993
        %v1996 = vmul.f32 %v1978, %v1993
        %v1997 = vmul.f32 %v1979, %v1993
        %v1998 = vmul.f32 %v1980, %v1993
        %v1999 = vmul.f32 %v1981, %v1993
        %v2000 = vmul.f32 %v1982, %v1993
        %v2001 = vmul.f32 %v1983, %v1993
        %v2002 = vmul.f32 %v1984, %v1993
        %v2003 = vmul.f32 %v1985, %v1993
        %v2004 = vmul.f32 %v1986, %v1993
        %v2005 = vmul.f32 %v1987, %v1993
        %v2006 = vmul.f32 %v1988, %v1993
        %v2007 = vmul.f32 %v1989, %v1993
        %v2008 = vmul.f32 %v1990, %v1993
        %v2009 = vmul.f32 %v1991, %v1993
        %v2010 = vadd.f32 %v1960, %v1994
        %v2011 = vadd.f32 %v1961, %v1995
        %v2012 = vadd.f32 %v1962, %v1996
        %v2013 = vadd.f32 %v1963, %v1997
        %v2014 = vadd.f32 %v1964, %v1998
        %v2015 = vadd.f32 %v1965, %v1999
        %v2016 = vadd.f32 %v1966, %v2000
        %v2017 = vadd.f32 %v1967, %v2001
        %v2018 = vadd.f32 %v1968, %v2002
        %v2019 = vadd.f32 %v1969, %v2003
        %v2020 = vadd.f32 %v1970, %v2004
        %v2021 = vadd.f32 %v1971, %v2005
        %v2022 = vadd.f32 %v1972, %v2006
        %v2023 = vadd.f32 %v1973, %v2007
        %v2024 = vadd.f32 %v1974, %v2008
        %v2025 = vadd.f32 %v1975, %v2009
        %v2026 = vld [vmem:[%s387 + $0x9] sm:$0xff]
        %v2027 = vld [vmem:[%s387 + $0x11] sm:$0xff]
        %v2028 = vld [vmem:[%s387 + $0x29] sm:$0xff]
        %v2029 = vld [vmem:[%s387 + $0x31] sm:$0xff]
        %v2030 = vld [vmem:[%s387 + $0x49] sm:$0xff]
        %v2031 = vld [vmem:[%s387 + $0x51] sm:$0xff]
        %v2032 = vld [vmem:[%s387 + $0x69] sm:$0xff]
        %v2033 = vld [vmem:[%s387 + $0x71] sm:$0xff]
        %v2034 = vld [vmem:[%s387 + $0x89] sm:$0xff]
        %v2035 = vld [vmem:[%s387 + $0x91] sm:$0xff]
        %v2036 = vld [vmem:[%s387 + $0xa9] sm:$0xff]
        %v2037 = vld [vmem:[%s387 + $0xb1] sm:$0xff]
        %v2038 = vld [vmem:[%s387 + $0xc9] sm:$0xff]
        %v2039 = vld [vmem:[%s387 + $0xd1] sm:$0xff]
        %v2040 = vld [vmem:[%s387 + $0xe9] sm:$0xff]
        %v2041 = vld [vmem:[%s387 + $0xf1] sm:$0xff]
        %v2042 = vld [vmem:[%s387 + $0x109] sm:$0xff]
        %v2043 = vld [vmem:[%s387 + $0x111] sm:$0xff]
        %v2044 = vld [vmem:[%s387 + $0x129] sm:$0xff]
        %v2045 = vld [vmem:[%s387 + $0x131] sm:$0xff]
        %v2046 = vld [vmem:[%s387 + $0x149] sm:$0xff]
        %v2047 = vld [vmem:[%s387 + $0x151] sm:$0xff]
        %v2048 = vld [vmem:[%s387 + $0x169] sm:$0xff]
        %v2049 = vld [vmem:[%s387 + $0x171] sm:$0xff]
        %v2050 = vld [vmem:[%s387 + $0x189] sm:$0xff]
        %v2051 = vld [vmem:[%s387 + $0x191] sm:$0xff]
        %v2052 = vld [vmem:[%s387 + $0x1a9] sm:$0xff]
        %v2053 = vld [vmem:[%s387 + $0x1b1] sm:$0xff]
        %2054 = vst.msk [vmem:[#allocation3] sm:$0xff] %vm253, %v2026
        %2055 = vst.msk [vmem:[#allocation3 + $0x8] sm:$0xff] %vm253, %v2027
        %2056 = vst.msk [vmem:[#allocation3 + $0x10] sm:$0xff] %vm253, %v2028
        %2057 = vst.msk [vmem:[#allocation3 + $0x18] sm:$0xff] %vm253, %v2029
        %2058 = vst.msk [vmem:[#allocation3 + $0x20] sm:$0xff] %vm253, %v2030
        %2059 = vst.msk [vmem:[#allocation3 + $0x28] sm:$0xff] %vm253, %v2031
        %2060 = vst.msk [vmem:[#allocation3 + $0x30] sm:$0xff] %vm253, %v2032
        %2061 = vst.msk [vmem:[#allocation3 + $0x38] sm:$0xff] %vm253, %v2033
        %2062 = vst.msk [vmem:[#allocation3 + $0x40] sm:$0xff] %vm253, %v2034
        %2063 = vst.msk [vmem:[#allocation3 + $0x48] sm:$0xff] %vm253, %v2035
        %2064 = vst.msk [vmem:[#allocation3 + $0x50] sm:$0xff] %vm253, %v2036
        %2065 = vst.msk [vmem:[#allocation3 + $0x58] sm:$0xff] %vm253, %v2037
        %2066 = vst.msk [vmem:[#allocation3 + $0x60] sm:$0xff] %vm253, %v2038
        %2067 = vst.msk [vmem:[#allocation3 + $0x68] sm:$0xff] %vm253, %v2039
        %2068 = vst.msk [vmem:[#allocation3 + $0x70] sm:$0xff] %vm253, %v2040
        %2069 = vst.msk [vmem:[#allocation3 + $0x78] sm:$0xff] %vm253, %v2041
        %2070 = vst.msk [vmem:[#allocation3 + $0x80] sm:$0xff] %vm253, %v2042
        %2071 = vst.msk [vmem:[#allocation3 + $0x88] sm:$0xff] %vm253, %v2043
        %2072 = vst.msk [vmem:[#allocation3 + $0x90] sm:$0xff] %vm253, %v2044
        %2073 = vst.msk [vmem:[#allocation3 + $0x98] sm:$0xff] %vm253, %v2045
        %2074 = vst.msk [vmem:[#allocation3 + $0xa0] sm:$0xff] %vm253, %v2046
        %2075 = vst.msk [vmem:[#allocation3 + $0xa8] sm:$0xff] %vm253, %v2047
        %2076 = vst.msk [vmem:[#allocation3 + $0xb0] sm:$0xff] %vm253, %v2048
        %2077 = vst.msk [vmem:[#allocation3 + $0xb8] sm:$0xff] %vm253, %v2049
        %2078 = vst.msk [vmem:[#allocation3 + $0xc0] sm:$0xff] %vm253, %v2050
        %2079 = vst.msk [vmem:[#allocation3 + $0xc8] sm:$0xff] %vm253, %v2051
        %2080 = vst.msk [vmem:[#allocation3 + $0xd0] sm:$0xff] %vm253, %v2052
        %2081 = vst.msk [vmem:[#allocation3 + $0xd8] sm:$0xff] %vm253, %v2053
        %v2082 = vld [vmem:[#allocation3] sm:$0xff]
        %v2083 = vld [vmem:[#allocation3 + $0x8] sm:$0xff]
        %v2084 = vld [vmem:[#allocation3 + $0x10] sm:$0xff]
        %v2085 = vld [vmem:[#allocation3 + $0x18] sm:$0xff]
        %v2086 = vld [vmem:[#allocation3 + $0x20] sm:$0xff]
        %v2087 = vld [vmem:[#allocation3 + $0x28] sm:$0xff]
        %v2088 = vld [vmem:[#allocation3 + $0x30] sm:$0xff]
        %v2089 = vld [vmem:[#allocation3 + $0x38] sm:$0xff]
        %v2090 = vld [vmem:[#allocation3 + $0x40] sm:$0xff]
        %v2091 = vld [vmem:[#allocation3 + $0x48] sm:$0xff]
        %v2092 = vld [vmem:[#allocation3 + $0x50] sm:$0xff]
        %v2093 = vld [vmem:[#allocation3 + $0x58] sm:$0xff]
        %v2094 = vld [vmem:[#allocation3 + $0x60] sm:$0xff]
        %v2095 = vld [vmem:[#allocation3 + $0x68] sm:$0xff]
        %v2096 = vld [vmem:[#allocation3 + $0x70] sm:$0xff]
        %v2097 = vld [vmem:[#allocation3 + $0x78] sm:$0xff]
        %v2098 = vld [vmem:[%s1 + $0x4] sm:$0x1]
        %v2099 = vperm.slane %v2098, 0
        %v2100 = vmul.f32 %v2082, %v2099
        %v2101 = vmul.f32 %v2083, %v2099
        %v2102 = vmul.f32 %v2084, %v2099
        %v2103 = vmul.f32 %v2085, %v2099
        %v2104 = vmul.f32 %v2086, %v2099
        %v2105 = vmul.f32 %v2087, %v2099
        %v2106 = vmul.f32 %v2088, %v2099
        %v2107 = vmul.f32 %v2089, %v2099
        %v2108 = vmul.f32 %v2090, %v2099
        %v2109 = vmul.f32 %v2091, %v2099
        %v2110 = vmul.f32 %v2092, %v2099
        %v2111 = vmul.f32 %v2093, %v2099
        %v2112 = vmul.f32 %v2094, %v2099
        %v2113 = vmul.f32 %v2095, %v2099
        %v2114 = vmul.f32 %v2096, %v2099
        %v2115 = vmul.f32 %v2097, %v2099
        %v2116 = vadd.f32 %v2010, %v2100
        %v2117 = vadd.f32 %v2011, %v2101
        %v2118 = vadd.f32 %v2012, %v2102
        %v2119 = vadd.f32 %v2013, %v2103
        %v2120 = vadd.f32 %v2014, %v2104
        %v2121 = vadd.f32 %v2015, %v2105
        %v2122 = vadd.f32 %v2016, %v2106
        %v2123 = vadd.f32 %v2017, %v2107
        %v2124 = vadd.f32 %v2018, %v2108
        %v2125 = vadd.f32 %v2019, %v2109
        %v2126 = vadd.f32 %v2020, %v2110
        %v2127 = vadd.f32 %v2021, %v2111
        %v2128 = vadd.f32 %v2022, %v2112
        %v2129 = vadd.f32 %v2023, %v2113
        %v2130 = vadd.f32 %v2024, %v2114
        %v2131 = vadd.f32 %v2025, %v2115
        %v2132 = vld [vmem:[%s495] sm:$0xff]
        %v2133 = vld [vmem:[%s495 + $0x8] sm:$0xff]
        %v2134 = vld [vmem:[%s495 + $0x10] sm:$0xff]
        %v2135 = vld [vmem:[%s495 + $0x18] sm:$0xff]
        %v2136 = vld [vmem:[%s495 + $0x20] sm:$0xff]
        %v2137 = vld [vmem:[%s495 + $0x28] sm:$0xff]
        %v2138 = vld [vmem:[%s495 + $0x30] sm:$0xff]
        %v2139 = vld [vmem:[%s495 + $0x38] sm:$0xff]
        %v2140 = vld [vmem:[%s495 + $0x40] sm:$0xff]
        %v2141 = vld [vmem:[%s495 + $0x48] sm:$0xff]
        %v2142 = vld [vmem:[%s495 + $0x50] sm:$0xff]
        %v2143 = vld [vmem:[%s495 + $0x58] sm:$0xff]
        %v2144 = vld [vmem:[%s495 + $0x60] sm:$0xff]
        %v2145 = vld [vmem:[%s495 + $0x68] sm:$0xff]
        %v2146 = vld [vmem:[%s495 + $0x70] sm:$0xff]
        %v2147 = vld [vmem:[%s495 + $0x78] sm:$0xff]
        %v2148 = vld [vmem:[%s1 + $0xb] sm:$0x1]
        %v2149 = vperm.slane %v2148, 0
        %v2150 = vmul.f32 %v2132, %v2149
        %v2151 = vmul.f32 %v2133, %v2149
        %v2152 = vmul.f32 %v2134, %v2149
        %v2153 = vmul.f32 %v2135, %v2149
        %v2154 = vmul.f32 %v2136, %v2149
        %v2155 = vmul.f32 %v2137, %v2149
        %v2156 = vmul.f32 %v2138, %v2149
        %v2157 = vmul.f32 %v2139, %v2149
        %v2158 = vmul.f32 %v2140, %v2149
        %v2159 = vmul.f32 %v2141, %v2149
        %v2160 = vmul.f32 %v2142, %v2149
        %v2161 = vmul.f32 %v2143, %v2149
        %v2162 = vmul.f32 %v2144, %v2149
        %v2163 = vmul.f32 %v2145, %v2149
        %v2164 = vmul.f32 %v2146, %v2149
        %v2165 = vmul.f32 %v2147, %v2149
        %v2166 = vadd.f32 %v2116, %v2150
        %v2167 = vadd.f32 %v2117, %v2151
        %v2168 = vadd.f32 %v2118, %v2152
        %v2169 = vadd.f32 %v2119, %v2153
        %v2170 = vadd.f32 %v2120, %v2154
        %v2171 = vadd.f32 %v2121, %v2155
        %v2172 = vadd.f32 %v2122, %v2156
        %v2173 = vadd.f32 %v2123, %v2157
        %v2174 = vadd.f32 %v2124, %v2158
        %v2175 = vadd.f32 %v2125, %v2159
        %v2176 = vadd.f32 %v2126, %v2160
        %v2177 = vadd.f32 %v2127, %v2161
        %v2178 = vadd.f32 %v2128, %v2162
        %v2179 = vadd.f32 %v2129, %v2163
        %v2180 = vadd.f32 %v2130, %v2164
        %v2181 = vadd.f32 %v2131, %v2165
        %v2182 = vld [vmem:[%s546] sm:$0xff]
        %v2183 = vld [vmem:[%s546 + $0x8] sm:$0xff]
        %v2184 = vld [vmem:[%s546 + $0x10] sm:$0xff]
        %v2185 = vld [vmem:[%s546 + $0x18] sm:$0xff]
        %v2186 = vld [vmem:[%s546 + $0x20] sm:$0xff]
        %v2187 = vld [vmem:[%s546 + $0x28] sm:$0xff]
        %v2188 = vld [vmem:[%s546 + $0x30] sm:$0xff]
        %v2189 = vld [vmem:[%s546 + $0x38] sm:$0xff]
        %v2190 = vld [vmem:[%s546 + $0x40] sm:$0xff]
        %v2191 = vld [vmem:[%s546 + $0x48] sm:$0xff]
        %v2192 = vld [vmem:[%s546 + $0x50] sm:$0xff]
        %v2193 = vld [vmem:[%s546 + $0x58] sm:$0xff]
        %v2194 = vld [vmem:[%s546 + $0x60] sm:$0xff]
        %v2195 = vld [vmem:[%s546 + $0x68] sm:$0xff]
        %v2196 = vld [vmem:[%s546 + $0x70] sm:$0xff]
        %v2197 = vld [vmem:[%s546 + $0x78] sm:$0xff]
        %v2198 = vld [vmem:[%s1 + $0x12] sm:$0x1]
        %v2199 = vperm.slane %v2198, 0
        %v2200 = vmul.f32 %v2182, %v2199
        %v2201 = vmul.f32 %v2183, %v2199
        %v2202 = vmul.f32 %v2184, %v2199
        %v2203 = vmul.f32 %v2185, %v2199
        %v2204 = vmul.f32 %v2186, %v2199
        %v2205 = vmul.f32 %v2187, %v2199
        %v2206 = vmul.f32 %v2188, %v2199
        %v2207 = vmul.f32 %v2189, %v2199
        %v2208 = vmul.f32 %v2190, %v2199
        %v2209 = vmul.f32 %v2191, %v2199
        %v2210 = vmul.f32 %v2192, %v2199
        %v2211 = vmul.f32 %v2193, %v2199
        %v2212 = vmul.f32 %v2194, %v2199
        %v2213 = vmul.f32 %v2195, %v2199
        %v2214 = vmul.f32 %v2196, %v2199
        %v2215 = vmul.f32 %v2197, %v2199
        %v2216 = vadd.f32 %v2166, %v2200
        %v2217 = vadd.f32 %v2167, %v2201
        %v2218 = vadd.f32 %v2168, %v2202
        %v2219 = vadd.f32 %v2169, %v2203
        %v2220 = vadd.f32 %v2170, %v2204
        %v2221 = vadd.f32 %v2171, %v2205
        %v2222 = vadd.f32 %v2172, %v2206
        %v2223 = vadd.f32 %v2173, %v2207
        %v2224 = vadd.f32 %v2174, %v2208
        %v2225 = vadd.f32 %v2175, %v2209
        %v2226 = vadd.f32 %v2176, %v2210
        %v2227 = vadd.f32 %v2177, %v2211
        %v2228 = vadd.f32 %v2178, %v2212
        %v2229 = vadd.f32 %v2179, %v2213
        %v2230 = vadd.f32 %v2180, %v2214
        %v2231 = vadd.f32 %v2181, %v2215
        %v2232 = vld [vmem:[%s597] sm:$0xff]
        %v2233 = vld [vmem:[%s597 + $0x8] sm:$0xff]
        %v2234 = vld [vmem:[%s597 + $0x10] sm:$0xff]
        %v2235 = vld [vmem:[%s597 + $0x18] sm:$0xff]
        %v2236 = vld [vmem:[%s597 + $0x20] sm:$0xff]
        %v2237 = vld [vmem:[%s597 + $0x28] sm:$0xff]
        %v2238 = vld [vmem:[%s597 + $0x30] sm:$0xff]
        %v2239 = vld [vmem:[%s597 + $0x38] sm:$0xff]
        %v2240 = vld [vmem:[%s597 + $0x40] sm:$0xff]
        %v2241 = vld [vmem:[%s597 + $0x48] sm:$0xff]
        %v2242 = vld [vmem:[%s597 + $0x50] sm:$0xff]
        %v2243 = vld [vmem:[%s597 + $0x58] sm:$0xff]
        %v2244 = vld [vmem:[%s597 + $0x60] sm:$0xff]
        %v2245 = vld [vmem:[%s597 + $0x68] sm:$0xff]
        %v2246 = vld [vmem:[%s597 + $0x70] sm:$0xff]
        %v2247 = vld [vmem:[%s597 + $0x78] sm:$0xff]
        %v2248 = vld [vmem:[%s1 + $0x19] sm:$0x1]
        %v2249 = vperm.slane %v2248, 0
        %v2250 = vmul.f32 %v2232, %v2249
        %v2251 = vmul.f32 %v2233, %v2249
        %v2252 = vmul.f32 %v2234, %v2249
        %v2253 = vmul.f32 %v2235, %v2249
        %v2254 = vmul.f32 %v2236, %v2249
        %v2255 = vmul.f32 %v2237, %v2249
        %v2256 = vmul.f32 %v2238, %v2249
        %v2257 = vmul.f32 %v2239, %v2249
        %v2258 = vmul.f32 %v2240, %v2249
        %v2259 = vmul.f32 %v2241, %v2249
        %v2260 = vmul.f32 %v2242, %v2249
        %v2261 = vmul.f32 %v2243, %v2249
        %v2262 = vmul.f32 %v2244, %v2249
        %v2263 = vmul.f32 %v2245, %v2249
        %v2264 = vmul.f32 %v2246, %v2249
        %v2265 = vmul.f32 %v2247, %v2249
        %v2266 = vadd.f32 %v2216, %v2250
        %v2267 = vadd.f32 %v2217, %v2251
        %v2268 = vadd.f32 %v2218, %v2252
        %v2269 = vadd.f32 %v2219, %v2253
        %v2270 = vadd.f32 %v2220, %v2254
        %v2271 = vadd.f32 %v2221, %v2255
        %v2272 = vadd.f32 %v2222, %v2256
        %v2273 = vadd.f32 %v2223, %v2257
        %v2274 = vadd.f32 %v2224, %v2258
        %v2275 = vadd.f32 %v2225, %v2259
        %v2276 = vadd.f32 %v2226, %v2260
        %v2277 = vadd.f32 %v2227, %v2261
        %v2278 = vadd.f32 %v2228, %v2262
        %v2279 = vadd.f32 %v2229, %v2263
        %v2280 = vadd.f32 %v2230, %v2264
        %v2281 = vadd.f32 %v2231, %v2265
        %v2282 = vld [vmem:[%s648] sm:$0xff]
        %v2283 = vld [vmem:[%s648 + $0x8] sm:$0xff]
        %v2284 = vld [vmem:[%s648 + $0x10] sm:$0xff]
        %v2285 = vld [vmem:[%s648 + $0x18] sm:$0xff]
        %v2286 = vld [vmem:[%s648 + $0x20] sm:$0xff]
        %v2287 = vld [vmem:[%s648 + $0x28] sm:$0xff]
        %v2288 = vld [vmem:[%s648 + $0x30] sm:$0xff]
        %v2289 = vld [vmem:[%s648 + $0x38] sm:$0xff]
        %v2290 = vld [vmem:[%s648 + $0x40] sm:$0xff]
        %v2291 = vld [vmem:[%s648 + $0x48] sm:$0xff]
        %v2292 = vld [vmem:[%s648 + $0x50] sm:$0xff]
        %v2293 = vld [vmem:[%s648 + $0x58] sm:$0xff]
        %v2294 = vld [vmem:[%s648 + $0x60] sm:$0xff]
        %v2295 = vld [vmem:[%s648 + $0x68] sm:$0xff]
        %v2296 = vld [vmem:[%s648 + $0x70] sm:$0xff]
        %v2297 = vld [vmem:[%s648 + $0x78] sm:$0xff]
        %v2298 = vld [vmem:[%s1 + $0x20] sm:$0x1]
        %v2299 = vperm.slane %v2298, 0
        %v2300 = vmul.f32 %v2282, %v2299
        %v2301 = vmul.f32 %v2283, %v2299
        %v2302 = vmul.f32 %v2284, %v2299
        %v2303 = vmul.f32 %v2285, %v2299
        %v2304 = vmul.f32 %v2286, %v2299
        %v2305 = vmul.f32 %v2287, %v2299
        %v2306 = vmul.f32 %v2288, %v2299
        %v2307 = vmul.f32 %v2289, %v2299
        %v2308 = vmul.f32 %v2290, %v2299
        %v2309 = vmul.f32 %v2291, %v2299
        %v2310 = vmul.f32 %v2292, %v2299
        %v2311 = vmul.f32 %v2293, %v2299
        %v2312 = vmul.f32 %v2294, %v2299
        %v2313 = vmul.f32 %v2295, %v2299
        %v2314 = vmul.f32 %v2296, %v2299
        %v2315 = vmul.f32 %v2297, %v2299
        %v2316 = vadd.f32 %v2266, %v2300
        %v2317 = vadd.f32 %v2267, %v2301
        %v2318 = vadd.f32 %v2268, %v2302
        %v2319 = vadd.f32 %v2269, %v2303
        %v2320 = vadd.f32 %v2270, %v2304
        %v2321 = vadd.f32 %v2271, %v2305
        %v2322 = vadd.f32 %v2272, %v2306
        %v2323 = vadd.f32 %v2273, %v2307
        %v2324 = vadd.f32 %v2274, %v2308
        %v2325 = vadd.f32 %v2275, %v2309
        %v2326 = vadd.f32 %v2276, %v2310
        %v2327 = vadd.f32 %v2277, %v2311
        %v2328 = vadd.f32 %v2278, %v2312
        %v2329 = vadd.f32 %v2279, %v2313
        %v2330 = vadd.f32 %v2280, %v2314
        %v2331 = vadd.f32 %v2281, %v2315
        %v2332 = vld [vmem:[%s699] sm:$0xff]
        %v2333 = vld [vmem:[%s699 + $0x8] sm:$0xff]
        %v2334 = vld [vmem:[%s699 + $0x10] sm:$0xff]
        %v2335 = vld [vmem:[%s699 + $0x18] sm:$0xff]
        %v2336 = vld [vmem:[%s699 + $0x20] sm:$0xff]
        %v2337 = vld [vmem:[%s699 + $0x28] sm:$0xff]
        %v2338 = vld [vmem:[%s699 + $0x30] sm:$0xff]
        %v2339 = vld [vmem:[%s699 + $0x38] sm:$0xff]
        %v2340 = vld [vmem:[%s699 + $0x40] sm:$0xff]
        %v2341 = vld [vmem:[%s699 + $0x48] sm:$0xff]
        %v2342 = vld [vmem:[%s699 + $0x50] sm:$0xff]
        %v2343 = vld [vmem:[%s699 + $0x58] sm:$0xff]
        %v2344 = vld [vmem:[%s699 + $0x60] sm:$0xff]
        %v2345 = vld [vmem:[%s699 + $0x68] sm:$0xff]
        %v2346 = vld [vmem:[%s699 + $0x70] sm:$0xff]
        %v2347 = vld [vmem:[%s699 + $0x78] sm:$0xff]
        %v2348 = vld [vmem:[%s1 + $0x27] sm:$0x1]
        %v2349 = vperm.slane %v2348, 0
        %v2350 = vmul.f32 %v2332, %v2349
        %v2351 = vmul.f32 %v2333, %v2349
        %v2352 = vmul.f32 %v2334, %v2349
        %v2353 = vmul.f32 %v2335, %v2349
        %v2354 = vmul.f32 %v2336, %v2349
        %v2355 = vmul.f32 %v2337, %v2349
        %v2356 = vmul.f32 %v2338, %v2349
        %v2357 = vmul.f32 %v2339, %v2349
        %v2358 = vmul.f32 %v2340, %v2349
        %v2359 = vmul.f32 %v2341, %v2349
        %v2360 = vmul.f32 %v2342, %v2349
        %v2361 = vmul.f32 %v2343, %v2349
        %v2362 = vmul.f32 %v2344, %v2349
        %v2363 = vmul.f32 %v2345, %v2349
        %v2364 = vmul.f32 %v2346, %v2349
        %v2365 = vmul.f32 %v2347, %v2349
        %v2366 = vadd.f32 %v2316, %v2350
        %v2367 = vadd.f32 %v2317, %v2351
        %v2368 = vadd.f32 %v2318, %v2352
        %v2369 = vadd.f32 %v2319, %v2353
        %v2370 = vadd.f32 %v2320, %v2354
        %v2371 = vadd.f32 %v2321, %v2355
        %v2372 = vadd.f32 %v2322, %v2356
        %v2373 = vadd.f32 %v2323, %v2357
        %v2374 = vadd.f32 %v2324, %v2358
        %v2375 = vadd.f32 %v2325, %v2359
        %v2376 = vadd.f32 %v2326, %v2360
        %v2377 = vadd.f32 %v2327, %v2361
        %v2378 = vadd.f32 %v2328, %v2362
        %v2379 = vadd.f32 %v2329, %v2363
        %v2380 = vadd.f32 %v2330, %v2364
        %v2381 = vadd.f32 %v2331, %v2365
        %v2382 = vld [vmem:[%s750] sm:$0xff]
        %v2383 = vld [vmem:[%s750 + $0x8] sm:$0xff]
        %v2384 = vld [vmem:[%s750 + $0x10] sm:$0xff]
        %v2385 = vld [vmem:[%s750 + $0x18] sm:$0xff]
        %v2386 = vld [vmem:[%s750 + $0x20] sm:$0xff]
        %v2387 = vld [vmem:[%s750 + $0x28] sm:$0xff]
        %v2388 = vld [vmem:[%s750 + $0x30] sm:$0xff]
        %v2389 = vld [vmem:[%s750 + $0x38] sm:$0xff]
        %v2390 = vld [vmem:[%s750 + $0x40] sm:$0xff]
        %v2391 = vld [vmem:[%s750 + $0x48] sm:$0xff]
        %v2392 = vld [vmem:[%s750 + $0x50] sm:$0xff]
        %v2393 = vld [vmem:[%s750 + $0x58] sm:$0xff]
        %v2394 = vld [vmem:[%s750 + $0x60] sm:$0xff]
        %v2395 = vld [vmem:[%s750 + $0x68] sm:$0xff]
        %v2396 = vld [vmem:[%s750 + $0x70] sm:$0xff]
        %v2397 = vld [vmem:[%s750 + $0x78] sm:$0xff]
        %v2398 = vld [vmem:[%s1 + $0x2e] sm:$0x1]
        %v2399 = vperm.slane %v2398, 0
        %v2400 = vmul.f32 %v2382, %v2399
        %v2401 = vmul.f32 %v2383, %v2399
        %v2402 = vmul.f32 %v2384, %v2399
        %v2403 = vmul.f32 %v2385, %v2399
        %v2404 = vmul.f32 %v2386, %v2399
        %v2405 = vmul.f32 %v2387, %v2399
        %v2406 = vmul.f32 %v2388, %v2399
        %v2407 = vmul.f32 %v2389, %v2399
        %v2408 = vmul.f32 %v2390, %v2399
        %v2409 = vmul.f32 %v2391, %v2399
        %v2410 = vmul.f32 %v2392, %v2399
        %v2411 = vmul.f32 %v2393, %v2399
        %v2412 = vmul.f32 %v2394, %v2399
        %v2413 = vmul.f32 %v2395, %v2399
        %v2414 = vmul.f32 %v2396, %v2399
        %v2415 = vmul.f32 %v2397, %v2399
        %v2416 = vadd.f32 %v2366, %v2400
        %v2417 = vadd.f32 %v2367, %v2401
        %v2418 = vadd.f32 %v2368, %v2402
        %v2419 = vadd.f32 %v2369, %v2403
        %v2420 = vadd.f32 %v2370, %v2404
        %v2421 = vadd.f32 %v2371, %v2405
        %v2422 = vadd.f32 %v2372, %v2406
        %v2423 = vadd.f32 %v2373, %v2407
        %v2424 = vadd.f32 %v2374, %v2408
        %v2425 = vadd.f32 %v2375, %v2409
        %v2426 = vadd.f32 %v2376, %v2410
        %v2427 = vadd.f32 %v2377, %v2411
        %v2428 = vadd.f32 %v2378, %v2412
        %v2429 = vadd.f32 %v2379, %v2413
        %v2430 = vadd.f32 %v2380, %v2414
        %v2431 = vadd.f32 %v2381, %v2415
        %v2432 = vld [vmem:[%s387 + $0xa] sm:$0xff]
        %v2433 = vld [vmem:[%s387 + $0x12] sm:$0xff]
        %v2434 = vld [vmem:[%s387 + $0x2a] sm:$0xff]
        %v2435 = vld [vmem:[%s387 + $0x32] sm:$0xff]
        %v2436 = vld [vmem:[%s387 + $0x4a] sm:$0xff]
        %v2437 = vld [vmem:[%s387 + $0x52] sm:$0xff]
        %v2438 = vld [vmem:[%s387 + $0x6a] sm:$0xff]
        %v2439 = vld [vmem:[%s387 + $0x72] sm:$0xff]
        %v2440 = vld [vmem:[%s387 + $0x8a] sm:$0xff]
        %v2441 = vld [vmem:[%s387 + $0x92] sm:$0xff]
        %v2442 = vld [vmem:[%s387 + $0xaa] sm:$0xff]
        %v2443 = vld [vmem:[%s387 + $0xb2] sm:$0xff]
        %v2444 = vld [vmem:[%s387 + $0xca] sm:$0xff]
        %v2445 = vld [vmem:[%s387 + $0xd2] sm:$0xff]
        %v2446 = vld [vmem:[%s387 + $0xea] sm:$0xff]
        %v2447 = vld [vmem:[%s387 + $0xf2] sm:$0xff]
        %v2448 = vld [vmem:[%s387 + $0x10a] sm:$0xff]
        %v2449 = vld [vmem:[%s387 + $0x112] sm:$0xff]
        %v2450 = vld [vmem:[%s387 + $0x12a] sm:$0xff]
        %v2451 = vld [vmem:[%s387 + $0x132] sm:$0xff]
        %v2452 = vld [vmem:[%s387 + $0x14a] sm:$0xff]
        %v2453 = vld [vmem:[%s387 + $0x152] sm:$0xff]
        %v2454 = vld [vmem:[%s387 + $0x16a] sm:$0xff]
        %v2455 = vld [vmem:[%s387 + $0x172] sm:$0xff]
        %v2456 = vld [vmem:[%s387 + $0x18a] sm:$0xff]
        %v2457 = vld [vmem:[%s387 + $0x192] sm:$0xff]
        %v2458 = vld [vmem:[%s387 + $0x1aa] sm:$0xff]
        %v2459 = vld [vmem:[%s387 + $0x1b2] sm:$0xff]
        %2460 = vst.msk [vmem:[%s829] sm:$0xff] %vm253, %v2432
        %2461 = vst.msk [vmem:[%s829 + $0x8] sm:$0xff] %vm253, %v2433
        %2462 = vst.msk [vmem:[%s829 + $0x10] sm:$0xff] %vm253, %v2434
        %2463 = vst.msk [vmem:[%s829 + $0x18] sm:$0xff] %vm253, %v2435
        %2464 = vst.msk [vmem:[%s829 + $0x20] sm:$0xff] %vm253, %v2436
        %2465 = vst.msk [vmem:[%s829 + $0x28] sm:$0xff] %vm253, %v2437
        %2466 = vst.msk [vmem:[%s829 + $0x30] sm:$0xff] %vm253, %v2438
        %2467 = vst.msk [vmem:[%s829 + $0x38] sm:$0xff] %vm253, %v2439
        %2468 = vst.msk [vmem:[%s829 + $0x40] sm:$0xff] %vm253, %v2440
        %2469 = vst.msk [vmem:[%s829 + $0x48] sm:$0xff] %vm253, %v2441
        %2470 = vst.msk [vmem:[%s829 + $0x50] sm:$0xff] %vm253, %v2442
        %2471 = vst.msk [vmem:[%s829 + $0x58] sm:$0xff] %vm253, %v2443
        %2472 = vst.msk [vmem:[%s829 + $0x60] sm:$0xff] %vm253, %v2444
        %2473 = vst.msk [vmem:[%s829 + $0x68] sm:$0xff] %vm253, %v2445
        %2474 = vst.msk [vmem:[%s829 + $0x70] sm:$0xff] %vm253, %v2446
        %2475 = vst.msk [vmem:[%s829 + $0x78] sm:$0xff] %vm253, %v2447
        %2476 = vst.msk [vmem:[%s829 + $0x80] sm:$0xff] %vm253, %v2448
        %2477 = vst.msk [vmem:[%s829 + $0x88] sm:$0xff] %vm253, %v2449
        %2478 = vst.msk [vmem:[%s829 + $0x90] sm:$0xff] %vm253, %v2450
        %2479 = vst.msk [vmem:[%s829 + $0x98] sm:$0xff] %vm253, %v2451
        %2480 = vst.msk [vmem:[%s829 + $0xa0] sm:$0xff] %vm253, %v2452
        %2481 = vst.msk [vmem:[%s829 + $0xa8] sm:$0xff] %vm253, %v2453
        %2482 = vst.msk [vmem:[%s829 + $0xb0] sm:$0xff] %vm253, %v2454
        %2483 = vst.msk [vmem:[%s829 + $0xb8] sm:$0xff] %vm253, %v2455
        %2484 = vst.msk [vmem:[%s829 + $0xc0] sm:$0xff] %vm253, %v2456
        %2485 = vst.msk [vmem:[%s829 + $0xc8] sm:$0xff] %vm253, %v2457
        %2486 = vst.msk [vmem:[%s829 + $0xd0] sm:$0xff] %vm253, %v2458
        %2487 = vst.msk [vmem:[%s829 + $0xd8] sm:$0xff] %vm253, %v2459
        %v2488 = vld [vmem:[%s829] sm:$0xff]
        %v2489 = vld [vmem:[%s829 + $0x8] sm:$0xff]
        %v2490 = vld [vmem:[%s829 + $0x10] sm:$0xff]
        %v2491 = vld [vmem:[%s829 + $0x18] sm:$0xff]
        %v2492 = vld [vmem:[%s829 + $0x20] sm:$0xff]
        %v2493 = vld [vmem:[%s829 + $0x28] sm:$0xff]
        %v2494 = vld [vmem:[%s829 + $0x30] sm:$0xff]
        %v2495 = vld [vmem:[%s829 + $0x38] sm:$0xff]
        %v2496 = vld [vmem:[%s829 + $0x40] sm:$0xff]
        %v2497 = vld [vmem:[%s829 + $0x48] sm:$0xff]
        %v2498 = vld [vmem:[%s829 + $0x50] sm:$0xff]
        %v2499 = vld [vmem:[%s829 + $0x58] sm:$0xff]
        %v2500 = vld [vmem:[%s829 + $0x60] sm:$0xff]
        %v2501 = vld [vmem:[%s829 + $0x68] sm:$0xff]
        %v2502 = vld [vmem:[%s829 + $0x70] sm:$0xff]
        %v2503 = vld [vmem:[%s829 + $0x78] sm:$0xff]
        %v2504 = vld [vmem:[%s1 + $0x5] sm:$0x1]
        %v2505 = vperm.slane %v2504, 0
        %v2506 = vmul.f32 %v2488, %v2505
        %v2507 = vmul.f32 %v2489, %v2505
        %v2508 = vmul.f32 %v2490, %v2505
        %v2509 = vmul.f32 %v2491, %v2505
        %v2510 = vmul.f32 %v2492, %v2505
        %v2511 = vmul.f32 %v2493, %v2505
        %v2512 = vmul.f32 %v2494, %v2505
        %v2513 = vmul.f32 %v2495, %v2505
        %v2514 = vmul.f32 %v2496, %v2505
        %v2515 = vmul.f32 %v2497, %v2505
        %v2516 = vmul.f32 %v2498, %v2505
        %v2517 = vmul.f32 %v2499, %v2505
        %v2518 = vmul.f32 %v2500, %v2505
        %v2519 = vmul.f32 %v2501, %v2505
        %v2520 = vmul.f32 %v2502, %v2505
        %v2521 = vmul.f32 %v2503, %v2505
        %v2522 = vadd.f32 %v2416, %v2506
        %v2523 = vadd.f32 %v2417, %v2507
        %v2524 = vadd.f32 %v2418, %v2508
        %v2525 = vadd.f32 %v2419, %v2509
        %v2526 = vadd.f32 %v2420, %v2510
        %v2527 = vadd.f32 %v2421, %v2511
        %v2528 = vadd.f32 %v2422, %v2512
        %v2529 = vadd.f32 %v2423, %v2513
        %v2530 = vadd.f32 %v2424, %v2514
        %v2531 = vadd.f32 %v2425, %v2515
        %v2532 = vadd.f32 %v2426, %v2516
        %v2533 = vadd.f32 %v2427, %v2517
        %v2534 = vadd.f32 %v2428, %v2518
        %v2535 = vadd.f32 %v2429, %v2519
        %v2536 = vadd.f32 %v2430, %v2520
        %v2537 = vadd.f32 %v2431, %v2521
        %v2538 = vld [vmem:[%s908] sm:$0xff]
        %v2539 = vld [vmem:[%s908 + $0x8] sm:$0xff]
        %v2540 = vld [vmem:[%s908 + $0x10] sm:$0xff]
        %v2541 = vld [vmem:[%s908 + $0x18] sm:$0xff]
        %v2542 = vld [vmem:[%s908 + $0x20] sm:$0xff]
        %v2543 = vld [vmem:[%s908 + $0x28] sm:$0xff]
        %v2544 = vld [vmem:[%s908 + $0x30] sm:$0xff]
        %v2545 = vld [vmem:[%s908 + $0x38] sm:$0xff]
        %v2546 = vld [vmem:[%s908 + $0x40] sm:$0xff]
        %v2547 = vld [vmem:[%s908 + $0x48] sm:$0xff]
        %v2548 = vld [vmem:[%s908 + $0x50] sm:$0xff]
        %v2549 = vld [vmem:[%s908 + $0x58] sm:$0xff]
        %v2550 = vld [vmem:[%s908 + $0x60] sm:$0xff]
        %v2551 = vld [vmem:[%s908 + $0x68] sm:$0xff]
        %v2552 = vld [vmem:[%s908 + $0x70] sm:$0xff]
        %v2553 = vld [vmem:[%s908 + $0x78] sm:$0xff]
        %v2554 = vld [vmem:[%s1 + $0xc] sm:$0x1]
        %v2555 = vperm.slane %v2554, 0
        %v2556 = vmul.f32 %v2538, %v2555
        %v2557 = vmul.f32 %v2539, %v2555
        %v2558 = vmul.f32 %v2540, %v2555
        %v2559 = vmul.f32 %v2541, %v2555
        %v2560 = vmul.f32 %v2542, %v2555
        %v2561 = vmul.f32 %v2543, %v2555
        %v2562 = vmul.f32 %v2544, %v2555
        %v2563 = vmul.f32 %v2545, %v2555
        %v2564 = vmul.f32 %v2546, %v2555
        %v2565 = vmul.f32 %v2547, %v2555
        %v2566 = vmul.f32 %v2548, %v2555
        %v2567 = vmul.f32 %v2549, %v2555
        %v2568 = vmul.f32 %v2550, %v2555
        %v2569 = vmul.f32 %v2551, %v2555
        %v2570 = vmul.f32 %v2552, %v2555
        %v2571 = vmul.f32 %v2553, %v2555
        %v2572 = vadd.f32 %v2522, %v2556
        %v2573 = vadd.f32 %v2523, %v2557
        %v2574 = vadd.f32 %v2524, %v2558
        %v2575 = vadd.f32 %v2525, %v2559
        %v2576 = vadd.f32 %v2526, %v2560
        %v2577 = vadd.f32 %v2527, %v2561
        %v2578 = vadd.f32 %v2528, %v2562
        %v2579 = vadd.f32 %v2529, %v2563
        %v2580 = vadd.f32 %v2530, %v2564
        %v2581 = vadd.f32 %v2531, %v2565
        %v2582 = vadd.f32 %v2532, %v2566
        %v2583 = vadd.f32 %v2533, %v2567
        %v2584 = vadd.f32 %v2534, %v2568
        %v2585 = vadd.f32 %v2535, %v2569
        %v2586 = vadd.f32 %v2536, %v2570
        %v2587 = vadd.f32 %v2537, %v2571
        %v2588 = vld [vmem:[%s959] sm:$0xff]
        %v2589 = vld [vmem:[%s959 + $0x8] sm:$0xff]
        %v2590 = vld [vmem:[%s959 + $0x10] sm:$0xff]
        %v2591 = vld [vmem:[%s959 + $0x18] sm:$0xff]
        %v2592 = vld [vmem:[%s959 + $0x20] sm:$0xff]
        %v2593 = vld [vmem:[%s959 + $0x28] sm:$0xff]
        %v2594 = vld [vmem:[%s959 + $0x30] sm:$0xff]
        %v2595 = vld [vmem:[%s959 + $0x38] sm:$0xff]
        %v2596 = vld [vmem:[%s959 + $0x40] sm:$0xff]
        %v2597 = vld [vmem:[%s959 + $0x48] sm:$0xff]
        %v2598 = vld [vmem:[%s959 + $0x50] sm:$0xff]
        %v2599 = vld [vmem:[%s959 + $0x58] sm:$0xff]
        %v2600 = vld [vmem:[%s959 + $0x60] sm:$0xff]
        %v2601 = vld [vmem:[%s959 + $0x68] sm:$0xff]
        %v2602 = vld [vmem:[%s959 + $0x70] sm:$0xff]
        %v2603 = vld [vmem:[%s959 + $0x78] sm:$0xff]
        %v2604 = vld [vmem:[%s1 + $0x13] sm:$0x1]
        %v2605 = vperm.slane %v2604, 0
        %v2606 = vmul.f32 %v2588, %v2605
        %v2607 = vmul.f32 %v2589, %v2605
        %v2608 = vmul.f32 %v2590, %v2605
        %v2609 = vmul.f32 %v2591, %v2605
        %v2610 = vmul.f32 %v2592, %v2605
        %v2611 = vmul.f32 %v2593, %v2605
        %v2612 = vmul.f32 %v2594, %v2605
        %v2613 = vmul.f32 %v2595, %v2605
        %v2614 = vmul.f32 %v2596, %v2605
        %v2615 = vmul.f32 %v2597, %v2605
        %v2616 = vmul.f32 %v2598, %v2605
        %v2617 = vmul.f32 %v2599, %v2605
        %v2618 = vmul.f32 %v2600, %v2605
        %v2619 = vmul.f32 %v2601, %v2605
        %v2620 = vmul.f32 %v2602, %v2605
        %v2621 = vmul.f32 %v2603, %v2605
        %v2622 = vadd.f32 %v2572, %v2606
        %v2623 = vadd.f32 %v2573, %v2607
        %v2624 = vadd.f32 %v2574, %v2608
        %v2625 = vadd.f32 %v2575, %v2609
        %v2626 = vadd.f32 %v2576, %v2610
        %v2627 = vadd.f32 %v2577, %v2611
        %v2628 = vadd.f32 %v2578, %v2612
        %v2629 = vadd.f32 %v2579, %v2613
        %v2630 = vadd.f32 %v2580, %v2614
        %v2631 = vadd.f32 %v2581, %v2615
        %v2632 = vadd.f32 %v2582, %v2616
        %v2633 = vadd.f32 %v2583, %v2617
        %v2634 = vadd.f32 %v2584, %v2618
        %v2635 = vadd.f32 %v2585, %v2619
        %v2636 = vadd.f32 %v2586, %v2620
        %v2637 = vadd.f32 %v2587, %v2621
        %v2638 = vld [vmem:[%s1010] sm:$0xff]
        %v2639 = vld [vmem:[%s1010 + $0x8] sm:$0xff]
        %v2640 = vld [vmem:[%s1010 + $0x10] sm:$0xff]
        %v2641 = vld [vmem:[%s1010 + $0x18] sm:$0xff]
        %v2642 = vld [vmem:[%s1010 + $0x20] sm:$0xff]
        %v2643 = vld [vmem:[%s1010 + $0x28] sm:$0xff]
        %v2644 = vld [vmem:[%s1010 + $0x30] sm:$0xff]
        %v2645 = vld [vmem:[%s1010 + $0x38] sm:$0xff]
        %v2646 = vld [vmem:[%s1010 + $0x40] sm:$0xff]
        %v2647 = vld [vmem:[%s1010 + $0x48] sm:$0xff]
        %v2648 = vld [vmem:[%s1010 + $0x50] sm:$0xff]
        %v2649 = vld [vmem:[%s1010 + $0x58] sm:$0xff]
        %v2650 = vld [vmem:[%s1010 + $0x60] sm:$0xff]
        %v2651 = vld [vmem:[%s1010 + $0x68] sm:$0xff]
        %v2652 = vld [vmem:[%s1010 + $0x70] sm:$0xff]
        %v2653 = vld [vmem:[%s1010 + $0x78] sm:$0xff]
        %v2654 = vld [vmem:[%s1 + $0x1a] sm:$0x1]
        %v2655 = vperm.slane %v2654, 0
        %v2656 = vmul.f32 %v2638, %v2655
        %v2657 = vmul.f32 %v2639, %v2655
        %v2658 = vmul.f32 %v2640, %v2655
        %v2659 = vmul.f32 %v2641, %v2655
        %v2660 = vmul.f32 %v2642, %v2655
        %v2661 = vmul.f32 %v2643, %v2655
        %v2662 = vmul.f32 %v2644, %v2655
        %v2663 = vmul.f32 %v2645, %v2655
        %v2664 = vmul.f32 %v2646, %v2655
        %v2665 = vmul.f32 %v2647, %v2655
        %v2666 = vmul.f32 %v2648, %v2655
        %v2667 = vmul.f32 %v2649, %v2655
        %v2668 = vmul.f32 %v2650, %v2655
        %v2669 = vmul.f32 %v2651, %v2655
        %v2670 = vmul.f32 %v2652, %v2655
        %v2671 = vmul.f32 %v2653, %v2655
        %v2672 = vadd.f32 %v2622, %v2656
        %v2673 = vadd.f32 %v2623, %v2657
        %v2674 = vadd.f32 %v2624, %v2658
        %v2675 = vadd.f32 %v2625, %v2659
        %v2676 = vadd.f32 %v2626, %v2660
        %v2677 = vadd.f32 %v2627, %v2661
        %v2678 = vadd.f32 %v2628, %v2662
        %v2679 = vadd.f32 %v2629, %v2663
        %v2680 = vadd.f32 %v2630, %v2664
        %v2681 = vadd.f32 %v2631, %v2665
        %v2682 = vadd.f32 %v2632, %v2666
        %v2683 = vadd.f32 %v2633, %v2667
        %v2684 = vadd.f32 %v2634, %v2668
        %v2685 = vadd.f32 %v2635, %v2669
        %v2686 = vadd.f32 %v2636, %v2670
        %v2687 = vadd.f32 %v2637, %v2671
        %v2688 = vld [vmem:[%s1061] sm:$0xff]
        %v2689 = vld [vmem:[%s1061 + $0x8] sm:$0xff]
        %v2690 = vld [vmem:[%s1061 + $0x10] sm:$0xff]
        %v2691 = vld [vmem:[%s1061 + $0x18] sm:$0xff]
        %v2692 = vld [vmem:[%s1061 + $0x20] sm:$0xff]
        %v2693 = vld [vmem:[%s1061 + $0x28] sm:$0xff]
        %v2694 = vld [vmem:[%s1061 + $0x30] sm:$0xff]
        %v2695 = vld [vmem:[%s1061 + $0x38] sm:$0xff]
        %v2696 = vld [vmem:[%s1061 + $0x40] sm:$0xff]
        %v2697 = vld [vmem:[%s1061 + $0x48] sm:$0xff]
        %v2698 = vld [vmem:[%s1061 + $0x50] sm:$0xff]
        %v2699 = vld [vmem:[%s1061 + $0x58] sm:$0xff]
        %v2700 = vld [vmem:[%s1061 + $0x60] sm:$0xff]
        %v2701 = vld [vmem:[%s1061 + $0x68] sm:$0xff]
        %v2702 = vld [vmem:[%s1061 + $0x70] sm:$0xff]
        %v2703 = vld [vmem:[%s1061 + $0x78] sm:$0xff]
        %v2704 = vld [vmem:[%s1 + $0x21] sm:$0x1]
        %v2705 = vperm.slane %v2704, 0
        %v2706 = vmul.f32 %v2688, %v2705
        %v2707 = vmul.f32 %v2689, %v2705
        %v2708 = vmul.f32 %v2690, %v2705
        %v2709 = vmul.f32 %v2691, %v2705
        %v2710 = vmul.f32 %v2692, %v2705
        %v2711 = vmul.f32 %v2693, %v2705
        %v2712 = vmul.f32 %v2694, %v2705
        %v2713 = vmul.f32 %v2695, %v2705
        %v2714 = vmul.f32 %v2696, %v2705
        %v2715 = vmul.f32 %v2697, %v2705
        %v2716 = vmul.f32 %v2698, %v2705
        %v2717 = vmul.f32 %v2699, %v2705
        %v2718 = vmul.f32 %v2700, %v2705
        %v2719 = vmul.f32 %v2701, %v2705
        %v2720 = vmul.f32 %v2702, %v2705
        %v2721 = vmul.f32 %v2703, %v2705
        %v2722 = vadd.f32 %v2672, %v2706
        %v2723 = vadd.f32 %v2673, %v2707
        %v2724 = vadd.f32 %v2674, %v2708
        %v2725 = vadd.f32 %v2675, %v2709
        %v2726 = vadd.f32 %v2676, %v2710
        %v2727 = vadd.f32 %v2677, %v2711
        %v2728 = vadd.f32 %v2678, %v2712
        %v2729 = vadd.f32 %v2679, %v2713
        %v2730 = vadd.f32 %v2680, %v2714
        %v2731 = vadd.f32 %v2681, %v2715
        %v2732 = vadd.f32 %v2682, %v2716
        %v2733 = vadd.f32 %v2683, %v2717
        %v2734 = vadd.f32 %v2684, %v2718
        %v2735 = vadd.f32 %v2685, %v2719
        %v2736 = vadd.f32 %v2686, %v2720
        %v2737 = vadd.f32 %v2687, %v2721
        %v2738 = vld [vmem:[%s1112] sm:$0xff]
        %v2739 = vld [vmem:[%s1112 + $0x8] sm:$0xff]
        %v2740 = vld [vmem:[%s1112 + $0x10] sm:$0xff]
        %v2741 = vld [vmem:[%s1112 + $0x18] sm:$0xff]
        %v2742 = vld [vmem:[%s1112 + $0x20] sm:$0xff]
        %v2743 = vld [vmem:[%s1112 + $0x28] sm:$0xff]
        %v2744 = vld [vmem:[%s1112 + $0x30] sm:$0xff]
        %v2745 = vld [vmem:[%s1112 + $0x38] sm:$0xff]
        %v2746 = vld [vmem:[%s1112 + $0x40] sm:$0xff]
        %v2747 = vld [vmem:[%s1112 + $0x48] sm:$0xff]
        %v2748 = vld [vmem:[%s1112 + $0x50] sm:$0xff]
        %v2749 = vld [vmem:[%s1112 + $0x58] sm:$0xff]
        %v2750 = vld [vmem:[%s1112 + $0x60] sm:$0xff]
        %v2751 = vld [vmem:[%s1112 + $0x68] sm:$0xff]
        %v2752 = vld [vmem:[%s1112 + $0x70] sm:$0xff]
        %v2753 = vld [vmem:[%s1112 + $0x78] sm:$0xff]
        %v2754 = vld [vmem:[%s1 + $0x28] sm:$0x1]
        %v2755 = vperm.slane %v2754, 0
        %v2756 = vmul.f32 %v2738, %v2755
        %v2757 = vmul.f32 %v2739, %v2755
        %v2758 = vmul.f32 %v2740, %v2755
        %v2759 = vmul.f32 %v2741, %v2755
        %v2760 = vmul.f32 %v2742, %v2755
        %v2761 = vmul.f32 %v2743, %v2755
        %v2762 = vmul.f32 %v2744, %v2755
        %v2763 = vmul.f32 %v2745, %v2755
        %v2764 = vmul.f32 %v2746, %v2755
        %v2765 = vmul.f32 %v2747, %v2755
        %v2766 = vmul.f32 %v2748, %v2755
        %v2767 = vmul.f32 %v2749, %v2755
        %v2768 = vmul.f32 %v2750, %v2755
        %v2769 = vmul.f32 %v2751, %v2755
        %v2770 = vmul.f32 %v2752, %v2755
        %v2771 = vmul.f32 %v2753, %v2755
        %v2772 = vadd.f32 %v2722, %v2756
        %v2773 = vadd.f32 %v2723, %v2757
        %v2774 = vadd.f32 %v2724, %v2758
        %v2775 = vadd.f32 %v2725, %v2759
        %v2776 = vadd.f32 %v2726, %v2760
        %v2777 = vadd.f32 %v2727, %v2761
        %v2778 = vadd.f32 %v2728, %v2762
        %v2779 = vadd.f32 %v2729, %v2763
        %v2780 = vadd.f32 %v2730, %v2764
        %v2781 = vadd.f32 %v2731, %v2765
        %v2782 = vadd.f32 %v2732, %v2766
        %v2783 = vadd.f32 %v2733, %v2767
        %v2784 = vadd.f32 %v2734, %v2768
        %v2785 = vadd.f32 %v2735, %v2769
        %v2786 = vadd.f32 %v2736, %v2770
        %v2787 = vadd.f32 %v2737, %v2771
        %v2788 = vld [vmem:[%s1163] sm:$0xff]
        %v2789 = vld [vmem:[%s1163 + $0x8] sm:$0xff]
        %v2790 = vld [vmem:[%s1163 + $0x10] sm:$0xff]
        %v2791 = vld [vmem:[%s1163 + $0x18] sm:$0xff]
        %v2792 = vld [vmem:[%s1163 + $0x20] sm:$0xff]
        %v2793 = vld [vmem:[%s1163 + $0x28] sm:$0xff]
        %v2794 = vld [vmem:[%s1163 + $0x30] sm:$0xff]
        %v2795 = vld [vmem:[%s1163 + $0x38] sm:$0xff]
        %v2796 = vld [vmem:[%s1163 + $0x40] sm:$0xff]
        %v2797 = vld [vmem:[%s1163 + $0x48] sm:$0xff]
        %v2798 = vld [vmem:[%s1163 + $0x50] sm:$0xff]
        %v2799 = vld [vmem:[%s1163 + $0x58] sm:$0xff]
        %v2800 = vld [vmem:[%s1163 + $0x60] sm:$0xff]
        %v2801 = vld [vmem:[%s1163 + $0x68] sm:$0xff]
        %v2802 = vld [vmem:[%s1163 + $0x70] sm:$0xff]
        %v2803 = vld [vmem:[%s1163 + $0x78] sm:$0xff]
        %v2804 = vld [vmem:[%s1 + $0x2f] sm:$0x1]
        %v2805 = vperm.slane %v2804, 0
        %v2806 = vmul.f32 %v2788, %v2805
        %v2807 = vmul.f32 %v2789, %v2805
        %v2808 = vmul.f32 %v2790, %v2805
        %v2809 = vmul.f32 %v2791, %v2805
        %v2810 = vmul.f32 %v2792, %v2805
        %v2811 = vmul.f32 %v2793, %v2805
        %v2812 = vmul.f32 %v2794, %v2805
        %v2813 = vmul.f32 %v2795, %v2805
        %v2814 = vmul.f32 %v2796, %v2805
        %v2815 = vmul.f32 %v2797, %v2805
        %v2816 = vmul.f32 %v2798, %v2805
        %v2817 = vmul.f32 %v2799, %v2805
        %v2818 = vmul.f32 %v2800, %v2805
        %v2819 = vmul.f32 %v2801, %v2805
        %v2820 = vmul.f32 %v2802, %v2805
        %v2821 = vmul.f32 %v2803, %v2805
        %v2822 = vadd.f32 %v2772, %v2806
        %v2823 = vadd.f32 %v2773, %v2807
        %v2824 = vadd.f32 %v2774, %v2808
        %v2825 = vadd.f32 %v2775, %v2809
        %v2826 = vadd.f32 %v2776, %v2810
        %v2827 = vadd.f32 %v2777, %v2811
        %v2828 = vadd.f32 %v2778, %v2812
        %v2829 = vadd.f32 %v2779, %v2813
        %v2830 = vadd.f32 %v2780, %v2814
        %v2831 = vadd.f32 %v2781, %v2815
        %v2832 = vadd.f32 %v2782, %v2816
        %v2833 = vadd.f32 %v2783, %v2817
        %v2834 = vadd.f32 %v2784, %v2818
        %v2835 = vadd.f32 %v2785, %v2819
        %v2836 = vadd.f32 %v2786, %v2820
        %v2837 = vadd.f32 %v2787, %v2821
        %v2838 = vld [vmem:[%s387 + $0xb] sm:$0xff]
        %v2839 = vld [vmem:[%s387 + $0x13] sm:$0xff]
        %v2840 = vld [vmem:[%s387 + $0x2b] sm:$0xff]
        %v2841 = vld [vmem:[%s387 + $0x33] sm:$0xff]
        %v2842 = vld [vmem:[%s387 + $0x4b] sm:$0xff]
        %v2843 = vld [vmem:[%s387 + $0x53] sm:$0xff]
        %v2844 = vld [vmem:[%s387 + $0x6b] sm:$0xff]
        %v2845 = vld [vmem:[%s387 + $0x73] sm:$0xff]
        %v2846 = vld [vmem:[%s387 + $0x8b] sm:$0xff]
        %v2847 = vld [vmem:[%s387 + $0x93] sm:$0xff]
        %v2848 = vld [vmem:[%s387 + $0xab] sm:$0xff]
        %v2849 = vld [vmem:[%s387 + $0xb3] sm:$0xff]
        %v2850 = vld [vmem:[%s387 + $0xcb] sm:$0xff]
        %v2851 = vld [vmem:[%s387 + $0xd3] sm:$0xff]
        %v2852 = vld [vmem:[%s387 + $0xeb] sm:$0xff]
        %v2853 = vld [vmem:[%s387 + $0xf3] sm:$0xff]
        %v2854 = vld [vmem:[%s387 + $0x10b] sm:$0xff]
        %v2855 = vld [vmem:[%s387 + $0x113] sm:$0xff]
        %v2856 = vld [vmem:[%s387 + $0x12b] sm:$0xff]
        %v2857 = vld [vmem:[%s387 + $0x133] sm:$0xff]
        %v2858 = vld [vmem:[%s387 + $0x14b] sm:$0xff]
        %v2859 = vld [vmem:[%s387 + $0x153] sm:$0xff]
        %v2860 = vld [vmem:[%s387 + $0x16b] sm:$0xff]
        %v2861 = vld [vmem:[%s387 + $0x173] sm:$0xff]
        %v2862 = vld [vmem:[%s387 + $0x18b] sm:$0xff]
        %v2863 = vld [vmem:[%s387 + $0x193] sm:$0xff]
        %v2864 = vld [vmem:[%s387 + $0x1ab] sm:$0xff]
        %v2865 = vld [vmem:[%s387 + $0x1b3] sm:$0xff]
        %2866 = vst.msk [vmem:[#allocation3] sm:$0xff] %vm253, %v2838
        %2867 = vst.msk [vmem:[#allocation3 + $0x8] sm:$0xff] %vm253, %v2839
        %2868 = vst.msk [vmem:[#allocation3 + $0x10] sm:$0xff] %vm253, %v2840
        %2869 = vst.msk [vmem:[#allocation3 + $0x18] sm:$0xff] %vm253, %v2841
        %2870 = vst.msk [vmem:[#allocation3 + $0x20] sm:$0xff] %vm253, %v2842
        %2871 = vst.msk [vmem:[#allocation3 + $0x28] sm:$0xff] %vm253, %v2843
        %2872 = vst.msk [vmem:[#allocation3 + $0x30] sm:$0xff] %vm253, %v2844
        %2873 = vst.msk [vmem:[#allocation3 + $0x38] sm:$0xff] %vm253, %v2845
        %2874 = vst.msk [vmem:[#allocation3 + $0x40] sm:$0xff] %vm253, %v2846
        %2875 = vst.msk [vmem:[#allocation3 + $0x48] sm:$0xff] %vm253, %v2847
        %2876 = vst.msk [vmem:[#allocation3 + $0x50] sm:$0xff] %vm253, %v2848
        %2877 = vst.msk [vmem:[#allocation3 + $0x58] sm:$0xff] %vm253, %v2849
        %2878 = vst.msk [vmem:[#allocation3 + $0x60] sm:$0xff] %vm253, %v2850
        %2879 = vst.msk [vmem:[#allocation3 + $0x68] sm:$0xff] %vm253, %v2851
        %2880 = vst.msk [vmem:[#allocation3 + $0x70] sm:$0xff] %vm253, %v2852
        %2881 = vst.msk [vmem:[#allocation3 + $0x78] sm:$0xff] %vm253, %v2853
        %2882 = vst.msk [vmem:[#allocation3 + $0x80] sm:$0xff] %vm253, %v2854
        %2883 = vst.msk [vmem:[#allocation3 + $0x88] sm:$0xff] %vm253, %v2855
        %2884 = vst.msk [vmem:[#allocation3 + $0x90] sm:$0xff] %vm253, %v2856
        %2885 = vst.msk [vmem:[#allocation3 + $0x98] sm:$0xff] %vm253, %v2857
        %2886 = vst.msk [vmem:[#allocation3 + $0xa0] sm:$0xff] %vm253, %v2858
        %2887 = vst.msk [vmem:[#allocation3 + $0xa8] sm:$0xff] %vm253, %v2859
        %2888 = vst.msk [vmem:[#allocation3 + $0xb0] sm:$0xff] %vm253, %v2860
        %2889 = vst.msk [vmem:[#allocation3 + $0xb8] sm:$0xff] %vm253, %v2861
        %2890 = vst.msk [vmem:[#allocation3 + $0xc0] sm:$0xff] %vm253, %v2862
        %2891 = vst.msk [vmem:[#allocation3 + $0xc8] sm:$0xff] %vm253, %v2863
        %2892 = vst.msk [vmem:[#allocation3 + $0xd0] sm:$0xff] %vm253, %v2864
        %2893 = vst.msk [vmem:[#allocation3 + $0xd8] sm:$0xff] %vm253, %v2865
        %v2894 = vld [vmem:[#allocation3] sm:$0xff]
        %v2895 = vld [vmem:[#allocation3 + $0x8] sm:$0xff]
        %v2896 = vld [vmem:[#allocation3 + $0x10] sm:$0xff]
        %v2897 = vld [vmem:[#allocation3 + $0x18] sm:$0xff]
        %v2898 = vld [vmem:[#allocation3 + $0x20] sm:$0xff]
        %v2899 = vld [vmem:[#allocation3 + $0x28] sm:$0xff]
        %v2900 = vld [vmem:[#allocation3 + $0x30] sm:$0xff]
        %v2901 = vld [vmem:[#allocation3 + $0x38] sm:$0xff]
        %v2902 = vld [vmem:[#allocation3 + $0x40] sm:$0xff]
        %v2903 = vld [vmem:[#allocation3 + $0x48] sm:$0xff]
        %v2904 = vld [vmem:[#allocation3 + $0x50] sm:$0xff]
        %v2905 = vld [vmem:[#allocation3 + $0x58] sm:$0xff]
        %v2906 = vld [vmem:[#allocation3 + $0x60] sm:$0xff]
        %v2907 = vld [vmem:[#allocation3 + $0x68] sm:$0xff]
        %v2908 = vld [vmem:[#allocation3 + $0x70] sm:$0xff]
        %v2909 = vld [vmem:[#allocation3 + $0x78] sm:$0xff]
        %v2910 = vld [vmem:[%s1 + $0x6] sm:$0x1]
        %v2911 = vperm.slane %v2910, 0
        %v2912 = vmul.f32 %v2894, %v2911
        %v2913 = vmul.f32 %v2895, %v2911
        %v2914 = vmul.f32 %v2896, %v2911
        %v2915 = vmul.f32 %v2897, %v2911
        %v2916 = vmul.f32 %v2898, %v2911
        %v2917 = vmul.f32 %v2899, %v2911
        %v2918 = vmul.f32 %v2900, %v2911
        %v2919 = vmul.f32 %v2901, %v2911
        %v2920 = vmul.f32 %v2902, %v2911
        %v2921 = vmul.f32 %v2903, %v2911
        %v2922 = vmul.f32 %v2904, %v2911
        %v2923 = vmul.f32 %v2905, %v2911
        %v2924 = vmul.f32 %v2906, %v2911
        %v2925 = vmul.f32 %v2907, %v2911
        %v2926 = vmul.f32 %v2908, %v2911
        %v2927 = vmul.f32 %v2909, %v2911
        %v2928 = vadd.f32 %v2822, %v2912
        %v2929 = vadd.f32 %v2823, %v2913
        %v2930 = vadd.f32 %v2824, %v2914
        %v2931 = vadd.f32 %v2825, %v2915
        %v2932 = vadd.f32 %v2826, %v2916
        %v2933 = vadd.f32 %v2827, %v2917
        %v2934 = vadd.f32 %v2828, %v2918
        %v2935 = vadd.f32 %v2829, %v2919
        %v2936 = vadd.f32 %v2830, %v2920
        %v2937 = vadd.f32 %v2831, %v2921
        %v2938 = vadd.f32 %v2832, %v2922
        %v2939 = vadd.f32 %v2833, %v2923
        %v2940 = vadd.f32 %v2834, %v2924
        %v2941 = vadd.f32 %v2835, %v2925
        %v2942 = vadd.f32 %v2836, %v2926
        %v2943 = vadd.f32 %v2837, %v2927
        %v2944 = vld [vmem:[%s495] sm:$0xff]
        %v2945 = vld [vmem:[%s495 + $0x8] sm:$0xff]
        %v2946 = vld [vmem:[%s495 + $0x10] sm:$0xff]
        %v2947 = vld [vmem:[%s495 + $0x18] sm:$0xff]
        %v2948 = vld [vmem:[%s495 + $0x20] sm:$0xff]
        %v2949 = vld [vmem:[%s495 + $0x28] sm:$0xff]
        %v2950 = vld [vmem:[%s495 + $0x30] sm:$0xff]
        %v2951 = vld [vmem:[%s495 + $0x38] sm:$0xff]
        %v2952 = vld [vmem:[%s495 + $0x40] sm:$0xff]
        %v2953 = vld [vmem:[%s495 + $0x48] sm:$0xff]
        %v2954 = vld [vmem:[%s495 + $0x50] sm:$0xff]
        %v2955 = vld [vmem:[%s495 + $0x58] sm:$0xff]
        %v2956 = vld [vmem:[%s495 + $0x60] sm:$0xff]
        %v2957 = vld [vmem:[%s495 + $0x68] sm:$0xff]
        %v2958 = vld [vmem:[%s495 + $0x70] sm:$0xff]
        %v2959 = vld [vmem:[%s495 + $0x78] sm:$0xff]
        %v2960 = vld [vmem:[%s1 + $0xd] sm:$0x1]
        %v2961 = vperm.slane %v2960, 0
        %v2962 = vmul.f32 %v2944, %v2961
        %v2963 = vmul.f32 %v2945, %v2961
        %v2964 = vmul.f32 %v2946, %v2961
        %v2965 = vmul.f32 %v2947, %v2961
        %v2966 = vmul.f32 %v2948, %v2961
        %v2967 = vmul.f32 %v2949, %v2961
        %v2968 = vmul.f32 %v2950, %v2961
        %v2969 = vmul.f32 %v2951, %v2961
        %v2970 = vmul.f32 %v2952, %v2961
        %v2971 = vmul.f32 %v2953, %v2961
        %v2972 = vmul.f32 %v2954, %v2961
        %v2973 = vmul.f32 %v2955, %v2961
        %v2974 = vmul.f32 %v2956, %v2961
        %v2975 = vmul.f32 %v2957, %v2961
        %v2976 = vmul.f32 %v2958, %v2961
        %v2977 = vmul.f32 %v2959, %v2961
        %v2978 = vadd.f32 %v2928, %v2962
        %v2979 = vadd.f32 %v2929, %v2963
        %v2980 = vadd.f32 %v2930, %v2964
        %v2981 = vadd.f32 %v2931, %v2965
        %v2982 = vadd.f32 %v2932, %v2966
        %v2983 = vadd.f32 %v2933, %v2967
        %v2984 = vadd.f32 %v2934, %v2968
        %v2985 = vadd.f32 %v2935, %v2969
        %v2986 = vadd.f32 %v2936, %v2970
        %v2987 = vadd.f32 %v2937, %v2971
        %v2988 = vadd.f32 %v2938, %v2972
        %v2989 = vadd.f32 %v2939, %v2973
        %v2990 = vadd.f32 %v2940, %v2974
        %v2991 = vadd.f32 %v2941, %v2975
        %v2992 = vadd.f32 %v2942, %v2976
        %v2993 = vadd.f32 %v2943, %v2977
        %v2994 = vld [vmem:[%s546] sm:$0xff]
        %v2995 = vld [vmem:[%s546 + $0x8] sm:$0xff]
        %v2996 = vld [vmem:[%s546 + $0x10] sm:$0xff]
        %v2997 = vld [vmem:[%s546 + $0x18] sm:$0xff]
        %v2998 = vld [vmem:[%s546 + $0x20] sm:$0xff]
        %v2999 = vld [vmem:[%s546 + $0x28] sm:$0xff]
        %v3000 = vld [vmem:[%s546 + $0x30] sm:$0xff]
        %v3001 = vld [vmem:[%s546 + $0x38] sm:$0xff]
        %v3002 = vld [vmem:[%s546 + $0x40] sm:$0xff]
        %v3003 = vld [vmem:[%s546 + $0x48] sm:$0xff]
        %v3004 = vld [vmem:[%s546 + $0x50] sm:$0xff]
        %v3005 = vld [vmem:[%s546 + $0x58] sm:$0xff]
        %v3006 = vld [vmem:[%s546 + $0x60] sm:$0xff]
        %v3007 = vld [vmem:[%s546 + $0x68] sm:$0xff]
        %v3008 = vld [vmem:[%s546 + $0x70] sm:$0xff]
        %v3009 = vld [vmem:[%s546 + $0x78] sm:$0xff]
        %v3010 = vld [vmem:[%s1 + $0x14] sm:$0x1]
        %v3011 = vperm.slane %v3010, 0
        %v3012 = vmul.f32 %v2994, %v3011
        %v3013 = vmul.f32 %v2995, %v3011
        %v3014 = vmul.f32 %v2996, %v3011
        %v3015 = vmul.f32 %v2997, %v3011
        %v3016 = vmul.f32 %v2998, %v3011
        %v3017 = vmul.f32 %v2999, %v3011
        %v3018 = vmul.f32 %v3000, %v3011
        %v3019 = vmul.f32 %v3001, %v3011
        %v3020 = vmul.f32 %v3002, %v3011
        %v3021 = vmul.f32 %v3003, %v3011
        %v3022 = vmul.f32 %v3004, %v3011
        %v3023 = vmul.f32 %v3005, %v3011
        %v3024 = vmul.f32 %v3006, %v3011
        %v3025 = vmul.f32 %v3007, %v3011
        %v3026 = vmul.f32 %v3008, %v3011
        %v3027 = vmul.f32 %v3009, %v3011
        %v3028 = vadd.f32 %v2978, %v3012
        %v3029 = vadd.f32 %v2979, %v3013
        %v3030 = vadd.f32 %v2980, %v3014
        %v3031 = vadd.f32 %v2981, %v3015
        %v3032 = vadd.f32 %v2982, %v3016
        %v3033 = vadd.f32 %v2983, %v3017
        %v3034 = vadd.f32 %v2984, %v3018
        %v3035 = vadd.f32 %v2985, %v3019
        %v3036 = vadd.f32 %v2986, %v3020
        %v3037 = vadd.f32 %v2987, %v3021
        %v3038 = vadd.f32 %v2988, %v3022
        %v3039 = vadd.f32 %v2989, %v3023
        %v3040 = vadd.f32 %v2990, %v3024
        %v3041 = vadd.f32 %v2991, %v3025
        %v3042 = vadd.f32 %v2992, %v3026
        %v3043 = vadd.f32 %v2993, %v3027
        %v3044 = vld [vmem:[%s597] sm:$0xff]
        %v3045 = vld [vmem:[%s597 + $0x8] sm:$0xff]
        %v3046 = vld [vmem:[%s597 + $0x10] sm:$0xff]
        %v3047 = vld [vmem:[%s597 + $0x18] sm:$0xff]
        %v3048 = vld [vmem:[%s597 + $0x20] sm:$0xff]
        %v3049 = vld [vmem:[%s597 + $0x28] sm:$0xff]
        %v3050 = vld [vmem:[%s597 + $0x30] sm:$0xff]
        %v3051 = vld [vmem:[%s597 + $0x38] sm:$0xff]
        %v3052 = vld [vmem:[%s597 + $0x40] sm:$0xff]
        %v3053 = vld [vmem:[%s597 + $0x48] sm:$0xff]
        %v3054 = vld [vmem:[%s597 + $0x50] sm:$0xff]
        %v3055 = vld [vmem:[%s597 + $0x58] sm:$0xff]
        %v3056 = vld [vmem:[%s597 + $0x60] sm:$0xff]
        %v3057 = vld [vmem:[%s597 + $0x68] sm:$0xff]
        %v3058 = vld [vmem:[%s597 + $0x70] sm:$0xff]
        %v3059 = vld [vmem:[%s597 + $0x78] sm:$0xff]
        %v3060 = vld [vmem:[%s1 + $0x1b] sm:$0x1]
        %v3061 = vperm.slane %v3060, 0
        %v3062 = vmul.f32 %v3044, %v3061
        %v3063 = vmul.f32 %v3045, %v3061
        %v3064 = vmul.f32 %v3046, %v3061
        %v3065 = vmul.f32 %v3047, %v3061
        %v3066 = vmul.f32 %v3048, %v3061
        %v3067 = vmul.f32 %v3049, %v3061
        %v3068 = vmul.f32 %v3050, %v3061
        %v3069 = vmul.f32 %v3051, %v3061
        %v3070 = vmul.f32 %v3052, %v3061
        %v3071 = vmul.f32 %v3053, %v3061
        %v3072 = vmul.f32 %v3054, %v3061
        %v3073 = vmul.f32 %v3055, %v3061
        %v3074 = vmul.f32 %v3056, %v3061
        %v3075 = vmul.f32 %v3057, %v3061
        %v3076 = vmul.f32 %v3058, %v3061
        %v3077 = vmul.f32 %v3059, %v3061
        %v3078 = vadd.f32 %v3028, %v3062
        %v3079 = vadd.f32 %v3029, %v3063
        %v3080 = vadd.f32 %v3030, %v3064
        %v3081 = vadd.f32 %v3031, %v3065
        %v3082 = vadd.f32 %v3032, %v3066
        %v3083 = vadd.f32 %v3033, %v3067
        %v3084 = vadd.f32 %v3034, %v3068
        %v3085 = vadd.f32 %v3035, %v3069
        %v3086 = vadd.f32 %v3036, %v3070
        %v3087 = vadd.f32 %v3037, %v3071
        %v3088 = vadd.f32 %v3038, %v3072
        %v3089 = vadd.f32 %v3039, %v3073
        %v3090 = vadd.f32 %v3040, %v3074
        %v3091 = vadd.f32 %v3041, %v3075
        %v3092 = vadd.f32 %v3042, %v3076
        %v3093 = vadd.f32 %v3043, %v3077
        %v3094 = vld [vmem:[%s648] sm:$0xff]
        %v3095 = vld [vmem:[%s648 + $0x8] sm:$0xff]
        %v3096 = vld [vmem:[%s648 + $0x10] sm:$0xff]
        %v3097 = vld [vmem:[%s648 + $0x18] sm:$0xff]
        %v3098 = vld [vmem:[%s648 + $0x20] sm:$0xff]
        %v3099 = vld [vmem:[%s648 + $0x28] sm:$0xff]
        %v3100 = vld [vmem:[%s648 + $0x30] sm:$0xff]
        %v3101 = vld [vmem:[%s648 + $0x38] sm:$0xff]
        %v3102 = vld [vmem:[%s648 + $0x40] sm:$0xff]
        %v3103 = vld [vmem:[%s648 + $0x48] sm:$0xff]
        %v3104 = vld [vmem:[%s648 + $0x50] sm:$0xff]
        %v3105 = vld [vmem:[%s648 + $0x58] sm:$0xff]
        %v3106 = vld [vmem:[%s648 + $0x60] sm:$0xff]
        %v3107 = vld [vmem:[%s648 + $0x68] sm:$0xff]
        %v3108 = vld [vmem:[%s648 + $0x70] sm:$0xff]
        %v3109 = vld [vmem:[%s648 + $0x78] sm:$0xff]
        %v3110 = vld [vmem:[%s1 + $0x22] sm:$0x1]
        %v3111 = vperm.slane %v3110, 0
        %v3112 = vmul.f32 %v3094, %v3111
        %v3113 = vmul.f32 %v3095, %v3111
        %v3114 = vmul.f32 %v3096, %v3111
        %v3115 = vmul.f32 %v3097, %v3111
        %v3116 = vmul.f32 %v3098, %v3111
        %v3117 = vmul.f32 %v3099, %v3111
        %v3118 = vmul.f32 %v3100, %v3111
        %v3119 = vmul.f32 %v3101, %v3111
        %v3120 = vmul.f32 %v3102, %v3111
        %v3121 = vmul.f32 %v3103, %v3111
        %v3122 = vmul.f32 %v3104, %v3111
        %v3123 = vmul.f32 %v3105, %v3111
        %v3124 = vmul.f32 %v3106, %v3111
        %v3125 = vmul.f32 %v3107, %v3111
        %v3126 = vmul.f32 %v3108, %v3111
        %v3127 = vmul.f32 %v3109, %v3111
        %v3128 = vadd.f32 %v3078, %v3112
        %v3129 = vadd.f32 %v3079, %v3113
        %v3130 = vadd.f32 %v3080, %v3114
        %v3131 = vadd.f32 %v3081, %v3115
        %v3132 = vadd.f32 %v3082, %v3116
        %v3133 = vadd.f32 %v3083, %v3117
        %v3134 = vadd.f32 %v3084, %v3118
        %v3135 = vadd.f32 %v3085, %v3119
        %v3136 = vadd.f32 %v3086, %v3120
        %v3137 = vadd.f32 %v3087, %v3121
        %v3138 = vadd.f32 %v3088, %v3122
        %v3139 = vadd.f32 %v3089, %v3123
        %v3140 = vadd.f32 %v3090, %v3124
        %v3141 = vadd.f32 %v3091, %v3125
        %v3142 = vadd.f32 %v3092, %v3126
        %v3143 = vadd.f32 %v3093, %v3127
        %v3144 = vld [vmem:[%s699] sm:$0xff]
        %v3145 = vld [vmem:[%s699 + $0x8] sm:$0xff]
        %v3146 = vld [vmem:[%s699 + $0x10] sm:$0xff]
        %v3147 = vld [vmem:[%s699 + $0x18] sm:$0xff]
        %v3148 = vld [vmem:[%s699 + $0x20] sm:$0xff]
        %v3149 = vld [vmem:[%s699 + $0x28] sm:$0xff]
        %v3150 = vld [vmem:[%s699 + $0x30] sm:$0xff]
        %v3151 = vld [vmem:[%s699 + $0x38] sm:$0xff]
        %v3152 = vld [vmem:[%s699 + $0x40] sm:$0xff]
        %v3153 = vld [vmem:[%s699 + $0x48] sm:$0xff]
        %v3154 = vld [vmem:[%s699 + $0x50] sm:$0xff]
        %v3155 = vld [vmem:[%s699 + $0x58] sm:$0xff]
        %v3156 = vld [vmem:[%s699 + $0x60] sm:$0xff]
        %v3157 = vld [vmem:[%s699 + $0x68] sm:$0xff]
        %v3158 = vld [vmem:[%s699 + $0x70] sm:$0xff]
        %v3159 = vld [vmem:[%s699 + $0x78] sm:$0xff]
        %v3160 = vld [vmem:[%s1 + $0x29] sm:$0x1]
        %v3161 = vperm.slane %v3160, 0
        %v3162 = vmul.f32 %v3144, %v3161
        %v3163 = vmul.f32 %v3145, %v3161
        %v3164 = vmul.f32 %v3146, %v3161
        %v3165 = vmul.f32 %v3147, %v3161
        %v3166 = vmul.f32 %v3148, %v3161
        %v3167 = vmul.f32 %v3149, %v3161
        %v3168 = vmul.f32 %v3150, %v3161
        %v3169 = vmul.f32 %v3151, %v3161
        %v3170 = vmul.f32 %v3152, %v3161
        %v3171 = vmul.f32 %v3153, %v3161
        %v3172 = vmul.f32 %v3154, %v3161
        %v3173 = vmul.f32 %v3155, %v3161
        %v3174 = vmul.f32 %v3156, %v3161
        %v3175 = vmul.f32 %v3157, %v3161
        %v3176 = vmul.f32 %v3158, %v3161
        %v3177 = vmul.f32 %v3159, %v3161
        %v3178 = vadd.f32 %v3128, %v3162
        %v3179 = vadd.f32 %v3129, %v3163
        %v3180 = vadd.f32 %v3130, %v3164
        %v3181 = vadd.f32 %v3131, %v3165
        %v3182 = vadd.f32 %v3132, %v3166
        %v3183 = vadd.f32 %v3133, %v3167
        %v3184 = vadd.f32 %v3134, %v3168
        %v3185 = vadd.f32 %v3135, %v3169
        %v3186 = vadd.f32 %v3136, %v3170
        %v3187 = vadd.f32 %v3137, %v3171
        %v3188 = vadd.f32 %v3138, %v3172
        %v3189 = vadd.f32 %v3139, %v3173
        %v3190 = vadd.f32 %v3140, %v3174
        %v3191 = vadd.f32 %v3141, %v3175
        %v3192 = vadd.f32 %v3142, %v3176
        %v3193 = vadd.f32 %v3143, %v3177
        %v3194 = vld [vmem:[%s750] sm:$0xff]
        %v3195 = vld [vmem:[%s750 + $0x8] sm:$0xff]
        %v3196 = vld [vmem:[%s750 + $0x10] sm:$0xff]
        %v3197 = vld [vmem:[%s750 + $0x18] sm:$0xff]
        %v3198 = vld [vmem:[%s750 + $0x20] sm:$0xff]
        %v3199 = vld [vmem:[%s750 + $0x28] sm:$0xff]
        %v3200 = vld [vmem:[%s750 + $0x30] sm:$0xff]
        %v3201 = vld [vmem:[%s750 + $0x38] sm:$0xff]
        %v3202 = vld [vmem:[%s750 + $0x40] sm:$0xff]
        %v3203 = vld [vmem:[%s750 + $0x48] sm:$0xff]
        %v3204 = vld [vmem:[%s750 + $0x50] sm:$0xff]
        %v3205 = vld [vmem:[%s750 + $0x58] sm:$0xff]
        %v3206 = vld [vmem:[%s750 + $0x60] sm:$0xff]
        %v3207 = vld [vmem:[%s750 + $0x68] sm:$0xff]
        %v3208 = vld [vmem:[%s750 + $0x70] sm:$0xff]
        %v3209 = vld [vmem:[%s750 + $0x78] sm:$0xff]
        %v3210 = vld [vmem:[%s1 + $0x30] sm:$0x1]
        %v3211 = vperm.slane %v3210, 0
        %v3212 = vmul.f32 %v3194, %v3211
        %v3213 = vmul.f32 %v3195, %v3211
        %v3214 = vmul.f32 %v3196, %v3211
        %v3215 = vmul.f32 %v3197, %v3211
        %v3216 = vmul.f32 %v3198, %v3211
        %v3217 = vmul.f32 %v3199, %v3211
        %v3218 = vmul.f32 %v3200, %v3211
        %v3219 = vmul.f32 %v3201, %v3211
        %v3220 = vmul.f32 %v3202, %v3211
        %v3221 = vmul.f32 %v3203, %v3211
        %v3222 = vmul.f32 %v3204, %v3211
        %v3223 = vmul.f32 %v3205, %v3211
        %v3224 = vmul.f32 %v3206, %v3211
        %v3225 = vmul.f32 %v3207, %v3211
        %v3226 = vmul.f32 %v3208, %v3211
        %v3227 = vmul.f32 %v3209, %v3211
        %v3228 = vadd.f32 %v3178, %v3212
        %v3229 = vadd.f32 %v3179, %v3213
        %v3230 = vadd.f32 %v3180, %v3214
        %v3231 = vadd.f32 %v3181, %v3215
        %v3232 = vadd.f32 %v3182, %v3216
        %v3233 = vadd.f32 %v3183, %v3217
        %v3234 = vadd.f32 %v3184, %v3218
        %v3235 = vadd.f32 %v3185, %v3219
        %v3236 = vadd.f32 %v3186, %v3220
        %v3237 = vadd.f32 %v3187, %v3221
        %v3238 = vadd.f32 %v3188, %v3222
        %v3239 = vadd.f32 %v3189, %v3223
        %v3240 = vadd.f32 %v3190, %v3224
        %v3241 = vadd.f32 %v3191, %v3225
        %v3242 = vadd.f32 %v3192, %v3226
        %v3243 = vadd.f32 %v3193, %v3227
        %v3244 = vsel %vm253, %v3228, 0.0
        %3245 = vadd.xlane.f32.xlu0 %v3244
        %v3246 = vpop.xlane.xlu0 %3245
        %v3247 = vsel %vm253, %v3229, 0.0
        %3248 = vadd.xlane.f32.xlu0 %v3247
        %v3249 = vpop.xlane.xlu0 %3248
        %v3250 = vsel %vm253, %v3230, 0.0
        %3251 = vadd.xlane.f32.xlu0 %v3250
        %v3252 = vpop.xlane.xlu0 %3251
        %v3253 = vsel %vm253, %v3231, 0.0
        %3254 = vadd.xlane.f32.xlu0 %v3253
        %v3255 = vpop.xlane.xlu0 %3254
        %v3256 = vsel %vm253, %v3232, 0.0
        %3257 = vadd.xlane.f32.xlu0 %v3256
        %v3258 = vpop.xlane.xlu0 %3257
        %v3259 = vsel %vm253, %v3233, 0.0
        %3260 = vadd.xlane.f32.xlu0 %v3259
        %v3261 = vpop.xlane.xlu0 %3260
        %v3262 = vsel %vm253, %v3234, 0.0
        %3263 = vadd.xlane.f32.xlu0 %v3262
        %v3264 = vpop.xlane.xlu0 %3263
        %v3265 = vsel %vm253, %v3235, 0.0
        %3266 = vadd.xlane.f32.xlu0 %v3265
        %v3267 = vpop.xlane.xlu0 %3266
        %v3268 = vsel %vm253, %v3236, 0.0
        %3269 = vadd.xlane.f32.xlu0 %v3268
        %v3270 = vpop.xlane.xlu0 %3269
        %v3271 = vsel %vm253, %v3237, 0.0
        %3272 = vadd.xlane.f32.xlu0 %v3271
        %v3273 = vpop.xlane.xlu0 %3272
        %v3274 = vsel %vm253, %v3238, 0.0
        %3275 = vadd.xlane.f32.xlu0 %v3274
        %v3276 = vpop.xlane.xlu0 %3275
        %v3277 = vsel %vm253, %v3239, 0.0
        %3278 = vadd.xlane.f32.xlu0 %v3277
        %v3279 = vpop.xlane.xlu0 %3278
        %v3280 = vsel %vm253, %v3240, 0.0
        %3281 = vadd.xlane.f32.xlu0 %v3280
        %v3282 = vpop.xlane.xlu0 %3281
        %v3283 = vsel %vm253, %v3241, 0.0
        %3284 = vadd.xlane.f32.xlu0 %v3283
        %v3285 = vpop.xlane.xlu0 %3284
        %v3286 = vsel %vm253, %v3242, 0.0
        %3287 = vadd.xlane.f32.xlu0 %v3286
        %v3288 = vpop.xlane.xlu0 %3287
        %v3289 = vsel %vm253, %v3243, 0.0
        %3290 = vadd.xlane.f32.xlu0 %v3289
        %v3291 = vpop.xlane.xlu0 %3290
        %v3292 = vrcp.pop 16.0
        %v3293 = vmul.f32 16.0, %v3292
        %v3294 = vsub.f32 1.0, %v3293
        %v3295 = vmul.f32 %v3292, %v3294
        %v3296 = vadd.f32 %v3292, %v3295
        %vm3297 = vweird.f32 %v3292
        %v3298 = vsel %vm3297, %v3292, %v3296
        %v3299 = vmul.f32 %v3246, %v3298
        %v3300 = vmul.f32 %v3249, %v3298
        %v3301 = vmul.f32 %v3252, %v3298
        %v3302 = vmul.f32 %v3255, %v3298
        %v3303 = vmul.f32 %v3258, %v3298
        %v3304 = vmul.f32 %v3261, %v3298
        %v3305 = vmul.f32 %v3264, %v3298
        %v3306 = vmul.f32 %v3267, %v3298
        %v3307 = vmul.f32 %v3270, %v3298
        %v3308 = vmul.f32 %v3273, %v3298
        %v3309 = vmul.f32 %v3276, %v3298
        %v3310 = vmul.f32 %v3279, %v3298
        %v3311 = vmul.f32 %v3282, %v3298
        %v3312 = vmul.f32 %v3285, %v3298
        %v3313 = vmul.f32 %v3288, %v3298
        %v3314 = vmul.f32 %v3291, %v3298
        %v3315 = vsub.f32 %v3228, %v3299
        %v3316 = vsub.f32 %v3229, %v3300
        %v3317 = vsub.f32 %v3230, %v3301
        %v3318 = vsub.f32 %v3231, %v3302
        %v3319 = vsub.f32 %v3232, %v3303
        %v3320 = vsub.f32 %v3233, %v3304
        %v3321 = vsub.f32 %v3234, %v3305
        %v3322 = vsub.f32 %v3235, %v3306
        %v3323 = vsub.f32 %v3236, %v3307
        %v3324 = vsub.f32 %v3237, %v3308
        %v3325 = vsub.f32 %v3238, %v3309
        %v3326 = vsub.f32 %v3239, %v3310
        %v3327 = vsub.f32 %v3240, %v3311
        %v3328 = vsub.f32 %v3241, %v3312
        %v3329 = vsub.f32 %v3242, %v3313
        %v3330 = vsub.f32 %v3243, %v3314
        %v3331 = vmul.f32 %v3315, %v3315
        %v3332 = vmul.f32 %v3316, %v3316
        %v3333 = vmul.f32 %v3317, %v3317
        %v3334 = vmul.f32 %v3318, %v3318
        %v3335 = vmul.f32 %v3319, %v3319
        %v3336 = vmul.f32 %v3320, %v3320
        %v3337 = vmul.f32 %v3321, %v3321
        %v3338 = vmul.f32 %v3322, %v3322
        %v3339 = vmul.f32 %v3323, %v3323
        %v3340 = vmul.f32 %v3324, %v3324
        %v3341 = vmul.f32 %v3325, %v3325
        %v3342 = vmul.f32 %v3326, %v3326
        %v3343 = vmul.f32 %v3327, %v3327
        %v3344 = vmul.f32 %v3328, %v3328
        %v3345 = vmul.f32 %v3329, %v3329
        %v3346 = vmul.f32 %v3330, %v3330
        %v3347 = vsel %vm253, %v3331, 0.0
        %3348 = vadd.xlane.f32.xlu0 %v3347
        %v3349 = vpop.xlane.xlu0 %3348
        %v3350 = vsel %vm253, %v3332, 0.0
        %3351 = vadd.xlane.f32.xlu0 %v3350
        %v3352 = vpop.xlane.xlu0 %3351
        %v3353 = vsel %vm253, %v3333, 0.0
        %3354 = vadd.xlane.f32.xlu0 %v3353
        %v3355 = vpop.xlane.xlu0 %3354
        %v3356 = vsel %vm253, %v3334, 0.0
        %3357 = vadd.xlane.f32.xlu0 %v3356
        %v3358 = vpop.xlane.xlu0 %3357
        %v3359 = vsel %vm253, %v3335, 0.0
        %3360 = vadd.xlane.f32.xlu0 %v3359
        %v3361 = vpop.xlane.xlu0 %3360
        %v3362 = vsel %vm253, %v3336, 0.0
        %3363 = vadd.xlane.f32.xlu0 %v3362
        %v3364 = vpop.xlane.xlu0 %3363
        %v3365 = vsel %vm253, %v3337, 0.0
        %3366 = vadd.xlane.f32.xlu0 %v3365
        %v3367 = vpop.xlane.xlu0 %3366
        %v3368 = vsel %vm253, %v3338, 0.0
        %3369 = vadd.xlane.f32.xlu0 %v3368
        %v3370 = vpop.xlane.xlu0 %3369
        %v3371 = vsel %vm253, %v3339, 0.0
        %3372 = vadd.xlane.f32.xlu0 %v3371
        %v3373 = vpop.xlane.xlu0 %3372
        %v3374 = vsel %vm253, %v3340, 0.0
        %3375 = vadd.xlane.f32.xlu0 %v3374
        %v3376 = vpop.xlane.xlu0 %3375
        %v3377 = vsel %vm253, %v3341, 0.0
        %3378 = vadd.xlane.f32.xlu0 %v3377
        %v3379 = vpop.xlane.xlu0 %3378
        %v3380 = vsel %vm253, %v3342, 0.0
        %3381 = vadd.xlane.f32.xlu0 %v3380
        %v3382 = vpop.xlane.xlu0 %3381
        %v3383 = vsel %vm253, %v3343, 0.0
        %3384 = vadd.xlane.f32.xlu0 %v3383
        %v3385 = vpop.xlane.xlu0 %3384
        %v3386 = vsel %vm253, %v3344, 0.0
        %3387 = vadd.xlane.f32.xlu0 %v3386
        %v3388 = vpop.xlane.xlu0 %3387
        %v3389 = vsel %vm253, %v3345, 0.0
        %3390 = vadd.xlane.f32.xlu0 %v3389
        %v3391 = vpop.xlane.xlu0 %3390
        %v3392 = vsel %vm253, %v3346, 0.0
        %3393 = vadd.xlane.f32.xlu0 %v3392
        %v3394 = vpop.xlane.xlu0 %3393
        %v3395 = vmul.f32 %v3349, %v3298
        %v3396 = vmul.f32 %v3352, %v3298
        %v3397 = vmul.f32 %v3355, %v3298
        %v3398 = vmul.f32 %v3358, %v3298
        %v3399 = vmul.f32 %v3361, %v3298
        %v3400 = vmul.f32 %v3364, %v3298
        %v3401 = vmul.f32 %v3367, %v3298
        %v3402 = vmul.f32 %v3370, %v3298
        %v3403 = vmul.f32 %v3373, %v3298
        %v3404 = vmul.f32 %v3376, %v3298
        %v3405 = vmul.f32 %v3379, %v3298
        %v3406 = vmul.f32 %v3382, %v3298
        %v3407 = vmul.f32 %v3385, %v3298
        %v3408 = vmul.f32 %v3388, %v3298
        %v3409 = vmul.f32 %v3391, %v3298
        %v3410 = vmul.f32 %v3394, %v3298
        %v3411 = vadd.f32 %v3395, 1e-06
        %v3412 = vadd.f32 %v3396, 1e-06
        %v3413 = vadd.f32 %v3397, 1e-06
        %v3414 = vadd.f32 %v3398, 1e-06
        %v3415 = vadd.f32 %v3399, 1e-06
        %v3416 = vadd.f32 %v3400, 1e-06
        %v3417 = vadd.f32 %v3401, 1e-06
        %v3418 = vadd.f32 %v3402, 1e-06
        %v3419 = vadd.f32 %v3403, 1e-06
        %v3420 = vadd.f32 %v3404, 1e-06
        %v3421 = vadd.f32 %v3405, 1e-06
        %v3422 = vadd.f32 %v3406, 1e-06
        %v3423 = vadd.f32 %v3407, 1e-06
        %v3424 = vadd.f32 %v3408, 1e-06
        %v3425 = vadd.f32 %v3409, 1e-06
        %v3426 = vadd.f32 %v3410, 1e-06
        %v3427 = vrsqrt.pop %v3411
        %v3428 = vmul.f32 %v3427, %v3411
        %v3429 = vmul.f32 %v3428, %v3427
        %v3430 = vmul.f32 0.5, %v3429
        %v3431 = vsub.f32 1.5, %v3430
        %v3432 = vmul.f32 %v3427, %v3431
        %vm3433 = vweird.f32 %v3411
        %vm3434 = vweird.f32 %v3427
        %vm3435 = vmor %vm3433, %vm3434
        %v3436 = vsel %vm3435, %v3427, %v3432
        %v3437 = vrsqrt.pop %v3412
        %v3438 = vmul.f32 %v3437, %v3412
        %v3439 = vmul.f32 %v3438, %v3437
        %v3440 = vmul.f32 0.5, %v3439
        %v3441 = vsub.f32 1.5, %v3440
        %v3442 = vmul.f32 %v3437, %v3441
        %vm3443 = vweird.f32 %v3412
        %vm3444 = vweird.f32 %v3437
        %vm3445 = vmor %vm3443, %vm3444
        %v3446 = vsel %vm3445, %v3437, %v3442
        %v3447 = vrsqrt.pop %v3413
        %v3448 = vmul.f32 %v3447, %v3413
        %v3449 = vmul.f32 %v3448, %v3447
        %v3450 = vmul.f32 0.5, %v3449
        %v3451 = vsub.f32 1.5, %v3450
        %v3452 = vmul.f32 %v3447, %v3451
        %vm3453 = vweird.f32 %v3413
        %vm3454 = vweird.f32 %v3447
        %vm3455 = vmor %vm3453, %vm3454
        %v3456 = vsel %vm3455, %v3447, %v3452
        %v3457 = vrsqrt.pop %v3414
        %v3458 = vmul.f32 %v3457, %v3414
        %v3459 = vmul.f32 %v3458, %v3457
        %v3460 = vmul.f32 0.5, %v3459
        %v3461 = vsub.f32 1.5, %v3460
        %v3462 = vmul.f32 %v3457, %v3461
        %vm3463 = vweird.f32 %v3414
        %vm3464 = vweird.f32 %v3457
        %vm3465 = vmor %vm3463, %vm3464
        %v3466 = vsel %vm3465, %v3457, %v3462
        %v3467 = vrsqrt.pop %v3415
        %v3468 = vmul.f32 %v3467, %v3415
        %v3469 = vmul.f32 %v3468, %v3467
        %v3470 = vmul.f32 0.5, %v3469
        %v3471 = vsub.f32 1.5, %v3470
        %v3472 = vmul.f32 %v3467, %v3471
        %vm3473 = vweird.f32 %v3415
        %vm3474 = vweird.f32 %v3467
        %vm3475 = vmor %vm3473, %vm3474
        %v3476 = vsel %vm3475, %v3467, %v3472
        %v3477 = vrsqrt.pop %v3416
        %v3478 = vmul.f32 %v3477, %v3416
        %v3479 = vmul.f32 %v3478, %v3477
        %v3480 = vmul.f32 0.5, %v3479
        %v3481 = vsub.f32 1.5, %v3480
        %v3482 = vmul.f32 %v3477, %v3481
        %vm3483 = vweird.f32 %v3416
        %vm3484 = vweird.f32 %v3477
        %vm3485 = vmor %vm3483, %vm3484
        %v3486 = vsel %vm3485, %v3477, %v3482
        %v3487 = vrsqrt.pop %v3417
        %v3488 = vmul.f32 %v3487, %v3417
        %v3489 = vmul.f32 %v3488, %v3487
        %v3490 = vmul.f32 0.5, %v3489
        %v3491 = vsub.f32 1.5, %v3490
        %v3492 = vmul.f32 %v3487, %v3491
        %vm3493 = vweird.f32 %v3417
        %vm3494 = vweird.f32 %v3487
        %vm3495 = vmor %vm3493, %vm3494
        %v3496 = vsel %vm3495, %v3487, %v3492
        %v3497 = vrsqrt.pop %v3418
        %v3498 = vmul.f32 %v3497, %v3418
        %v3499 = vmul.f32 %v3498, %v3497
        %v3500 = vmul.f32 0.5, %v3499
        %v3501 = vsub.f32 1.5, %v3500
        %v3502 = vmul.f32 %v3497, %v3501
        %vm3503 = vweird.f32 %v3418
        %vm3504 = vweird.f32 %v3497
        %vm3505 = vmor %vm3503, %vm3504
        %v3506 = vsel %vm3505, %v3497, %v3502
        %v3507 = vrsqrt.pop %v3419
        %v3508 = vmul.f32 %v3507, %v3419
        %v3509 = vmul.f32 %v3508, %v3507
        %v3510 = vmul.f32 0.5, %v3509
        %v3511 = vsub.f32 1.5, %v3510
        %v3512 = vmul.f32 %v3507, %v3511
        %vm3513 = vweird.f32 %v3419
        %vm3514 = vweird.f32 %v3507
        %vm3515 = vmor %vm3513, %vm3514
        %v3516 = vsel %vm3515, %v3507, %v3512
        %v3517 = vrsqrt.pop %v3420
        %v3518 = vmul.f32 %v3517, %v3420
        %v3519 = vmul.f32 %v3518, %v3517
        %v3520 = vmul.f32 0.5, %v3519
        %v3521 = vsub.f32 1.5, %v3520
        %v3522 = vmul.f32 %v3517, %v3521
        %vm3523 = vweird.f32 %v3420
        %vm3524 = vweird.f32 %v3517
        %vm3525 = vmor %vm3523, %vm3524
        %v3526 = vsel %vm3525, %v3517, %v3522
        %v3527 = vrsqrt.pop %v3421
        %v3528 = vmul.f32 %v3527, %v3421
        %v3529 = vmul.f32 %v3528, %v3527
        %v3530 = vmul.f32 0.5, %v3529
        %v3531 = vsub.f32 1.5, %v3530
        %v3532 = vmul.f32 %v3527, %v3531
        %vm3533 = vweird.f32 %v3421
        %vm3534 = vweird.f32 %v3527
        %vm3535 = vmor %vm3533, %vm3534
        %v3536 = vsel %vm3535, %v3527, %v3532
        %v3537 = vrsqrt.pop %v3422
        %v3538 = vmul.f32 %v3537, %v3422
        %v3539 = vmul.f32 %v3538, %v3537
        %v3540 = vmul.f32 0.5, %v3539
        %v3541 = vsub.f32 1.5, %v3540
        %v3542 = vmul.f32 %v3537, %v3541
        %vm3543 = vweird.f32 %v3422
        %vm3544 = vweird.f32 %v3537
        %vm3545 = vmor %vm3543, %vm3544
        %v3546 = vsel %vm3545, %v3537, %v3542
        %v3547 = vrsqrt.pop %v3423
        %v3548 = vmul.f32 %v3547, %v3423
        %v3549 = vmul.f32 %v3548, %v3547
        %v3550 = vmul.f32 0.5, %v3549
        %v3551 = vsub.f32 1.5, %v3550
        %v3552 = vmul.f32 %v3547, %v3551
        %vm3553 = vweird.f32 %v3423
        %vm3554 = vweird.f32 %v3547
        %vm3555 = vmor %vm3553, %vm3554
        %v3556 = vsel %vm3555, %v3547, %v3552
        %v3557 = vrsqrt.pop %v3424
        %v3558 = vmul.f32 %v3557, %v3424
        %v3559 = vmul.f32 %v3558, %v3557
        %v3560 = vmul.f32 0.5, %v3559
        %v3561 = vsub.f32 1.5, %v3560
        %v3562 = vmul.f32 %v3557, %v3561
        %vm3563 = vweird.f32 %v3424
        %vm3564 = vweird.f32 %v3557
        %vm3565 = vmor %vm3563, %vm3564
        %v3566 = vsel %vm3565, %v3557, %v3562
        %v3567 = vrsqrt.pop %v3425
        %v3568 = vmul.f32 %v3567, %v3425
        %v3569 = vmul.f32 %v3568, %v3567
        %v3570 = vmul.f32 0.5, %v3569
        %v3571 = vsub.f32 1.5, %v3570
        %v3572 = vmul.f32 %v3567, %v3571
        %vm3573 = vweird.f32 %v3425
        %vm3574 = vweird.f32 %v3567
        %vm3575 = vmor %vm3573, %vm3574
        %v3576 = vsel %vm3575, %v3567, %v3572
        %v3577 = vrsqrt.pop %v3426
        %v3578 = vmul.f32 %v3577, %v3426
        %v3579 = vmul.f32 %v3578, %v3577
        %v3580 = vmul.f32 0.5, %v3579
        %v3581 = vsub.f32 1.5, %v3580
        %v3582 = vmul.f32 %v3577, %v3581
        %vm3583 = vweird.f32 %v3426
        %vm3584 = vweird.f32 %v3577
        %vm3585 = vmor %vm3583, %vm3584
        %v3586 = vsel %vm3585, %v3577, %v3582
        %v3587 = vmul.f32 %v3315, %v3436
        %v3588 = vmul.f32 %v3316, %v3446
        %v3589 = vmul.f32 %v3317, %v3456
        %v3590 = vmul.f32 %v3318, %v3466
        %v3591 = vmul.f32 %v3319, %v3476
        %v3592 = vmul.f32 %v3320, %v3486
        %v3593 = vmul.f32 %v3321, %v3496
        %v3594 = vmul.f32 %v3322, %v3506
        %v3595 = vmul.f32 %v3323, %v3516
        %v3596 = vmul.f32 %v3324, %v3526
        %v3597 = vmul.f32 %v3325, %v3536
        %v3598 = vmul.f32 %v3326, %v3546
        %v3599 = vmul.f32 %v3327, %v3556
        %v3600 = vmul.f32 %v3328, %v3566
        %v3601 = vmul.f32 %v3329, %v3576
        %v3602 = vmul.f32 %v3330, %v3586
        %v3603 = vperm.slane %v377, 0
        %v3604 = vmul.f32 %v3587, %v3603
        %v3605 = vmul.f32 %v3588, %v3603
        %v3606 = vmul.f32 %v3589, %v3603
        %v3607 = vmul.f32 %v3590, %v3603
        %v3608 = vmul.f32 %v3591, %v3603
        %v3609 = vmul.f32 %v3592, %v3603
        %v3610 = vmul.f32 %v3593, %v3603
        %v3611 = vmul.f32 %v3594, %v3603
        %v3612 = vmul.f32 %v3595, %v3603
        %v3613 = vmul.f32 %v3596, %v3603
        %v3614 = vmul.f32 %v3597, %v3603
        %v3615 = vmul.f32 %v3598, %v3603
        %v3616 = vmul.f32 %v3599, %v3603
        %v3617 = vmul.f32 %v3600, %v3603
        %v3618 = vmul.f32 %v3601, %v3603
        %v3619 = vmul.f32 %v3602, %v3603
        %v3620 = vperm.slane %v378, 0
        %v3621 = vadd.f32 %v3604, %v3620
        %v3622 = vadd.f32 %v3605, %v3620
        %v3623 = vadd.f32 %v3606, %v3620
        %v3624 = vadd.f32 %v3607, %v3620
        %v3625 = vadd.f32 %v3608, %v3620
        %v3626 = vadd.f32 %v3609, %v3620
        %v3627 = vadd.f32 %v3610, %v3620
        %v3628 = vadd.f32 %v3611, %v3620
        %v3629 = vadd.f32 %v3612, %v3620
        %v3630 = vadd.f32 %v3613, %v3620
        %v3631 = vadd.f32 %v3614, %v3620
        %v3632 = vadd.f32 %v3615, %v3620
        %v3633 = vadd.f32 %v3616, %v3620
        %v3634 = vadd.f32 %v3617, %v3620
        %v3635 = vadd.f32 %v3618, %v3620
        %v3636 = vadd.f32 %v3619, %v3620
        %v3637 = vpack.c.bf16 %v3621, %v3621
        %v3638 = vpack.c.bf16 %v3622, %v3622
        %v3639 = vpack.c.bf16 %v3623, %v3623
        %v3640 = vpack.c.bf16 %v3624, %v3624
        %v3641 = vpack.c.bf16 %v3625, %v3625
        %v3642 = vpack.c.bf16 %v3626, %v3626
        %v3643 = vpack.c.bf16 %v3627, %v3627
        %v3644 = vpack.c.bf16 %v3628, %v3628
        %v3645 = vpack.c.bf16 %v3629, %v3629
        %v3646 = vpack.c.bf16 %v3630, %v3630
        %v3647 = vpack.c.bf16 %v3631, %v3631
        %v3648 = vpack.c.bf16 %v3632, %v3632
        %v3649 = vpack.c.bf16 %v3633, %v3633
        %v3650 = vpack.c.bf16 %v3634, %v3634
        %v3651 = vpack.c.bf16 %v3635, %v3635
        %v3652 = vpack.c.bf16 %v3636, %v3636
        %s3653 = smul.u32 %s385, 2
        %s3654 = smul.addr %s3653, 4
        %s3655 = scalar_lea.vmem [#allocation4], %s3654
        %vm3656 = vcmask 125952
        %3657 = vst.msk [vmem:[%s3655] sm:$0xf] %vm3656, %v3637
        %3658 = vst.msk [vmem:[%s3655 + $0x4] sm:$0xf] %vm3656, %v3638
        %3659 = vst.msk [vmem:[%s3655 + $0x8] sm:$0xf] %vm3656, %v3639
        %3660 = vst.msk [vmem:[%s3655 + $0xc] sm:$0xf] %vm3656, %v3640
        %3661 = vst.msk [vmem:[%s3655 + $0x10] sm:$0xf] %vm3656, %v3641
        %3662 = vst.msk [vmem:[%s3655 + $0x14] sm:$0xf] %vm3656, %v3642
        %3663 = vst.msk [vmem:[%s3655 + $0x18] sm:$0xf] %vm3656, %v3643
        %3664 = vst.msk [vmem:[%s3655 + $0x1c] sm:$0xf] %vm3656, %v3644
        %3665 = vst.msk [vmem:[%s3655 + $0x20] sm:$0xf] %vm3656, %v3645
        %3666 = vst.msk [vmem:[%s3655 + $0x24] sm:$0xf] %vm3656, %v3646
        %3667 = vst.msk [vmem:[%s3655 + $0x28] sm:$0xf] %vm3656, %v3647
        %3668 = vst.msk [vmem:[%s3655 + $0x2c] sm:$0xf] %vm3656, %v3648
        %3669 = vst.msk [vmem:[%s3655 + $0x30] sm:$0xf] %vm3656, %v3649
        %3670 = vst.msk [vmem:[%s3655 + $0x34] sm:$0xf] %vm3656, %v3650
        %3671 = vst.msk [vmem:[%s3655 + $0x38] sm:$0xf] %vm3656, %v3651
        %3672 = vst.msk [vmem:[%s3655 + $0x3c] sm:$0xf] %vm3656, %v3652
      $region49: #{_lambda_.1} parent=43 // loop_footer
        %s384 = sadd.s32 1, %s380
      $region50: #{_lambda_.1} parent=43 // loop_footer_branch
        %379 = sbr.rel target = $region46
      $region51: #{_lambda_.1} parent=43 // loop_exit
        _
      %v3673 = vld [vmem:[#allocation4] sm:$0xf]
      %v3674 = vld [vmem:[#allocation4 + $0x4] sm:$0xf]
      %v3675 = vld [vmem:[#allocation4 + $0x8] sm:$0xf]
      %v3676 = vld [vmem:[#allocation4 + $0xc] sm:$0xf]
      %v3677 = vld [vmem:[#allocation4 + $0x10] sm:$0xf]
      %v3678 = vld [vmem:[#allocation4 + $0x14] sm:$0xf]
      %v3679 = vld [vmem:[#allocation4 + $0x18] sm:$0xf]
      %v3680 = vld [vmem:[#allocation4 + $0x1c] sm:$0xf]
      %v3681 = vld [vmem:[#allocation4 + $0x20] sm:$0xf]
      %v3682 = vld [vmem:[#allocation4 + $0x24] sm:$0xf]
      %v3683 = vld [vmem:[#allocation4 + $0x28] sm:$0xf]
      %v3684 = vld [vmem:[#allocation4 + $0x2c] sm:$0xf]
      %v3685 = vld [vmem:[#allocation4 + $0x30] sm:$0xf]
      %v3686 = vld [vmem:[#allocation4 + $0x34] sm:$0xf]
      %v3687 = vld [vmem:[#allocation4 + $0x38] sm:$0xf]
      %v3688 = vld [vmem:[#allocation4 + $0x3c] sm:$0xf]
      %v3689 = vld [vmem:[#allocation4 + $0x40] sm:$0xf]
      %v3690 = vld [vmem:[#allocation4 + $0x44] sm:$0xf]
      %v3691 = vld [vmem:[#allocation4 + $0x48] sm:$0xf]
      %v3692 = vld [vmem:[#allocation4 + $0x4c] sm:$0xf]
      %v3693 = vld [vmem:[#allocation4 + $0x50] sm:$0xf]
      %v3694 = vld [vmem:[#allocation4 + $0x54] sm:$0xf]
      %v3695 = vld [vmem:[#allocation4 + $0x58] sm:$0xf]
      %v3696 = vld [vmem:[#allocation4 + $0x5c] sm:$0xf]
      %v3697 = vld [vmem:[#allocation4 + $0x60] sm:$0xf]
      %v3698 = vld [vmem:[#allocation4 + $0x64] sm:$0xf]
      %v3699 = vld [vmem:[#allocation4 + $0x68] sm:$0xf]
      %v3700 = vld [vmem:[#allocation4 + $0x6c] sm:$0xf]
      %v3701 = vld [vmem:[#allocation4 + $0x70] sm:$0xf]
      %v3702 = vld [vmem:[#allocation4 + $0x74] sm:$0xf]
      %v3703 = vld [vmem:[#allocation4 + $0x78] sm:$0xf]
      %v3704 = vld [vmem:[#allocation4 + $0x7c] sm:$0xf]
      %v3705 = vld [vmem:[%s3] sm:$0xf]
      %v3706 = vld [vmem:[%s3 + $0x4] sm:$0xf]
      %v3707 = vld [vmem:[%s4] sm:$0x1]
      %v3709 = vperm.slane %v3707, 0
      %v3743 = vunpack.c.l.b16 %v3673
      %v3744 = vunpack.c.l.b16 %v3674
      %v3745 = vunpack.c.l.b16 %v3675
      %v3746 = vunpack.c.l.b16 %v3676
      %v3747 = vunpack.c.l.b16 %v3677
      %v3748 = vunpack.c.l.b16 %v3678
      %v3749 = vunpack.c.l.b16 %v3679
      %v3750 = vunpack.c.l.b16 %v3680
      %v3751 = vunpack.c.l.b16 %v3681
      %v3752 = vunpack.c.l.b16 %v3682
      %v3753 = vunpack.c.l.b16 %v3683
      %v3754 = vunpack.c.l.b16 %v3684
      %v3755 = vunpack.c.l.b16 %v3685
      %v3756 = vunpack.c.l.b16 %v3686
      %v3757 = vunpack.c.l.b16 %v3687
      %v3758 = vunpack.c.l.b16 %v3688
      %v3759 = vunpack.c.l.b16 %v3689
      %v3760 = vunpack.c.l.b16 %v3690
      %v3761 = vunpack.c.l.b16 %v3691
      %v3762 = vunpack.c.l.b16 %v3692
      %v3763 = vunpack.c.l.b16 %v3693
      %v3764 = vunpack.c.l.b16 %v3694
      %v3765 = vunpack.c.l.b16 %v3695
      %v3766 = vunpack.c.l.b16 %v3696
      %v3767 = vunpack.c.l.b16 %v3697
      %v3768 = vunpack.c.l.b16 %v3698
      %v3769 = vunpack.c.l.b16 %v3699
      %v3770 = vunpack.c.l.b16 %v3700
      %v3771 = vunpack.c.l.b16 %v3701
      %v3772 = vunpack.c.l.b16 %v3702
      %v3773 = vunpack.c.l.b16 %v3703
      %v3774 = vunpack.c.l.b16 %v3704
      %v3775 = vpack.c.b16 %v3744, %v3743
      %v3776 = vpack.c.b16 %v3746, %v3745
      %v3777 = vpack.c.b16 %v3748, %v3747
      %v3778 = vpack.c.b16 %v3750, %v3749
      %v3779 = vpack.c.b16 %v3752, %v3751
      %v3780 = vpack.c.b16 %v3754, %v3753
      %v3781 = vpack.c.b16 %v3756, %v3755
      %v3782 = vpack.c.b16 %v3758, %v3757
      %v3783 = vpack.c.b16 %v3760, %v3759
      %v3784 = vpack.c.b16 %v3762, %v3761
      %v3785 = vpack.c.b16 %v3764, %v3763
      %v3786 = vpack.c.b16 %v3766, %v3765
      %v3787 = vpack.c.b16 %v3768, %v3767
      %v3788 = vpack.c.b16 %v3770, %v3769
      %v3789 = vpack.c.b16 %v3772, %v3771
      %v3790 = vpack.c.b16 %v3774, %v3773
      %v3793 = vunpack.c.l.b16 %v3705
      %v3794 = vunpack.c.l.b16 %v3706
      %v3795 = vpack.c.b16 %v3794, %v3793
      %v3798 = vsel %vm253, %v3775, 0
      %v3801 = vsel %vm253, %v3776, 0
      %v3804 = vsel %vm253, %v3777, 0
      %v3807 = vsel %vm253, %v3778, 0
      %v3810 = vsel %vm253, %v3779, 0
      %v3813 = vsel %vm253, %v3780, 0
      %v3816 = vsel %vm253, %v3781, 0
      %v3819 = vsel %vm253, %v3782, 0
      %v3822 = vsel %vm253, %v3783, 0
      %v3825 = vsel %vm253, %v3784, 0
      %v3828 = vsel %vm253, %v3785, 0
      %v3831 = vsel %vm253, %v3786, 0
      %v3834 = vsel %vm253, %v3787, 0
      %v3837 = vsel %vm253, %v3788, 0
      %v3840 = vsel %vm253, %v3789, 0
      %v3843 = vsel %vm253, %v3790, 0
      %3845 = vmatpush.bf16.msra.mxu0 0
      %3846 = vmatpush.bf16.msra.mxu0 0
      %3847 = vmatpush.bf16.msra.mxu0 0
      %3848 = vmatpush.bf16.msra.mxu0 0
      %3849 = vmatpush.bf16.msra.mxu0 0
      %3850 = vmatpush.bf16.msra.mxu0 0
      %3851 = vmatpush.bf16.msra.mxu0 0
      %3852 = vmatpush.bf16.msra.mxu0 %v3795
      %3853 = vmatmul.bf16.gmra.mxu0 %v3798
      %v3854 = vpop.f32.mrf.mxu0
      %v3855 = vadd.f32 %v3709, %v3854
      %v3856 = vpop.f32.mrf.mxu0
      %v3857 = vadd.f32 %v3709, %v3856
      %3858 = vmatmul.bf16.gmra.mxu0 %v3801
      %v3859 = vpop.f32.mrf.mxu0
      %v3860 = vadd.f32 %v3709, %v3859
      %v3861 = vpop.f32.mrf.mxu0
      %v3862 = vadd.f32 %v3709, %v3861
      %3863 = vmatmul.bf16.gmra.mxu0 %v3804
      %v3864 = vpop.f32.mrf.mxu0
      %v3865 = vadd.f32 %v3709, %v3864
      %v3866 = vpop.f32.mrf.mxu0
      %v3867 = vadd.f32 %v3709, %v3866
      %3868 = vmatmul.bf16.gmra.mxu0 %v3807
      %v3869 = vpop.f32.mrf.mxu0
      %v3870 = vadd.f32 %v3709, %v3869
      %v3871 = vpop.f32.mrf.mxu0
      %v3872 = vadd.f32 %v3709, %v3871
      %3873 = vmatmul.bf16.gmra.mxu0 %v3810
      %v3874 = vpop.f32.mrf.mxu0
      %v3875 = vadd.f32 %v3709, %v3874
      %v3876 = vpop.f32.mrf.mxu0
      %v3877 = vadd.f32 %v3709, %v3876
      %3878 = vmatmul.bf16.gmra.mxu0 %v3813
      %v3879 = vpop.f32.mrf.mxu0
      %v3880 = vadd.f32 %v3709, %v3879
      %v3881 = vpop.f32.mrf.mxu0
      %v3882 = vadd.f32 %v3709, %v3881
      %3883 = vmatmul.bf16.gmra.mxu0 %v3816
      %v3884 = vpop.f32.mrf.mxu0
      %v3885 = vadd.f32 %v3709, %v3884
      %v3886 = vpop.f32.mrf.mxu0
      %v3887 = vadd.f32 %v3709, %v3886
      %3888 = vmatmul.bf16.gmra.mxu0 %v3819
      %v3889 = vpop.f32.mrf.mxu0
      %v3890 = vadd.f32 %v3709, %v3889
      %v3891 = vpop.f32.mrf.mxu0
      %v3892 = vadd.f32 %v3709, %v3891
      %3893 = vmatmul.bf16.gmra.mxu0 %v3822
      %v3894 = vpop.f32.mrf.mxu0
      %v3895 = vadd.f32 %v3709, %v3894
      %v3896 = vpop.f32.mrf.mxu0
      %v3897 = vadd.f32 %v3709, %v3896
      %3898 = vmatmul.bf16.gmra.mxu0 %v3825
      %v3899 = vpop.f32.mrf.mxu0
      %v3900 = vadd.f32 %v3709, %v3899
      %v3901 = vpop.f32.mrf.mxu0
      %v3902 = vadd.f32 %v3709, %v3901
      %3903 = vmatmul.bf16.gmra.mxu0 %v3828
      %v3904 = vpop.f32.mrf.mxu0
      %v3905 = vadd.f32 %v3709, %v3904
      %v3906 = vpop.f32.mrf.mxu0
      %v3907 = vadd.f32 %v3709, %v3906
      %3908 = vmatmul.bf16.gmra.mxu0 %v3831
      %v3909 = vpop.f32.mrf.mxu0
      %v3910 = vadd.f32 %v3709, %v3909
      %v3911 = vpop.f32.mrf.mxu0
      %v3912 = vadd.f32 %v3709, %v3911
      %3913 = vmatmul.bf16.gmra.mxu0 %v3834
      %v3914 = vpop.f32.mrf.mxu0
      %v3915 = vadd.f32 %v3709, %v3914
      %v3916 = vpop.f32.mrf.mxu0
      %v3917 = vadd.f32 %v3709, %v3916
      %3918 = vmatmul.bf16.gmra.mxu0 %v3837
      %v3919 = vpop.f32.mrf.mxu0
      %v3920 = vadd.f32 %v3709, %v3919
      %v3921 = vpop.f32.mrf.mxu0
      %v3922 = vadd.f32 %v3709, %v3921
      %3923 = vmatmul.bf16.gmra.mxu0 %v3840
      %v3924 = vpop.f32.mrf.mxu0
      %v3925 = vadd.f32 %v3709, %v3924
      %v3926 = vpop.f32.mrf.mxu0
      %v3927 = vadd.f32 %v3709, %v3926
      %3928 = vmatmul.bf16.gmra.mxu0 %v3843
      %v3929 = vpop.f32.mrf.mxu0
      %v3930 = vadd.f32 %v3709, %v3929
      %v3931 = vpop.f32.mrf.mxu0
      %v3932 = vadd.f32 %v3709, %v3931
      %3933 = vdwg.mxu0
      %v3934 = vmul.f32 %v3855, 0.5
      %v3935 = vmul.f32 %v3857, 0.5
      %v3936 = vmul.f32 %v3860, 0.5
      %v3937 = vmul.f32 %v3862, 0.5
      %v3938 = vmul.f32 %v3865, 0.5
      %v3939 = vmul.f32 %v3867, 0.5
      %v3940 = vmul.f32 %v3870, 0.5
      %v3941 = vmul.f32 %v3872, 0.5
      %v3942 = vmul.f32 %v3875, 0.5
      %v3943 = vmul.f32 %v3877, 0.5
      %v3944 = vmul.f32 %v3880, 0.5
      %v3945 = vmul.f32 %v3882, 0.5
      %v3946 = vmul.f32 %v3885, 0.5
      %v3947 = vmul.f32 %v3887, 0.5
      %v3948 = vmul.f32 %v3890, 0.5
      %v3949 = vmul.f32 %v3892, 0.5
      %v3950 = vmul.f32 %v3895, 0.5
      %v3951 = vmul.f32 %v3897, 0.5
      %v3952 = vmul.f32 %v3900, 0.5
      %v3953 = vmul.f32 %v3902, 0.5
      %v3954 = vmul.f32 %v3905, 0.5
      %v3955 = vmul.f32 %v3907, 0.5
      %v3956 = vmul.f32 %v3910, 0.5
      %v3957 = vmul.f32 %v3912, 0.5
      %v3958 = vmul.f32 %v3915, 0.5
      %v3959 = vmul.f32 %v3917, 0.5
      %v3960 = vmul.f32 %v3920, 0.5
      %v3961 = vmul.f32 %v3922, 0.5
      %v3962 = vmul.f32 %v3925, 0.5
      %v3963 = vmul.f32 %v3927, 0.5
      %v3964 = vmul.f32 %v3930, 0.5
      %v3965 = vmul.f32 %v3932, 0.5
      %v3966 = vmul.f32 %v3855, 0.044715
      %v3967 = vmul.f32 %v3857, 0.044715
      %v3968 = vmul.f32 %v3860, 0.044715
      %v3969 = vmul.f32 %v3862, 0.044715
      %v3970 = vmul.f32 %v3865, 0.044715
      %v3971 = vmul.f32 %v3867, 0.044715
      %v3972 = vmul.f32 %v3870, 0.044715
      %v3973 = vmul.f32 %v3872, 0.044715
      %v3974 = vmul.f32 %v3875, 0.044715
      %v3975 = vmul.f32 %v3877, 0.044715
      %v3976 = vmul.f32 %v3880, 0.044715
      %v3977 = vmul.f32 %v3882, 0.044715
      %v3978 = vmul.f32 %v3885, 0.044715
      %v3979 = vmul.f32 %v3887, 0.044715
      %v3980 = vmul.f32 %v3890, 0.044715
      %v3981 = vmul.f32 %v3892, 0.044715
      %v3982 = vmul.f32 %v3895, 0.044715
      %v3983 = vmul.f32 %v3897, 0.044715
      %v3984 = vmul.f32 %v3900, 0.044715
      %v3985 = vmul.f32 %v3902, 0.044715
      %v3986 = vmul.f32 %v3905, 0.044715
      %v3987 = vmul.f32 %v3907, 0.044715
      %v3988 = vmul.f32 %v3910, 0.044715
      %v3989 = vmul.f32 %v3912, 0.044715
      %v3990 = vmul.f32 %v3915, 0.044715
      %v3991 = vmul.f32 %v3917, 0.044715
      %v3992 = vmul.f32 %v3920, 0.044715
      %v3993 = vmul.f32 %v3922, 0.044715
      %v3994 = vmul.f32 %v3925, 0.044715
      %v3995 = vmul.f32 %v3927, 0.044715
      %v3996 = vmul.f32 %v3930, 0.044715
      %v3997 = vmul.f32 %v3932, 0.044715
      %v3998 = vmul.f32 %v3966, %v3855
      %v3999 = vmul.f32 %v3967, %v3857
      %v4000 = vmul.f32 %v3968, %v3860
      %v4001 = vmul.f32 %v3969, %v3862
      %v4002 = vmul.f32 %v3970, %v3865
      %v4003 = vmul.f32 %v3971, %v3867
      %v4004 = vmul.f32 %v3972, %v3870
      %v4005 = vmul.f32 %v3973, %v3872
      %v4006 = vmul.f32 %v3974, %v3875
      %v4007 = vmul.f32 %v3975, %v3877
      %v4008 = vmul.f32 %v3976, %v3880
      %v4009 = vmul.f32 %v3977, %v3882
      %v4010 = vmul.f32 %v3978, %v3885
      %v4011 = vmul.f32 %v3979, %v3887
      %v4012 = vmul.f32 %v3980, %v3890
      %v4013 = vmul.f32 %v3981, %v3892
      %v4014 = vmul.f32 %v3982, %v3895
      %v4015 = vmul.f32 %v3983, %v3897
      %v4016 = vmul.f32 %v3984, %v3900
      %v4017 = vmul.f32 %v3985, %v3902
      %v4018 = vmul.f32 %v3986, %v3905
      %v4019 = vmul.f32 %v3987, %v3907
      %v4020 = vmul.f32 %v3988, %v3910
      %v4021 = vmul.f32 %v3989, %v3912
      %v4022 = vmul.f32 %v3990, %v3915
      %v4023 = vmul.f32 %v3991, %v3917
      %v4024 = vmul.f32 %v3992, %v3920
      %v4025 = vmul.f32 %v3993, %v3922
      %v4026 = vmul.f32 %v3994, %v3925
      %v4027 = vmul.f32 %v3995, %v3927
      %v4028 = vmul.f32 %v3996, %v3930
      %v4029 = vmul.f32 %v3997, %v3932
      %v4030 = vmul.f32 %v3998, %v3855
      %v4031 = vmul.f32 %v3999, %v3857
      %v4032 = vmul.f32 %v4000, %v3860
      %v4033 = vmul.f32 %v4001, %v3862
      %v4034 = vmul.f32 %v4002, %v3865
      %v4035 = vmul.f32 %v4003, %v3867
      %v4036 = vmul.f32 %v4004, %v3870
      %v4037 = vmul.f32 %v4005, %v3872
      %v4038 = vmul.f32 %v4006, %v3875
      %v4039 = vmul.f32 %v4007, %v3877
      %v4040 = vmul.f32 %v4008, %v3880
      %v4041 = vmul.f32 %v4009, %v3882
      %v4042 = vmul.f32 %v4010, %v3885
      %v4043 = vmul.f32 %v4011, %v3887
      %v4044 = vmul.f32 %v4012, %v3890
      %v4045 = vmul.f32 %v4013, %v3892
      %v4046 = vmul.f32 %v4014, %v3895
      %v4047 = vmul.f32 %v4015, %v3897
      %v4048 = vmul.f32 %v4016, %v3900
      %v4049 = vmul.f32 %v4017, %v3902
      %v4050 = vmul.f32 %v4018, %v3905
      %v4051 = vmul.f32 %v4019, %v3907
      %v4052 = vmul.f32 %v4020, %v3910
      %v4053 = vmul.f32 %v4021, %v3912
      %v4054 = vmul.f32 %v4022, %v3915
      %v4055 = vmul.f32 %v4023, %v3917
      %v4056 = vmul.f32 %v4024, %v3920
      %v4057 = vmul.f32 %v4025, %v3922
      %v4058 = vmul.f32 %v4026, %v3925
      %v4059 = vmul.f32 %v4027, %v3927
      %v4060 = vmul.f32 %v4028, %v3930
      %v4061 = vmul.f32 %v4029, %v3932
      %v4062 = vadd.f32 %v3855, %v4030
      %v4063 = vadd.f32 %v3857, %v4031
      %v4064 = vadd.f32 %v3860, %v4032
      %v4065 = vadd.f32 %v3862, %v4033
      %v4066 = vadd.f32 %v3865, %v4034
      %v4067 = vadd.f32 %v3867, %v4035
      %v4068 = vadd.f32 %v3870, %v4036
      %v4069 = vadd.f32 %v3872, %v4037
      %v4070 = vadd.f32 %v3875, %v4038
      %v4071 = vadd.f32 %v3877, %v4039
      %v4072 = vadd.f32 %v3880, %v4040
      %v4073 = vadd.f32 %v3882, %v4041
      %v4074 = vadd.f32 %v3885, %v4042
      %v4075 = vadd.f32 %v3887, %v4043
      %v4076 = vadd.f32 %v3890, %v4044
      %v4077 = vadd.f32 %v3892, %v4045
      %v4078 = vadd.f32 %v3895, %v4046
      %v4079 = vadd.f32 %v3897, %v4047
      %v4080 = vadd.f32 %v3900, %v4048
      %v4081 = vadd.f32 %v3902, %v4049
      %v4082 = vadd.f32 %v3905, %v4050
      %v4083 = vadd.f32 %v3907, %v4051
      %v4084 = vadd.f32 %v3910, %v4052
      %v4085 = vadd.f32 %v3912, %v4053
      %v4086 = vadd.f32 %v3915, %v4054
      %v4087 = vadd.f32 %v3917, %v4055
      %v4088 = vadd.f32 %v3920, %v4056
      %v4089 = vadd.f32 %v3922, %v4057
      %v4090 = vadd.f32 %v3925, %v4058
      %v4091 = vadd.f32 %v3927, %v4059
      %v4092 = vadd.f32 %v3930, %v4060
      %v4093 = vadd.f32 %v3932, %v4061
      %v4094 = vmul.f32 %v4062, 0.7978846
      %v4095 = vmul.f32 %v4063, 0.7978846
      %v4096 = vmul.f32 %v4064, 0.7978846
      %v4097 = vmul.f32 %v4065, 0.7978846
      %v4098 = vmul.f32 %v4066, 0.7978846
      %v4099 = vmul.f32 %v4067, 0.7978846
      %v4100 = vmul.f32 %v4068, 0.7978846
      %v4101 = vmul.f32 %v4069, 0.7978846
      %v4102 = vmul.f32 %v4070, 0.7978846
      %v4103 = vmul.f32 %v4071, 0.7978846
      %v4104 = vmul.f32 %v4072, 0.7978846
      %v4105 = vmul.f32 %v4073, 0.7978846
      %v4106 = vmul.f32 %v4074, 0.7978846
      %v4107 = vmul.f32 %v4075, 0.7978846
      %v4108 = vmul.f32 %v4076, 0.7978846
      %v4109 = vmul.f32 %v4077, 0.7978846
      %v4110 = vmul.f32 %v4078, 0.7978846
      %v4111 = vmul.f32 %v4079, 0.7978846
      %v4112 = vmul.f32 %v4080, 0.7978846
      %v4113 = vmul.f32 %v4081, 0.7978846
      %v4114 = vmul.f32 %v4082, 0.7978846
      %v4115 = vmul.f32 %v4083, 0.7978846
      %v4116 = vmul.f32 %v4084, 0.7978846
      %v4117 = vmul.f32 %v4085, 0.7978846
      %v4118 = vmul.f32 %v4086, 0.7978846
      %v4119 = vmul.f32 %v4087, 0.7978846
      %v4120 = vmul.f32 %v4088, 0.7978846
      %v4121 = vmul.f32 %v4089, 0.7978846
      %v4122 = vmul.f32 %v4090, 0.7978846
      %v4123 = vmul.f32 %v4091, 0.7978846
      %v4124 = vmul.f32 %v4092, 0.7978846
      %v4125 = vmul.f32 %v4093, 0.7978846
      %v4126 = vtanh.pop %v4094
      %v4127 = vtanh.pop %v4095
      %v4128 = vtanh.pop %v4096
      %v4129 = vtanh.pop %v4097
      %v4130 = vtanh.pop %v4098
      %v4131 = vtanh.pop %v4099
      %v4132 = vtanh.pop %v4100
      %v4133 = vtanh.pop %v4101
      %v4134 = vtanh.pop %v4102
      %v4135 = vtanh.pop %v4103
      %v4136 = vtanh.pop %v4104
      %v4137 = vtanh.pop %v4105
      %v4138 = vtanh.pop %v4106
      %v4139 = vtanh.pop %v4107
      %v4140 = vtanh.pop %v4108
      %v4141 = vtanh.pop %v4109
      %v4142 = vtanh.pop %v4110
      %v4143 = vtanh.pop %v4111
      %v4144 = vtanh.pop %v4112
      %v4145 = vtanh.pop %v4113
      %v4146 = vtanh.pop %v4114
      %v4147 = vtanh.pop %v4115
      %v4148 = vtanh.pop %v4116
      %v4149 = vtanh.pop %v4117
      %v4150 = vtanh.pop %v4118
      %v4151 = vtanh.pop %v4119
      %v4152 = vtanh.pop %v4120
      %v4153 = vtanh.pop %v4121
      %v4154 = vtanh.pop %v4122
      %v4155 = vtanh.pop %v4123
      %v4156 = vtanh.pop %v4124
      %v4157 = vtanh.pop %v4125
      %v4158 = vadd.f32 %v4126, 1.0
      %v4159 = vadd.f32 %v4127, 1.0
      %v4160 = vadd.f32 %v4128, 1.0
      %v4161 = vadd.f32 %v4129, 1.0
      %v4162 = vadd.f32 %v4130, 1.0
      %v4163 = vadd.f32 %v4131, 1.0
      %v4164 = vadd.f32 %v4132, 1.0
      %v4165 = vadd.f32 %v4133, 1.0
      %v4166 = vadd.f32 %v4134, 1.0
      %v4167 = vadd.f32 %v4135, 1.0
      %v4168 = vadd.f32 %v4136, 1.0
      %v4169 = vadd.f32 %v4137, 1.0
      %v4170 = vadd.f32 %v4138, 1.0
      %v4171 = vadd.f32 %v4139, 1.0
      %v4172 = vadd.f32 %v4140, 1.0
      %v4173 = vadd.f32 %v4141, 1.0
      %v4174 = vadd.f32 %v4142, 1.0
      %v4175 = vadd.f32 %v4143, 1.0
      %v4176 = vadd.f32 %v4144, 1.0
      %v4177 = vadd.f32 %v4145, 1.0
      %v4178 = vadd.f32 %v4146, 1.0
      %v4179 = vadd.f32 %v4147, 1.0
      %v4180 = vadd.f32 %v4148, 1.0
      %v4181 = vadd.f32 %v4149, 1.0
      %v4182 = vadd.f32 %v4150, 1.0
      %v4183 = vadd.f32 %v4151, 1.0
      %v4184 = vadd.f32 %v4152, 1.0
      %v4185 = vadd.f32 %v4153, 1.0
      %v4186 = vadd.f32 %v4154, 1.0
      %v4187 = vadd.f32 %v4155, 1.0
      %v4188 = vadd.f32 %v4156, 1.0
      %v4189 = vadd.f32 %v4157, 1.0
      %v4190 = vmul.f32 %v3934, %v4158
      %v4191 = vmul.f32 %v3935, %v4159
      %v4192 = vmul.f32 %v3936, %v4160
      %v4193 = vmul.f32 %v3937, %v4161
      %v4194 = vmul.f32 %v3938, %v4162
      %v4195 = vmul.f32 %v3939, %v4163
      %v4196 = vmul.f32 %v3940, %v4164
      %v4197 = vmul.f32 %v3941, %v4165
      %v4198 = vmul.f32 %v3942, %v4166
      %v4199 = vmul.f32 %v3943, %v4167
      %v4200 = vmul.f32 %v3944, %v4168
      %v4201 = vmul.f32 %v3945, %v4169
      %v4202 = vmul.f32 %v3946, %v4170
      %v4203 = vmul.f32 %v3947, %v4171
      %v4204 = vmul.f32 %v3948, %v4172
      %v4205 = vmul.f32 %v3949, %v4173
      %v4206 = vmul.f32 %v3950, %v4174
      %v4207 = vmul.f32 %v3951, %v4175
      %v4208 = vmul.f32 %v3952, %v4176
      %v4209 = vmul.f32 %v3953, %v4177
      %v4210 = vmul.f32 %v3954, %v4178
      %v4211 = vmul.f32 %v3955, %v4179
      %v4212 = vmul.f32 %v3956, %v4180
      %v4213 = vmul.f32 %v3957, %v4181
      %v4214 = vmul.f32 %v3958, %v4182
      %v4215 = vmul.f32 %v3959, %v4183
      %v4216 = vmul.f32 %v3960, %v4184
      %v4217 = vmul.f32 %v3961, %v4185
      %v4218 = vmul.f32 %v3962, %v4186
      %v4219 = vmul.f32 %v3963, %v4187
      %v4220 = vmul.f32 %v3964, %v4188
      %v4221 = vmul.f32 %v3965, %v4189
      %v4222 = vpack.c.bf16 %v4191, %v4190
      %v4223 = vpack.c.bf16 %v4193, %v4192
      %v4224 = vpack.c.bf16 %v4195, %v4194
      %v4225 = vpack.c.bf16 %v4197, %v4196
      %v4226 = vpack.c.bf16 %v4199, %v4198
      %v4227 = vpack.c.bf16 %v4201, %v4200
      %v4228 = vpack.c.bf16 %v4203, %v4202
      %v4229 = vpack.c.bf16 %v4205, %v4204
      %v4230 = vpack.c.bf16 %v4207, %v4206
      %v4231 = vpack.c.bf16 %v4209, %v4208
      %v4232 = vpack.c.bf16 %v4211, %v4210
      %v4233 = vpack.c.bf16 %v4213, %v4212
      %v4234 = vpack.c.bf16 %v4215, %v4214
      %v4235 = vpack.c.bf16 %v4217, %v4216
      %v4236 = vpack.c.bf16 %v4219, %v4218
      %v4237 = vpack.c.bf16 %v4221, %v4220
      %v4238 = vld [vmem:[%s5] sm:$0xf]
      %v4239 = vld [vmem:[%s5 + $0x4] sm:$0xf]
      %v4240 = vld [vmem:[%s5 + $0x8] sm:$0xf]
      %v4241 = vld [vmem:[%s5 + $0xc] sm:$0xf]
      %v4242 = vld [vmem:[%s5 + $0x10] sm:$0xf]
      %v4243 = vld [vmem:[%s5 + $0x14] sm:$0xf]
      %v4244 = vld [vmem:[%s5 + $0x18] sm:$0xf]
      %v4245 = vld [vmem:[%s5 + $0x1c] sm:$0xf]
      %v4246 = vld [vmem:[%s2 + $0x3] sm:$0x1]
      %v4247 = vperm.slane %v4246, 0
      %v4256 = vunpack.c.l.b16 %v4238
      %v4257 = vunpack.c.l.b16 %v4239
      %v4258 = vunpack.c.l.b16 %v4240
      %v4259 = vunpack.c.l.b16 %v4241
      %v4260 = vunpack.c.l.b16 %v4242
      %v4261 = vunpack.c.l.b16 %v4243
      %v4262 = vunpack.c.l.b16 %v4244
      %v4263 = vunpack.c.l.b16 %v4245
      %v4264 = vpack.c.b16 %v4257, %v4256
      %v4265 = vpack.c.b16 %v4259, %v4258
      %v4266 = vpack.c.b16 %v4261, %v4260
      %v4267 = vpack.c.b16 %v4263, %v4262
      %vm4272 = vcmask 523264
      %v4274 = vsel %vm4272, %v4222, 0
      %v4277 = vsel %vm4272, %v4223, 0
      %v4280 = vsel %vm4272, %v4224, 0
      %v4283 = vsel %vm4272, %v4225, 0
      %v4286 = vsel %vm4272, %v4226, 0
      %v4289 = vsel %vm4272, %v4227, 0
      %v4292 = vsel %vm4272, %v4228, 0
      %v4295 = vsel %vm4272, %v4229, 0
      %v4298 = vsel %vm4272, %v4230, 0
      %v4301 = vsel %vm4272, %v4231, 0
      %v4304 = vsel %vm4272, %v4232, 0
      %v4307 = vsel %vm4272, %v4233, 0
      %v4310 = vsel %vm4272, %v4234, 0
      %v4313 = vsel %vm4272, %v4235, 0
      %v4316 = vsel %vm4272, %v4236, 0
      %v4319 = vsel %vm4272, %v4237, 0
      %4321 = vmatpush.bf16.msra.mxu0 0
      %4322 = vmatpush.bf16.msra.mxu0 0
      %4323 = vmatpush.bf16.msra.mxu0 0
      %4324 = vmatpush.bf16.msra.mxu0 0
      %4325 = vmatpush.bf16.msra.mxu0 %v4267
      %4326 = vmatpush.bf16.msra.mxu0 %v4266
      %4327 = vmatpush.bf16.msra.mxu0 %v4265
      %4328 = vmatpush.bf16.msra.mxu0 %v4264
      %4329 = vmatmul.bf16.gmra.mxu0 %v4274
      %v4330 = vpop.f32.mrf.mxu0
      %v4331 = vadd.f32 %v4247, %v4330
      %v4332 = vpop.f32.mrf.mxu0
      %v4333 = vadd.f32 %v4247, %v4332
      %4334 = vmatmul.bf16.gmra.mxu0 %v4277
      %v4335 = vpop.f32.mrf.mxu0
      %v4336 = vadd.f32 %v4247, %v4335
      %v4337 = vpop.f32.mrf.mxu0
      %v4338 = vadd.f32 %v4247, %v4337
      %4339 = vmatmul.bf16.gmra.mxu0 %v4280
      %v4340 = vpop.f32.mrf.mxu0
      %v4341 = vadd.f32 %v4247, %v4340
      %v4342 = vpop.f32.mrf.mxu0
      %v4343 = vadd.f32 %v4247, %v4342
      %4344 = vmatmul.bf16.gmra.mxu0 %v4283
      %v4345 = vpop.f32.mrf.mxu0
      %v4346 = vadd.f32 %v4247, %v4345
      %v4347 = vpop.f32.mrf.mxu0
      %v4348 = vadd.f32 %v4247, %v4347
      %4349 = vmatmul.bf16.gmra.mxu0 %v4286
      %v4350 = vpop.f32.mrf.mxu0
      %v4351 = vadd.f32 %v4247, %v4350
      %v4352 = vpop.f32.mrf.mxu0
      %v4353 = vadd.f32 %v4247, %v4352
      %4354 = vmatmul.bf16.gmra.mxu0 %v4289
      %v4355 = vpop.f32.mrf.mxu0
      %v4356 = vadd.f32 %v4247, %v4355
      %v4357 = vpop.f32.mrf.mxu0
      %v4358 = vadd.f32 %v4247, %v4357
      %4359 = vmatmul.bf16.gmra.mxu0 %v4292
      %v4360 = vpop.f32.mrf.mxu0
      %v4361 = vadd.f32 %v4247, %v4360
      %v4362 = vpop.f32.mrf.mxu0
      %v4363 = vadd.f32 %v4247, %v4362
      %4364 = vmatmul.bf16.gmra.mxu0 %v4295
      %v4365 = vpop.f32.mrf.mxu0
      %v4366 = vadd.f32 %v4247, %v4365
      %v4367 = vpop.f32.mrf.mxu0
      %v4368 = vadd.f32 %v4247, %v4367
      %4369 = vmatmul.bf16.gmra.mxu0 %v4298
      %v4370 = vpop.f32.mrf.mxu0
      %v4371 = vadd.f32 %v4247, %v4370
      %v4372 = vpop.f32.mrf.mxu0
      %v4373 = vadd.f32 %v4247, %v4372
      %4374 = vmatmul.bf16.gmra.mxu0 %v4301
      %v4375 = vpop.f32.mrf.mxu0
      %v4376 = vadd.f32 %v4247, %v4375
      %v4377 = vpop.f32.mrf.mxu0
      %v4378 = vadd.f32 %v4247, %v4377
      %4379 = vmatmul.bf16.gmra.mxu0 %v4304
      %v4380 = vpop.f32.mrf.mxu0
      %v4381 = vadd.f32 %v4247, %v4380
      %v4382 = vpop.f32.mrf.mxu0
      %v4383 = vadd.f32 %v4247, %v4382
      %4384 = vmatmul.bf16.gmra.mxu0 %v4307
      %v4385 = vpop.f32.mrf.mxu0
      %v4386 = vadd.f32 %v4247, %v4385
      %v4387 = vpop.f32.mrf.mxu0
      %v4388 = vadd.f32 %v4247, %v4387
      %4389 = vmatmul.bf16.gmra.mxu0 %v4310
      %v4390 = vpop.f32.mrf.mxu0
      %v4391 = vadd.f32 %v4247, %v4390
      %v4392 = vpop.f32.mrf.mxu0
      %v4393 = vadd.f32 %v4247, %v4392
      %4394 = vmatmul.bf16.gmra.mxu0 %v4313
      %v4395 = vpop.f32.mrf.mxu0
      %v4396 = vadd.f32 %v4247, %v4395
      %v4397 = vpop.f32.mrf.mxu0
      %v4398 = vadd.f32 %v4247, %v4397
      %4399 = vmatmul.bf16.gmra.mxu0 %v4316
      %v4400 = vpop.f32.mrf.mxu0
      %v4401 = vadd.f32 %v4247, %v4400
      %v4402 = vpop.f32.mrf.mxu0
      %v4403 = vadd.f32 %v4247, %v4402
      %4404 = vmatmul.bf16.gmra.mxu0 %v4319
      %v4405 = vpop.f32.mrf.mxu0
      %v4406 = vadd.f32 %v4247, %v4405
      %v4407 = vpop.f32.mrf.mxu0
      %v4408 = vadd.f32 %v4247, %v4407
      %4409 = vdwg.mxu0
      %v4410 = vld [vmem:[%s2 + $0x4] sm:$0x1]
      %v4411 = vperm.slane %v4410, 0
      %v4412 = vmul.f32 %v4331, %v4411
      %v4413 = vmul.f32 %v4333, %v4411
      %v4414 = vmul.f32 %v4336, %v4411
      %v4415 = vmul.f32 %v4338, %v4411
      %v4416 = vmul.f32 %v4341, %v4411
      %v4417 = vmul.f32 %v4343, %v4411
      %v4418 = vmul.f32 %v4346, %v4411
      %v4419 = vmul.f32 %v4348, %v4411
      %v4420 = vmul.f32 %v4351, %v4411
      %v4421 = vmul.f32 %v4353, %v4411
      %v4422 = vmul.f32 %v4356, %v4411
      %v4423 = vmul.f32 %v4358, %v4411
      %v4424 = vmul.f32 %v4361, %v4411
      %v4425 = vmul.f32 %v4363, %v4411
      %v4426 = vmul.f32 %v4366, %v4411
      %v4427 = vmul.f32 %v4368, %v4411
      %v4428 = vmul.f32 %v4371, %v4411
      %v4429 = vmul.f32 %v4373, %v4411
      %v4430 = vmul.f32 %v4376, %v4411
      %v4431 = vmul.f32 %v4378, %v4411
      %v4432 = vmul.f32 %v4381, %v4411
      %v4433 = vmul.f32 %v4383, %v4411
      %v4434 = vmul.f32 %v4386, %v4411
      %v4435 = vmul.f32 %v4388, %v4411
      %v4436 = vmul.f32 %v4391, %v4411
      %v4437 = vmul.f32 %v4393, %v4411
      %v4438 = vmul.f32 %v4396, %v4411
      %v4439 = vmul.f32 %v4398, %v4411
      %v4440 = vmul.f32 %v4401, %v4411
      %v4441 = vmul.f32 %v4403, %v4411
      %v4442 = vmul.f32 %v4406, %v4411
      %v4443 = vmul.f32 %v4408, %v4411
      %v4444 = vld [vmem:[%s246] sm:$0xff]
      %v4445 = vld [vmem:[%s246 + $0x8] sm:$0xff]
      %v4446 = vld [vmem:[%s246 + $0x10] sm:$0xff]
      %v4447 = vld [vmem:[%s246 + $0x18] sm:$0xff]
      %v4448 = vld [vmem:[%s246 + $0x20] sm:$0xff]
      %v4449 = vld [vmem:[%s246 + $0x28] sm:$0xff]
      %v4450 = vld [vmem:[%s246 + $0x30] sm:$0xff]
      %v4451 = vld [vmem:[%s246 + $0x38] sm:$0xff]
      %v4452 = vld [vmem:[%s246 + $0x40] sm:$0xff]
      %v4453 = vld [vmem:[%s246 + $0x48] sm:$0xff]
      %v4454 = vld [vmem:[%s246 + $0x50] sm:$0xff]
      %v4455 = vld [vmem:[%s246 + $0x58] sm:$0xff]
      %v4456 = vld [vmem:[%s246 + $0x60] sm:$0xff]
      %v4457 = vld [vmem:[%s246 + $0x68] sm:$0xff]
      %v4458 = vld [vmem:[%s246 + $0x70] sm:$0xff]
      %v4459 = vld [vmem:[%s246 + $0x78] sm:$0xff]
      %v4460 = vld [vmem:[%s246 + $0x80] sm:$0xff]
      %v4461 = vld [vmem:[%s246 + $0x88] sm:$0xff]
      %v4462 = vld [vmem:[%s246 + $0x90] sm:$0xff]
      %v4463 = vld [vmem:[%s246 + $0x98] sm:$0xff]
      %v4464 = vld [vmem:[%s246 + $0xa0] sm:$0xff]
      %v4465 = vld [vmem:[%s246 + $0xa8] sm:$0xff]
      %v4466 = vld [vmem:[%s246 + $0xb0] sm:$0xff]
      %v4467 = vld [vmem:[%s246 + $0xb8] sm:$0xff]
      %v4468 = vld [vmem:[%s246 + $0xc0] sm:$0xff]
      %v4469 = vld [vmem:[%s246 + $0xc8] sm:$0xff]
      %v4470 = vld [vmem:[%s246 + $0xd0] sm:$0xff]
      %v4471 = vld [vmem:[%s246 + $0xd8] sm:$0xff]
      %v4472 = vld [vmem:[%s246 + $0xe0] sm:$0xff]
      %v4473 = vld [vmem:[%s246 + $0xe8] sm:$0xff]
      %v4474 = vld [vmem:[%s246 + $0xf0] sm:$0xff]
      %v4475 = vld [vmem:[%s246 + $0xf8] sm:$0xff]
      %v4476 = vadd.f32 %v4444, %v4412
      %v4477 = vadd.f32 %v4445, %v4413
      %v4478 = vadd.f32 %v4446, %v4414
      %v4479 = vadd.f32 %v4447, %v4415
      %v4480 = vadd.f32 %v4448, %v4416
      %v4481 = vadd.f32 %v4449, %v4417
      %v4482 = vadd.f32 %v4450, %v4418
      %v4483 = vadd.f32 %v4451, %v4419
      %v4484 = vadd.f32 %v4452, %v4420
      %v4485 = vadd.f32 %v4453, %v4421
      %v4486 = vadd.f32 %v4454, %v4422
      %v4487 = vadd.f32 %v4455, %v4423
      %v4488 = vadd.f32 %v4456, %v4424
      %v4489 = vadd.f32 %v4457, %v4425
      %v4490 = vadd.f32 %v4458, %v4426
      %v4491 = vadd.f32 %v4459, %v4427
      %v4492 = vadd.f32 %v4460, %v4428
      %v4493 = vadd.f32 %v4461, %v4429
      %v4494 = vadd.f32 %v4462, %v4430
      %v4495 = vadd.f32 %v4463, %v4431
      %v4496 = vadd.f32 %v4464, %v4432
      %v4497 = vadd.f32 %v4465, %v4433
      %v4498 = vadd.f32 %v4466, %v4434
      %v4499 = vadd.f32 %v4467, %v4435
      %v4500 = vadd.f32 %v4468, %v4436
      %v4501 = vadd.f32 %v4469, %v4437
      %v4502 = vadd.f32 %v4470, %v4438
      %v4503 = vadd.f32 %v4471, %v4439
      %v4504 = vadd.f32 %v4472, %v4440
      %v4505 = vadd.f32 %v4473, %v4441
      %v4506 = vadd.f32 %v4474, %v4442
      %v4507 = vadd.f32 %v4475, %v4443
      %4508 = vst.msk [vmem:[%s251] sm:$0xff] %vm253, %v4476
      %4509 = vst.msk [vmem:[%s251 + $0x8] sm:$0xff] %vm253, %v4477
      %4510 = vst.msk [vmem:[%s251 + $0x10] sm:$0xff] %vm253, %v4478
      %4511 = vst.msk [vmem:[%s251 + $0x18] sm:$0xff] %vm253, %v4479
      %4512 = vst.msk [vmem:[%s251 + $0x20] sm:$0xff] %vm253, %v4480
      %4513 = vst.msk [vmem:[%s251 + $0x28] sm:$0xff] %vm253, %v4481
      %4514 = vst.msk [vmem:[%s251 + $0x30] sm:$0xff] %vm253, %v4482
      %4515 = vst.msk [vmem:[%s251 + $0x38] sm:$0xff] %vm253, %v4483
      %4516 = vst.msk [vmem:[%s251 + $0x40] sm:$0xff] %vm253, %v4484
      %4517 = vst.msk [vmem:[%s251 + $0x48] sm:$0xff] %vm253, %v4485
      %4518 = vst.msk [vmem:[%s251 + $0x50] sm:$0xff] %vm253, %v4486
      %4519 = vst.msk [vmem:[%s251 + $0x58] sm:$0xff] %vm253, %v4487
      %4520 = vst.msk [vmem:[%s251 + $0x60] sm:$0xff] %vm253, %v4488
      %4521 = vst.msk [vmem:[%s251 + $0x68] sm:$0xff] %vm253, %v4489
      %4522 = vst.msk [vmem:[%s251 + $0x70] sm:$0xff] %vm253, %v4490
      %4523 = vst.msk [vmem:[%s251 + $0x78] sm:$0xff] %vm253, %v4491
      %4524 = vst.msk [vmem:[%s251 + $0x80] sm:$0xff] %vm253, %v4492
      %4525 = vst.msk [vmem:[%s251 + $0x88] sm:$0xff] %vm253, %v4493
      %4526 = vst.msk [vmem:[%s251 + $0x90] sm:$0xff] %vm253, %v4494
      %4527 = vst.msk [vmem:[%s251 + $0x98] sm:$0xff] %vm253, %v4495
      %4528 = vst.msk [vmem:[%s251 + $0xa0] sm:$0xff] %vm253, %v4496
      %4529 = vst.msk [vmem:[%s251 + $0xa8] sm:$0xff] %vm253, %v4497
      %4530 = vst.msk [vmem:[%s251 + $0xb0] sm:$0xff] %vm253, %v4498
      %4531 = vst.msk [vmem:[%s251 + $0xb8] sm:$0xff] %vm253, %v4499
      %4532 = vst.msk [vmem:[%s251 + $0xc0] sm:$0xff] %vm253, %v4500
      %4533 = vst.msk [vmem:[%s251 + $0xc8] sm:$0xff] %vm253, %v4501
      %4534 = vst.msk [vmem:[%s251 + $0xd0] sm:$0xff] %vm253, %v4502
      %4535 = vst.msk [vmem:[%s251 + $0xd8] sm:$0xff] %vm253, %v4503
      %4536 = vst.msk [vmem:[%s251 + $0xe0] sm:$0xff] %vm253, %v4504
      %4537 = vst.msk [vmem:[%s251 + $0xe8] sm:$0xff] %vm253, %v4505
      %4538 = vst.msk [vmem:[%s251 + $0xf0] sm:$0xff] %vm253, %v4506
      %4539 = vst.msk [vmem:[%s251 + $0xf8] sm:$0xff] %vm253, %v4507
      %p4540 = scmp.lt.s32.totalorder %s17, 1
      %s4541 = scalar_select %p4540, %s17, 1
      %s4542 = smul.addr %s4541, 32
      %s4543 = smul.addr %s4542, 8
      %s4544 = scalar_lea.vmem %s6, %s4543
      // Predicated region
      $region52: #{_lambda_.1} parent=43 // pred_check
        %p4545 = pneg %p166
      $region53: #{_lambda_.1} parent=43 // pred_check_branch
        %4547 = sbr.rel (%p4545) target = $region55
      $region54: #{_lambda_.1} parent=43 // pred_region
        _
      $region55: #{_lambda_.1} parent=43 // pred_fallthru
        _
    $region44: #{_lambda_.1} parent=5 // pred_fallthru
      _
    %p4548 = scmp.le.s32.totalorder 2, %s12
    // Predicated region
    $region56: #{_lambda_.1} parent=5 // pred_check
      %p4549 = pneg %p4548
    $region57: #{_lambda_.1} parent=5 // pred_check_branch
      %4551 = sbr.rel (%p4549) target = $region59
    $region58: #{_lambda_.1} parent=5 // pred_region
      %s4552 = ssub.s32 %s12, 2
      // Predicated region
      $region60: #{_lambda_.1} parent=58 // pred_check
        %p4553 = pneg %p172
      $region61: #{_lambda_.1} parent=58 // pred_check_branch
        %4555 = sbr.rel (%p4553) target = $region63
      $region62: #{_lambda_.1} parent=58 // pred_region
        %p4556 = scmp.lt.s32.totalorder %s18, 1
        %s4557 = scalar_select %p4556, %s18, 1
        %s4558 = smul.addr %s4557, 32
        %s4559 = smul.addr %s4558, 8
        %s4560 = scalar_lea.vmem %s6, %s4559
      $region63: #{_lambda_.1} parent=58 // pred_fallthru
        _
    $region59: #{_lambda_.1} parent=5 // pred_fallthru
      _
  $region6: #{_lambda_.1} parent=0 // loop_footer
    %s16 = sadd.s32 1, %s12
  $region7: #{_lambda_.1} parent=0 // loop_footer_branch
    %11 = sbr.rel target = $region3
  $region8: #{_lambda_.1} parent=0 // loop_exit
    _

</llo_original>
